<compile_context>
chip_gen: v6e
topology: v6e:2x2x1
jax: 0.10.0
libtpu: 0.0.40
codegen_flags: <defaults>
</compile_context>

<pallas_src>
import functools

import jax
import jax.numpy as jnp
from jax.experimental import pallas as pl
from jax.experimental.pallas import tpu as pltpu


# ---------------------------------------------------------------------------
# Kernels
# ---------------------------------------------------------------------------
def _mm_bias_kernel(x_ref, w_ref, b_ref, o_ref, *, relu):
    """out = act(x @ w + bias); bf16 inputs, f32 accumulate/epilogue."""
    acc = jnp.dot(x_ref[...], w_ref[...], preferred_element_type=jnp.float32)
    y = acc + b_ref[...]
    if relu:
        y = jnp.maximum(y, 0.0)
    o_ref[...] = y.astype(o_ref.dtype)


def _dual_mm_bias_relu_kernel(a_ref, wa_ref, r_ref, wr_ref, b_ref, o_ref):
    """Fused cb_3 + cb_residual + add + ReLU: relu(a@wa + r@wr + bias)."""
    acc = jnp.dot(a_ref[...], wa_ref[...], preferred_element_type=jnp.float32)
    acc += jnp.dot(r_ref[...], wr_ref[...], preferred_element_type=jnp.float32)
    o_ref[...] = jnp.maximum(acc + b_ref[...], 0.0).astype(o_ref.dtype)


def _conv3x3_bn_relu_kernel(xph_ref, w_ref, b_ref, o_ref, *,
                            stride, dilation, tile_ho, Wo):
    """3x3 dilated/strided conv + BN bias + ReLU.

    xph_ref : (1, stride*stride, Hq, Wq, Cin)  phase-split padded input
              (resident across the Ho-tile grid axis)
    w_ref   : (9, Cin, Cout)   BN-scale-folded taps, tap index = kh*3 + kw
    b_ref   : (1, Cout)
    o_ref   : (tile_ho * Wo, Cout)
    """
    t = pl.program_id(1)
    rows = tile_ho * Wo
    cout = w_ref.shape[2]
    acc = jnp.zeros((rows, cout), jnp.float32)
    for kh in range(3):
        for kw in range(3):
            oh, ow = kh * dilation, kw * dilation
            pidx = (oh % stride) * stride + (ow % stride)
            patch = xph_ref[0, pidx,
                            pl.ds(t * tile_ho + oh // stride, tile_ho),
                            pl.ds(ow // stride, Wo), :]
            acc += jnp.dot(patch.reshape(rows, patch.shape[-1]),
                           w_ref[kh * 3 + kw],
                           preferred_element_type=jnp.float32)
    y = acc + b_ref[...]
    o_ref[...] = jnp.maximum(y, 0.0).astype(o_ref.dtype)


# ---------------------------------------------------------------------------
# pallas_call wrappers
# ---------------------------------------------------------------------------
def _round_up(x, m):
    return (x + m - 1) // m * m


def matmul_bias(x, w, bias, *, relu, out_dtype, tile_m=512):
    """out = act(x @ w + bias), rows tiled over an M grid."""
    M, K = x.shape
    C = w.shape[1]
    tm = min(tile_m, _round_up(M, 8))
    return pl.pallas_call(
        functools.partial(_mm_bias_kernel, relu=relu),
        out_shape=jax.ShapeDtypeStruct((M, C), out_dtype),
        grid=(pl.cdiv(M, tm),),
        in_specs=[
            pl.BlockSpec((tm, K), lambda i: (i, 0)),     # activation rows
            pl.BlockSpec((K, C), lambda i: (0, 0)),      # folded weight (resident)
            pl.BlockSpec((1, C), lambda i: (0, 0)),      # bias
        ],
        out_specs=pl.BlockSpec((tm, C), lambda i: (i, 0)),
        compiler_params=pltpu.CompilerParams(
            dimension_semantics=("parallel",)),
    )(x, w, bias)


def dual_matmul_bias_relu(a, wa, r, wr, bias, *, out_dtype, tile_m=512):
    """out = relu(a @ wa + r @ wr + bias) — fused main path + residual 1x1."""
    M, Ka = a.shape
    Kr = r.shape[1]
    C = wa.shape[1]
    tm = min(tile_m, _round_up(M, 8))
    return pl.pallas_call(
        _dual_mm_bias_relu_kernel,
        out_shape=jax.ShapeDtypeStruct((M, C), out_dtype),
        grid=(pl.cdiv(M, tm),),
        in_specs=[
            pl.BlockSpec((tm, Ka), lambda i: (i, 0)),    # y2 rows
            pl.BlockSpec((Ka, C), lambda i: (0, 0)),     # w3 (folded)
            pl.BlockSpec((tm, Kr), lambda i: (i, 0)),    # strided x rows
            pl.BlockSpec((Kr, C), lambda i: (0, 0)),     # wr (folded)
            pl.BlockSpec((1, C), lambda i: (0, 0)),      # combined bias
        ],
        out_specs=pl.BlockSpec((tm, C), lambda i: (i, 0)),
        compiler_params=pltpu.CompilerParams(
            dimension_semantics=("parallel",)),
    )(a, wa, r, wr, bias)


def _phase_split(xpad, stride):
    """(N,Hp,Wp,C) -> (N, s*s, Hq, Wq, C) with out[n, ph*s+pw, i, j] =
    xpad[n, i*s+ph, j*s+pw]. Unit memory cost; makes every conv tap read a
    contiguous (unit-stride) slice inside the kernel."""
    N, Hp, Wp, C = xpad.shape
    if stride == 1:
        return xpad.reshape(N, 1, Hp, Wp, C)
    Hq = -(-Hp // stride)
    Wq = -(-Wp // stride)
    xpad = jnp.pad(xpad, ((0, 0), (0, Hq * stride - Hp),
                          (0, Wq * stride - Wp), (0, 0)))
    x6 = xpad.reshape(N, Hq, stride, Wq, stride, C)
    x6 = jnp.transpose(x6, (0, 2, 4, 1, 3, 5))
    return x6.reshape(N, stride * stride, Hq, Wq, C)


def _pick_tile_ho(Ho, Wo, cap_rows=1024):
    divs = [d for d in range(1, Ho + 1) if Ho % d == 0]
    good = [d for d in divs if d * Wo <= cap_rows and (d * Wo) % 8 == 0]
    if good:
        return max(good)
    ok = [d for d in divs if d * Wo <= cap_rows]
    return max(ok) if ok else 1


def conv3x3_bn_relu(y_nhwc, w9, bias, *, stride, dilation, out_dtype):
    """Fused 3x3 conv (padding=dilation) + BN bias + ReLU, no HBM im2col.

    Returns ((N*Ho*Wo, Cout) rows, (Ho, Wo))."""
    N, H, W, Cin = y_nhwc.shape
    Cout = w9.shape[2]
    p = dilation
    Ho = (H + 2 * p - 2 * dilation - 1) // stride + 1
    Wo = (W + 2 * p - 2 * dilation - 1) // stride + 1

    xpad = jnp.pad(y_nhwc, ((0, 0), (p, p), (p, p), (0, 0)))
    xph = _phase_split(xpad, stride)                  # (N, s*s, Hq, Wq, Cin)
    _, s2, Hq, Wq, _ = xph.shape

    tile_ho = _pick_tile_ho(Ho, Wo)
    NT = Ho // tile_ho

    kernel = functools.partial(_conv3x3_bn_relu_kernel, stride=stride,
                               dilation=dilation, tile_ho=tile_ho, Wo=Wo)
    out = pl.pallas_call(
        kernel,
        out_shape=jax.ShapeDtypeStruct((N * Ho * Wo, Cout), out_dtype),
        grid=(N, NT),
        in_specs=[
            # Full padded image per batch element; index constant across the
            # Ho-tile axis -> fetched once per n, resident while tiles run.
            pl.BlockSpec((1, s2, Hq, Wq, Cin), lambda n, t: (n, 0, 0, 0, 0)),
            pl.BlockSpec((9, Cin, Cout), lambda n, t: (0, 0, 0)),
            pl.BlockSpec((1, Cout), lambda n, t: (0, 0)),
        ],
        out_specs=pl.BlockSpec((tile_ho * Wo, Cout),
                               lambda n, t: (n * NT + t, 0)),
        compiler_params=pltpu.CompilerParams(
            dimension_semantics=("parallel", "arbitrary")),
    )(xph, w9, bias)
    return out, (Ho, Wo)


# ---------------------------------------------------------------------------
# BN folding, params, forward
# ---------------------------------------------------------------------------
def _bn_fold(gamma, beta, mean, var, eps=1e-5):
    scale = gamma / jnp.sqrt(var + eps)
    return scale, beta - mean * scale


def init_params(key, in_ch, mid_ch, out_ch):
    ks = jax.random.split(key, 8)

    def conv_w(k, shape):                              # (Cout, Cin, kh, kw)
        fan_in = shape[1] * shape[2] * shape[3]
        bound = 1.0 / (fan_in ** 0.5)
        return jax.random.uniform(k, shape, jnp.float32, -bound, bound)

    def bn(k, c):
        k1, k2, k3, k4 = jax.random.split(k, 4)
        gamma = jax.random.uniform(k1, (c,), jnp.float32, 0.5, 1.5)
        beta = jax.random.uniform(k2, (c,), jnp.float32, -0.5, 0.5)
        mean = jax.random.uniform(k3, (c,), jnp.float32, -0.5, 0.5)
        var = jax.random.uniform(k4, (c,), jnp.float32, 0.5, 1.5)
        return gamma, beta, mean, var

    return {
        "w1": conv_w(ks[0], (mid_ch, in_ch, 1, 1)), "bn1": bn(ks[1], mid_ch),
        "w2": conv_w(ks[2], (mid_ch, mid_ch, 3, 3)), "bn2": bn(ks[3], mid_ch),
        "w3": conv_w(ks[4], (out_ch, mid_ch, 1, 1)), "bn3": bn(ks[5], out_ch),
        "wr": conv_w(ks[6], (out_ch, in_ch, 1, 1)), "bnr": bn(ks[7], out_ch),
    }


def bottleneck_psp_forward(x_nchw, params, stride, dilation):
    N, Cin, H, W = x_nchw.shape
    x = jnp.transpose(x_nchw, (0, 2, 3, 1))            # NHWC (one layout pass)

    # cbr_1: 1x1 conv + BN + ReLU  (BN scale folded into the weight, bf16 MXU)
    s1, b1 = _bn_fold(*params["bn1"])
    w1 = (params["w1"][:, :, 0, 0].T * s1[None, :]).astype(jnp.bfloat16)
    Cmid = w1.shape[1]
    xr = x.reshape(N * H * W, Cin).astype(jnp.bfloat16)
    y1 = matmul_bias(xr, w1, b1.reshape(1, -1).astype(jnp.float32),
                     relu=True, out_dtype=jnp.bfloat16)
    y1 = y1.reshape(N, H, W, Cmid)

    # cbr_2: 3x3 conv (stride, dilation, padding=dilation) + BN + ReLU,
    # 9-tap accumulation inside the kernel (no im2col in HBM).
    s2, b2 = _bn_fold(*params["bn2"])
    w2 = jnp.transpose(params["w2"], (2, 3, 1, 0)) * s2     # (3,3,Cin,Cout)
    w2 = w2.reshape(9, Cmid, Cmid).astype(jnp.bfloat16)
    y2, (Ho, Wo) = conv3x3_bn_relu(
        y1, w2, b2.reshape(1, -1).astype(jnp.float32),
        stride=stride, dilation=dilation, out_dtype=jnp.bfloat16)

    # cb_3 + cb_residual + add + ReLU, fused into one kernel.
    s3, b3 = _bn_fold(*params["bn3"])
    w3 = (params["w3"][:, :, 0, 0].T * s3[None, :]).astype(jnp.bfloat16)
    sr, br = _bn_fold(*params["bnr"])
    wr = (params["wr"][:, :, 0, 0].T * sr[None, :]).astype(jnp.bfloat16)
    Cout = w3.shape[1]
    xs = x[:, ::stride, ::stride, :].reshape(N * Ho * Wo, Cin)
    xs = xs.astype(jnp.bfloat16)
    bias = (b3 + br).reshape(1, -1).astype(jnp.float32)
    out = dual_matmul_bias_relu(y2, w3, xs, wr, bias, out_dtype=jnp.float32)

    out = out.reshape(N, Ho, Wo, Cout)
    return jnp.transpose(out, (0, 3, 1, 2))             # back to NCHW


# ---------------------------------------------------------------------------
# Pure-JAX reference (for a correctness cross-check)
# ---------------------------------------------------------------------------
def _reference_forward(x_nchw, params, stride, dilation, eps=1e-5):
    def conv(x, w, s=1, p=0, d=1):
        return jax.lax.conv_general_dilated(
            x, w, window_strides=(s, s), padding=[(p, p), (p, p)],
            rhs_dilation=(d, d),
            dimension_numbers=("NCHW", "OIHW", "NCHW"))

    def bn(x, pr):
        g, b, m, v = pr
        g, b, m, v = (t[None, :, None, None] for t in (g, b, m, v))
        return (x - m) / jnp.sqrt(v + eps) * g + b

    y = jax.nn.relu(bn(conv(x_nchw, params["w1"]), params["bn1"]))
    y = jax.nn.relu(bn(conv(y, params["w2"], stride, dilation, dilation),
                       params["bn2"]))
    y = bn(conv(y, params["w3"]), params["bn3"])
    r = bn(conv(x_nchw, params["wr"], stride), params["bnr"])
    return jax.nn.relu(y + r)


if __name__ == "__main__":
    key = jax.random.PRNGKey(0)
    k_x, k_p = jax.random.split(key)

    in_ch, mid_ch, out_ch = 4, 4, 8
    stride, dilation = 2, 2
    N, H, W = 2, 16, 16

    x = jax.random.normal(k_x, (N, in_ch, H, W), jnp.float32)
    params = init_params(k_p, in_ch, mid_ch, out_ch)

    fwd = jax.jit(functools.partial(bottleneck_psp_forward,
                                    stride=stride, dilation=dilation))
    out = fwd(x, params)
    jax.block_until_ready(out)

    Ho = (H - 1) // stride + 1
    assert out.shape == (N, out_ch, Ho, Ho), out.shape
    assert bool(jnp.all(out >= 0.0))                    # final ReLU

    ref = _reference_forward(x, params, stride, dilation)
    err = float(jnp.max(jnp.abs(out - ref)))
    assert bool(jnp.allclose(out, ref, atol=2e-1, rtol=8e-2)), err

    print("KERNEL_OK")
</pallas_src>

<mosaic_0001>
module attributes {stable_mosaic.version = 11 : i64} {
  func.func @_mm_bias_kernel(%arg0: i32, %arg1: memref<512x4xbf16, #tpu.memory_space<vmem>>, %arg2: memref<4x4xbf16, #tpu.memory_space<vmem>>, %arg3: memref<1x4xf32, #tpu.memory_space<vmem>>, %arg4: memref<512x4xbf16, #tpu.memory_space<vmem>>) attributes {dimension_semantics = [#tpu.dimension_semantics<parallel>], iteration_bounds = array<i64: 1>, scalar_prefetch = 0 : i64, scratch_operands = 0 : i64, tpu.core_type = #tpu.core_type<tc>, window_params = [{transform_indices = @transform_0, window_bounds = array<i64: 512, 4>}, {pipeline_mode = #tpu.pipeline_mode<synchronous>, transform_indices = @transform_1, window_bounds = array<i64: 4, 4>}, {pipeline_mode = #tpu.pipeline_mode<synchronous>, transform_indices = @transform_2, window_bounds = array<i64: 1, 4>}, {transform_indices = @transform_3, window_bounds = array<i64: 512, 4>}]} {
    %c0 = arith.constant 0 : index
    %c0_0 = arith.constant 0 : index
    %0 = vector.load %arg1[%c0, %c0_0] : memref<512x4xbf16, #tpu.memory_space<vmem>>, vector<512x4xbf16>
    %c0_1 = arith.constant 0 : index
    %c0_2 = arith.constant 0 : index
    %1 = vector.load %arg2[%c0_1, %c0_2] : memref<4x4xbf16, #tpu.memory_space<vmem>>, vector<4x4xbf16>
    %cst = arith.constant dense<0.000000e+00> : vector<512x4xf32>
    %2 = tpu.matmul %0, %1, %cst {dimension_numbers = #tpu.dot_dimension_numbers<[1], [0], [0], [1], [0, 0, 1, 1], [], []>} : vector<512x4xbf16>, vector<4x4xbf16>, vector<512x4xf32> -> vector<512x4xf32>
    %c0_3 = arith.constant 0 : index
    %c0_4 = arith.constant 0 : index
    %3 = vector.load %arg3[%c0_3, %c0_4] : memref<1x4xf32, #tpu.memory_space<vmem>>, vector<1x4xf32>
    %4 = vector.broadcast %3 : vector<1x4xf32> to vector<512x4xf32>
    %5 = arith.addf %2, %4 : vector<512x4xf32>
    %cst_5 = arith.constant 0.000000e+00 : f32
    %6 = vector.broadcast %cst_5 : f32 to vector<512x4xf32>
    %7 = arith.maximumf %5, %6 : vector<512x4xf32>
    %8 = arith.truncf %7 : vector<512x4xf32> to vector<512x4xbf16>
    %c0_6 = arith.constant 0 : index
    %c0_7 = arith.constant 0 : index
    %9 = vector.load %arg4[%c0_6, %c0_7] : memref<512x4xbf16, #tpu.memory_space<vmem>>, vector<512x4xbf16>
    tpu.vector_store %arg4[%c0_6, %c0_7], %8 {strides = array<i32>} : memref<512x4xbf16, #tpu.memory_space<vmem>>, vector<512x4xbf16>,
    return
  }
  func.func @transform_0(%arg0: i32) -> (i32, i32) {
    %c0_i32 = arith.constant 0 : i32
    %c0_i32_0 = arith.constant 0 : i32
    return %arg0, %c0_i32 : i32, i32
  }
  func.func @transform_1(%arg0: i32) -> (i32, i32) {
    %c0_i32 = arith.constant 0 : i32
    %c0_i32_0 = arith.constant 0 : i32
    %c0_i32_1 = arith.constant 0 : i32
    return %c0_i32, %c0_i32_0 : i32, i32
  }
  func.func @transform_2(%arg0: i32) -> (i32, i32) {
    %c0_i32 = arith.constant 0 : i32
    %c0_i32_0 = arith.constant 0 : i32
    %c0_i32_1 = arith.constant 0 : i32
    return %c0_i32, %c0_i32_0 : i32, i32
  }
  func.func @transform_3(%arg0: i32) -> (i32, i32) {
    %c0_i32 = arith.constant 0 : i32
    %c0_i32_0 = arith.constant 0 : i32
    return %arg0, %c0_i32 : i32, i32
  }
}

module attributes {stable_mosaic.version = 11 : i64} {
  func.func @_conv3x3_bn_relu_kernel(%arg0: i32, %arg1: i32, %arg2: memref<1x4x10x10x4xbf16, #tpu.memory_space<vmem>>, %arg3: memref<9x4x4xbf16, #tpu.memory_space<vmem>>, %arg4: memref<1x4xf32, #tpu.memory_space<vmem>>, %arg5: memref<64x4xbf16, #tpu.memory_space<vmem>>) attributes {dimension_semantics = [#tpu.dimension_semantics<parallel>, #tpu.dimension_semantics<arbitrary>], iteration_bounds = array<i64: 2, 1>, scalar_prefetch = 0 : i64, scratch_operands = 0 : i64, tpu.core_type = #tpu.core_type<tc>, window_params = [{transform_indices = @transform_0, window_bounds = array<i64: 1, 4, 10, 10, 4>}, {pipeline_mode = #tpu.pipeline_mode<synchronous>, transform_indices = @transform_1, window_bounds = array<i64: 9, 4, 4>}, {pipeline_mode = #tpu.pipeline_mode<synchronous>, transform_indices = @transform_2, window_bounds = array<i64: 1, 4>}, {transform_indices = @transform_3, window_bounds = array<i64: 64, 4>}]} {
    %cst = arith.constant 0.000000e+00 : f32
    %0 = vector.broadcast %cst : f32 to vector<64x4xf32>
    %c8_i32 = arith.constant 8 : i32
    %1 = arith.muli %arg1, %c8_i32 : i32
    %c0_i32 = arith.constant 0 : i32
    %2 = arith.addi %1, %c0_i32 : i32
    %c0 = arith.constant 0 : index
    %c0_0 = arith.constant 0 : index
    %3 = arith.index_cast %2 : i32 to index
    %c0_1 = arith.constant 0 : index
    %c0_2 = arith.constant 0 : index
    %4 = vector.load %arg2[%c0, %c0_0, %3, %c0_1, %c0_2] : memref<1x4x10x10x4xbf16, #tpu.memory_space<vmem>>, vector<1x1x8x8x4xbf16>
    %5 = vector.shape_cast %4 : vector<1x1x8x8x4xbf16> to vector<8x8x4xbf16>
    %6 = vector.shape_cast %5 : vector<8x8x4xbf16> to vector<64x4xbf16>
    %c0_3 = arith.constant 0 : index
    %c0_4 = arith.constant 0 : index
    %c0_5 = arith.constant 0 : index
    %7 = vector.load %arg3[%c0_3, %c0_4, %c0_5] : memref<9x4x4xbf16, #tpu.memory_space<vmem>>, vector<1x4x4xbf16>
    %8 = vector.shape_cast %7 : vector<1x4x4xbf16> to vector<4x4xbf16>
    %cst_6 = arith.constant dense<0.000000e+00> : vector<64x4xf32>
    %9 = tpu.matmul %6, %8, %cst_6 {dimension_numbers = #tpu.dot_dimension_numbers<[1], [0], [0], [1], [0, 0, 1, 1], [], []>} : vector<64x4xbf16>, vector<4x4xbf16>, vector<64x4xf32> -> vector<64x4xf32>
    %10 = arith.addf %0, %9 : vector<64x4xf32>
    %c8_i32_7 = arith.constant 8 : i32
    %11 = arith.muli %arg1, %c8_i32_7 : i32
    %c0_i32_8 = arith.constant 0 : i32
    %12 = arith.addi %11, %c0_i32_8 : i32
    %c0_9 = arith.constant 0 : index
    %c0_10 = arith.constant 0 : index
    %13 = arith.index_cast %12 : i32 to index
    %c1 = arith.constant 1 : index
    %c0_11 = arith.constant 0 : index
    %14 = vector.load %arg2[%c0_9, %c0_10, %13, %c1, %c0_11] : memref<1x4x10x10x4xbf16, #tpu.memory_space<vmem>>, vector<1x1x8x8x4xbf16>
    %15 = vector.shape_cast %14 : vector<1x1x8x8x4xbf16> to vector<8x8x4xbf16>
    %16 = vector.shape_cast %15 : vector<8x8x4xbf16> to vector<64x4xbf16>
    %c1_12 = arith.constant 1 : index
    %c0_13 = arith.constant 0 : index
    %c0_14 = arith.constant 0 : index
    %17 = vector.load %arg3[%c1_12, %c0_13, %c0_14] : memref<9x4x4xbf16, #tpu.memory_space<vmem>>, vector<1x4x4xbf16>
    %18 = vector.shape_cast %17 : vector<1x4x4xbf16> to vector<4x4xbf16>
    %cst_15 = arith.constant dense<0.000000e+00> : vector<64x4xf32>
    %19 = tpu.matmul %16, %18, %cst_15 {dimension_numbers = #tpu.dot_dimension_numbers<[1], [0], [0], [1], [0, 0, 1, 1], [], []>} : vector<64x4xbf16>, vector<4x4xbf16>, vector<64x4xf32> -> vector<64x4xf32>
    %20 = arith.addf %10, %19 : vector<64x4xf32>
    %c8_i32_16 = arith.constant 8 : i32
    %21 = arith.muli %arg1, %c8_i32_16 : i32
    %c0_i32_17 = arith.constant 0 : i32
    %22 = arith.addi %21, %c0_i32_17 : i32
    %c0_18 = arith.constant 0 : index
    %c0_19 = arith.constant 0 : index
    %23 = arith.index_cast %22 : i32 to index
    %c2 = arith.constant 2 : index
    %c0_20 = arith.constant 0 : index
    %24 = vector.load %arg2[%c0_18, %c0_19, %23, %c2, %c0_20] : memref<1x4x10x10x4xbf16, #tpu.memory_space<vmem>>, vector<1x1x8x8x4xbf16>
    %25 = vector.shape_cast %24 : vector<1x1x8x8x4xbf16> to vector<8x8x4xbf16>
    %26 = vector.shape_cast %25 : vector<8x8x4xbf16> to vector<64x4xbf16>
    %c2_21 = arith.constant 2 : index
    %c0_22 = arith.constant 0 : index
    %c0_23 = arith.constant 0 : index
    %27 = vector.load %arg3[%c2_21, %c0_22, %c0_23] : memref<9x4x4xbf16, #tpu.memory_space<vmem>>, vector<1x4x4xbf16>
    %28 = vector.shape_cast %27 : vector<1x4x4xbf16> to vector<4x4xbf16>
    %cst_24 = arith.constant dense<0.000000e+00> : vector<64x4xf32>
    %29 = tpu.matmul %26, %28, %cst_24 {dimension_numbers = #tpu.dot_dimension_numbers<[1], [0], [0], [1], [0, 0, 1, 1], [], []>} : vector<64x4xbf16>, vector<4x4xbf16>, vector<64x4xf32> -> vector<64x4xf32>
    %30 = arith.addf %20, %29 : vector<64x4xf32>
    %c8_i32_25 = arith.constant 8 : i32
    %31 = arith.muli %arg1, %c8_i32_25 : i32
    %c1_i32 = arith.constant 1 : i32
    %32 = arith.addi %31, %c1_i32 : i32
    %c0_26 = arith.constant 0 : index
    %c0_27 = arith.constant 0 : index
    %33 = arith.index_cast %32 : i32 to index
    %c0_28 = arith.constant 0 : index
    %c0_29 = arith.constant 0 : index
    %34 = vector.load %arg2[%c0_26, %c0_27, %33, %c0_28, %c0_29] : memref<1x4x10x10x4xbf16, #tpu.memory_space<vmem>>, vector<1x1x8x8x4xbf16>
    %35 = vector.shape_cast %34 : vector<1x1x8x8x4xbf16> to vector<8x8x4xbf16>
    %36 = vector.shape_cast %35 : vector<8x8x4xbf16> to vector<64x4xbf16>
    %c3 = arith.constant 3 : index
    %c0_30 = arith.constant 0 : index
    %c0_31 = arith.constant 0 : index
    %37 = vector.load %arg3[%c3, %c0_30, %c0_31] : memref<9x4x4xbf16, #tpu.memory_space<vmem>>, vector<1x4x4xbf16>
    %38 = vector.shape_cast %37 : vector<1x4x4xbf16> to vector<4x4xbf16>
    %cst_32 = arith.constant dense<0.000000e+00> : vector<64x4xf32>
    %39 = tpu.matmul %36, %38, %cst_32 {dimension_numbers = #tpu.dot_dimension_numbers<[1], [0], [0], [1], [0, 0, 1, 1], [], []>} : vector<64x4xbf16>, vector<4x4xbf16>, vector<64x4xf32> -> vector<64x4xf32>
    %40 = arith.addf %30, %39 : vector<64x4xf32>
    %c8_i32_33 = arith.constant 8 : i32
    %41 = arith.muli %arg1, %c8_i32_33 : i32
    %c1_i32_34 = arith.constant 1 : i32
    %42 = arith.addi %41, %c1_i32_34 : i32
    %c0_35 = arith.constant 0 : index
    %c0_36 = arith.constant 0 : index
    %43 = arith.index_cast %42 : i32 to index
    %c1_37 = arith.constant 1 : index
    %c0_38 = arith.constant 0 : index
    %44 = vector.load %arg2[%c0_35, %c0_36, %43, %c1_37, %c0_38] : memref<1x4x10x10x4xbf16, #tpu.memory_space<vmem>>, vector<1x1x8x8x4xbf16>
    %45 = vector.shape_cast %44 : vector<1x1x8x8x4xbf16> to vector<8x8x4xbf16>
    %46 = vector.shape_cast %45 : vector<8x8x4xbf16> to vector<64x4xbf16>
    %c4 = arith.constant 4 : index
    %c0_39 = arith.constant 0 : index
    %c0_40 = arith.constant 0 : index
    %47 = vector.load %arg3[%c4, %c0_39, %c0_40] : memref<9x4x4xbf16, #tpu.memory_space<vmem>>, vector<1x4x4xbf16>
    %48 = vector.shape_cast %47 : vector<1x4x4xbf16> to vector<4x4xbf16>
    %cst_41 = arith.constant dense<0.000000e+00> : vector<64x4xf32>
    %49 = tpu.matmul %46, %48, %cst_41 {dimension_numbers = #tpu.dot_dimension_numbers<[1], [0], [0], [1], [0, 0, 1, 1], [], []>} : vector<64x4xbf16>, vector<4x4xbf16>, vector<64x4xf32> -> vector<64x4xf32>
    %50 = arith.addf %40, %49 : vector<64x4xf32>
    %c8_i32_42 = arith.constant 8 : i32
    %51 = arith.muli %arg1, %c8_i32_42 : i32
    %c1_i32_43 = arith.constant 1 : i32
    %52 = arith.addi %51, %c1_i32_43 : i32
    %c0_44 = arith.constant 0 : index
    %c0_45 = arith.constant 0 : index
    %53 = arith.index_cast %52 : i32 to index
    %c2_46 = arith.constant 2 : index
    %c0_47 = arith.constant 0 : index
    %54 = vector.load %arg2[%c0_44, %c0_45, %53, %c2_46, %c0_47] : memref<1x4x10x10x4xbf16, #tpu.memory_space<vmem>>, vector<1x1x8x8x4xbf16>
    %55 = vector.shape_cast %54 : vector<1x1x8x8x4xbf16> to vector<8x8x4xbf16>
    %56 = vector.shape_cast %55 : vector<8x8x4xbf16> to vector<64x4xbf16>
    %c5 = arith.constant 5 : index
    %c0_48 = arith.constant 0 : index
    %c0_49 = arith.constant 0 : index
    %57 = vector.load %arg3[%c5, %c0_48, %c0_49] : memref<9x4x4xbf16, #tpu.memory_space<vmem>>, vector<1x4x4xbf16>
    %58 = vector.shape_cast %57 : vector<1x4x4xbf16> to vector<4x4xbf16>
    %cst_50 = arith.constant dense<0.000000e+00> : vector<64x4xf32>
    %59 = tpu.matmul %56, %58, %cst_50 {dimension_numbers = #tpu.dot_dimension_numbers<[1], [0], [0], [1], [0, 0, 1, 1], [], []>} : vector<64x4xbf16>, vector<4x4xbf16>, vector<64x4xf32> -> vector<64x4xf32>
    %60 = arith.addf %50, %59 : vector<64x4xf32>
    %c8_i32_51 = arith.constant 8 : i32
    %61 = arith.muli %arg1, %c8_i32_51 : i32
    %c2_i32 = arith.constant 2 : i32
    %62 = arith.addi %61, %c2_i32 : i32
    %c0_52 = arith.constant 0 : index
    %c0_53 = arith.constant 0 : index
    %63 = arith.index_cast %62 : i32 to index
    %c0_54 = arith.constant 0 : index
    %c0_55 = arith.constant 0 : index
    %64 = vector.load %arg2[%c0_52, %c0_53, %63, %c0_54, %c0_55] : memref<1x4x10x10x4xbf16, #tpu.memory_space<vmem>>, vector<1x1x8x8x4xbf16>
    %65 = vector.shape_cast %64 : vector<1x1x8x8x4xbf16> to vector<8x8x4xbf16>
    %66 = vector.shape_cast %65 : vector<8x8x4xbf16> to vector<64x4xbf16>
    %c6 = arith.constant 6 : index
    %c0_56 = arith.constant 0 : index
    %c0_57 = arith.constant 0 : index
    %67 = vector.load %arg3[%c6, %c0_56, %c0_57] : memref<9x4x4xbf16, #tpu.memory_space<vmem>>, vector<1x4x4xbf16>
    %68 = vector.shape_cast %67 : vector<1x4x4xbf16> to vector<4x4xbf16>
    %cst_58 = arith.constant dense<0.000000e+00> : vector<64x4xf32>
    %69 = tpu.matmul %66, %68, %cst_58 {dimension_numbers = #tpu.dot_dimension_numbers<[1], [0], [0], [1], [0, 0, 1, 1], [], []>} : vector<64x4xbf16>, vector<4x4xbf16>, vector<64x4xf32> -> vector<64x4xf32>
    %70 = arith.addf %60, %69 : vector<64x4xf32>
    %c8_i32_59 = arith.constant 8 : i32
    %71 = arith.muli %arg1, %c8_i32_59 : i32
    %c2_i32_60 = arith.constant 2 : i32
    %72 = arith.addi %71, %c2_i32_60 : i32
    %c0_61 = arith.constant 0 : index
    %c0_62 = arith.constant 0 : index
    %73 = arith.index_cast %72 : i32 to index
    %c1_63 = arith.constant 1 : index
    %c0_64 = arith.constant 0 : index
    %74 = vector.load %arg2[%c0_61, %c0_62, %73, %c1_63, %c0_64] : memref<1x4x10x10x4xbf16, #tpu.memory_space<vmem>>, vector<1x1x8x8x4xbf16>
    %75 = vector.shape_cast %74 : vector<1x1x8x8x4xbf16> to vector<8x8x4xbf16>
    %76 = vector.shape_cast %75 : vector<8x8x4xbf16> to vector<64x4xbf16>
    %c7 = arith.constant 7 : index
    %c0_65 = arith.constant 0 : index
    %c0_66 = arith.constant 0 : index
    %77 = vector.load %arg3[%c7, %c0_65, %c0_66] : memref<9x4x4xbf16, #tpu.memory_space<vmem>>, vector<1x4x4xbf16>
    %78 = vector.shape_cast %77 : vector<1x4x4xbf16> to vector<4x4xbf16>
    %cst_67 = arith.constant dense<0.000000e+00> : vector<64x4xf32>
    %79 = tpu.matmul %76, %78, %cst_67 {dimension_numbers = #tpu.dot_dimension_numbers<[1], [0], [0], [1], [0, 0, 1, 1], [], []>} : vector<64x4xbf16>, vector<4x4xbf16>, vector<64x4xf32> -> vector<64x4xf32>
    %80 = arith.addf %70, %79 : vector<64x4xf32>
    %c8_i32_68 = arith.constant 8 : i32
    %81 = arith.muli %arg1, %c8_i32_68 : i32
    %c2_i32_69 = arith.constant 2 : i32
    %82 = arith.addi %81, %c2_i32_69 : i32
    %c0_70 = arith.constant 0 : index
    %c0_71 = arith.constant 0 : index
    %83 = arith.index_cast %82 : i32 to index
    %c2_72 = arith.constant 2 : index
    %c0_73 = arith.constant 0 : index
    %84 = vector.load %arg2[%c0_70, %c0_71, %83, %c2_72, %c0_73] : memref<1x4x10x10x4xbf16, #tpu.memory_space<vmem>>, vector<1x1x8x8x4xbf16>
    %85 = vector.shape_cast %84 : vector<1x1x8x8x4xbf16> to vector<8x8x4xbf16>
    %86 = vector.shape_cast %85 : vector<8x8x4xbf16> to vector<64x4xbf16>
    %c8 = arith.constant 8 : index
    %c0_74 = arith.constant 0 : index
    %c0_75 = arith.constant 0 : index
    %87 = vector.load %arg3[%c8, %c0_74, %c0_75] : memref<9x4x4xbf16, #tpu.memory_space<vmem>>, vector<1x4x4xbf16>
    %88 = vector.shape_cast %87 : vector<1x4x4xbf16> to vector<4x4xbf16>
    %cst_76 = arith.constant dense<0.000000e+00> : vector<64x4xf32>
    %89 = tpu.matmul %86, %88, %cst_76 {dimension_numbers = #tpu.dot_dimension_numbers<[1], [0], [0], [1], [0, 0, 1, 1], [], []>} : vector<64x4xbf16>, vector<4x4xbf16>, vector<64x4xf32> -> vector<64x4xf32>
    %90 = arith.addf %80, %89 : vector<64x4xf32>
    %c0_77 = arith.constant 0 : index
    %c0_78 = arith.constant 0 : index
    %91 = vector.load %arg4[%c0_77, %c0_78] : memref<1x4xf32, #tpu.memory_space<vmem>>, vector<1x4xf32>
    %92 = vector.broadcast %91 : vector<1x4xf32> to vector<64x4xf32>
    %93 = arith.addf %90, %92 : vector<64x4xf32>
    %cst_79 = arith.constant 0.000000e+00 : f32
    %94 = vector.broadcast %cst_79 : f32 to vector<64x4xf32>
    %95 = arith.maximumf %93, %94 : vector<64x4xf32>
    %96 = arith.truncf %95 : vector<64x4xf32> to vector<64x4xbf16>
    %c0_80 = arith.constant 0 : index
    %c0_81 = arith.constant 0 : index
    %97 = vector.load %arg5[%c0_80, %c0_81] : memref<64x4xbf16, #tpu.memory_space<vmem>>, vector<64x4xbf16>
    tpu.vector_store %arg5[%c0_80, %c0_81], %96 {strides = array<i32>} : memref<64x4xbf16, #tpu.memory_space<vmem>>, vector<64x4xbf16>,
    return
  }
  func.func @transform_0(%arg0: i32, %arg1: i32) -> (i32, i32, i32, i32, i32) {
    %c0_i32 = arith.constant 0 : i32
    %c0_i32_0 = arith.constant 0 : i32
    %c0_i32_1 = arith.constant 0 : i32
    %c0_i32_2 = arith.constant 0 : i32
    %c0_i32_3 = arith.constant 0 : i32
    return %arg0, %c0_i32, %c0_i32_0, %c0_i32_1, %c0_i32_2 : i32, i32, i32, i32, i32
  }
  func.func @transform_1(%arg0: i32, %arg1: i32) -> (i32, i32, i32) {
    %c0_i32 = arith.constant 0 : i32
    %c0_i32_0 = arith.constant 0 : i32
    %c0_i32_1 = arith.constant 0 : i32
    %c0_i32_2 = arith.constant 0 : i32
    return %c0_i32, %c0_i32_0, %c0_i32_1 : i32, i32, i32
  }
  func.func @transform_2(%arg0: i32, %arg1: i32) -> (i32, i32) {
    %c0_i32 = arith.constant 0 : i32
    %c0_i32_0 = arith.constant 0 : i32
    %c0_i32_1 = arith.constant 0 : i32
    return %c0_i32, %c0_i32_0 : i32, i32
  }
  func.func @transform_3(%arg0: i32, %arg1: i32) -> (i32, i32) {
    %c1_i32 = arith.constant 1 : i32
    %0 = arith.muli %arg0, %c1_i32 : i32
    %1 = arith.addi %0, %arg1 : i32
    %c0_i32 = arith.constant 0 : i32
    %c0_i32_0 = arith.constant 0 : i32
    return %1, %c0_i32 : i32, i32
  }
}

module attributes {stable_mosaic.version = 11 : i64} {
  func.func @_dual_mm_bias_relu_kernel(%arg0: i32, %arg1: memref<128x4xbf16, #tpu.memory_space<vmem>>, %arg2: memref<4x8xbf16, #tpu.memory_space<vmem>>, %arg3: memref<128x4xbf16, #tpu.memory_space<vmem>>, %arg4: memref<4x8xbf16, #tpu.memory_space<vmem>>, %arg5: memref<1x8xf32, #tpu.memory_space<vmem>>, %arg6: memref<128x8xf32, #tpu.memory_space<vmem>>) attributes {dimension_semantics = [#tpu.dimension_semantics<parallel>], iteration_bounds = array<i64: 1>, scalar_prefetch = 0 : i64, scratch_operands = 0 : i64, tpu.core_type = #tpu.core_type<tc>, window_params = [{transform_indices = @transform_0, window_bounds = array<i64: 128, 4>}, {pipeline_mode = #tpu.pipeline_mode<synchronous>, transform_indices = @transform_1, window_bounds = array<i64: 4, 8>}, {transform_indices = @transform_2, window_bounds = array<i64: 128, 4>}, {pipeline_mode = #tpu.pipeline_mode<synchronous>, transform_indices = @transform_3, window_bounds = array<i64: 4, 8>}, {pipeline_mode = #tpu.pipeline_mode<synchronous>, transform_indices = @transform_4, window_bounds = array<i64: 1, 8>}, {transform_indices = @transform_5, window_bounds = array<i64: 128, 8>}]} {
    %c0 = arith.constant 0 : index
    %c0_0 = arith.constant 0 : index
    %0 = vector.load %arg1[%c0, %c0_0] : memref<128x4xbf16, #tpu.memory_space<vmem>>, vector<128x4xbf16>
    %c0_1 = arith.constant 0 : index
    %c0_2 = arith.constant 0 : index
    %1 = vector.load %arg2[%c0_1, %c0_2] : memref<4x8xbf16, #tpu.memory_space<vmem>>, vector<4x8xbf16>
    %cst = arith.constant dense<0.000000e+00> : vector<128x8xf32>
    %2 = tpu.matmul %0, %1, %cst {dimension_numbers = #tpu.dot_dimension_numbers<[1], [0], [0], [1], [0, 0, 1, 1], [], []>} : vector<128x4xbf16>, vector<4x8xbf16>, vector<128x8xf32> -> vector<128x8xf32>
    %c0_3 = arith.constant 0 : index
    %c0_4 = arith.constant 0 : index
    %3 = vector.load %arg3[%c0_3, %c0_4] : memref<128x4xbf16, #tpu.memory_space<vmem>>, vector<128x4xbf16>
    %c0_5 = arith.constant 0 : index
    %c0_6 = arith.constant 0 : index
    %4 = vector.load %arg4[%c0_5, %c0_6] : memref<4x8xbf16, #tpu.memory_space<vmem>>, vector<4x8xbf16>
    %cst_7 = arith.constant dense<0.000000e+00> : vector<128x8xf32>
    %5 = tpu.matmul %3, %4, %cst_7 {dimension_numbers = #tpu.dot_dimension_numbers<[1], [0], [0], [1], [0, 0, 1, 1], [], []>} : vector<128x4xbf16>, vector<4x8xbf16>, vector<128x8xf32> -> vector<128x8xf32>
    %6 = arith.addf %2, %5 : vector<128x8xf32>
    %c0_8 = arith.constant 0 : index
    %c0_9 = arith.constant 0 : index
    %7 = vector.load %arg5[%c0_8, %c0_9] : memref<1x8xf32, #tpu.memory_space<vmem>>, vector<1x8xf32>
    %8 = vector.broadcast %7 : vector<1x8xf32> to vector<128x8xf32>
    %9 = arith.addf %6, %8 : vector<128x8xf32>
    %cst_10 = arith.constant 0.000000e+00 : f32
    %10 = vector.broadcast %cst_10 : f32 to vector<128x8xf32>
    %11 = arith.maximumf %9, %10 : vector<128x8xf32>
    %c0_11 = arith.constant 0 : index
    %c0_12 = arith.constant 0 : index
    %12 = vector.load %arg6[%c0_11, %c0_12] : memref<128x8xf32, #tpu.memory_space<vmem>>, vector<128x8xf32>
    tpu.vector_store %arg6[%c0_11, %c0_12], %11 {strides = array<i32>} : memref<128x8xf32, #tpu.memory_space<vmem>>, vector<128x8xf32>,
    return
  }
  func.func @transform_0(%arg0: i32) -> (i32, i32) {
    %c0_i32 = arith.constant 0 : i32
    %c0_i32_0 = arith.constant 0 : i32
    return %arg0, %c0_i32 : i32, i32
  }
  func.func @transform_1(%arg0: i32) -> (i32, i32) {
    %c0_i32 = arith.constant 0 : i32
    %c0_i32_0 = arith.constant 0 : i32
    %c0_i32_1 = arith.constant 0 : i32
    return %c0_i32, %c0_i32_0 : i32, i32
  }
  func.func @transform_2(%arg0: i32) -> (i32, i32) {
    %c0_i32 = arith.constant 0 : i32
    %c0_i32_0 = arith.constant 0 : i32
    return %arg0, %c0_i32 : i32, i32
  }
  func.func @transform_3(%arg0: i32) -> (i32, i32) {
    %c0_i32 = arith.constant 0 : i32
    %c0_i32_0 = arith.constant 0 : i32
    %c0_i32_1 = arith.constant 0 : i32
    return %c0_i32, %c0_i32_0 : i32, i32
  }
  func.func @transform_4(%arg0: i32) -> (i32, i32) {
    %c0_i32 = arith.constant 0 : i32
    %c0_i32_0 = arith.constant 0 : i32
    %c0_i32_1 = arith.constant 0 : i32
    return %c0_i32, %c0_i32_0 : i32, i32
  }
  func.func @transform_5(%arg0: i32) -> (i32, i32) {
    %c0_i32 = arith.constant 0 : i32
    %c0_i32_0 = arith.constant 0 : i32
    return %arg0, %c0_i32 : i32, i32
  }
}

</mosaic_0001>

<llo_original>
// kernel: bottleneck_psp_forward.3
$region0: #{bottleneck_psp_forward.3}
  #allocation0 [shape = 'u32[]', space=smem, size = 0x4, offset = 0x4, fixed_abs, tag = 'smem constant byte address 0x4 - core index']
  #allocation1 [shape = 'u32[144,128]{1,0:T(1,128)}', space=vmem, size = 0x12000, scoped, tag = 'internal scratch']
  %s0 = inlined_call_operand.vmem [shape: bf16[512,4], index: 0, kind: input, shape index: {}]
  %s1 = inlined_call_operand.vmem [shape: bf16[4,4], index: 1, kind: input, shape index: {}]
  %s2 = inlined_call_operand.vmem [shape: f32[1,4], index: 2, kind: input, shape index: {}]
  %s3 = inlined_call_operand.vmem [shape: bf16[512,4], index: 3, kind: output, shape index: {}]
  %s4 = sld [smem:[#allocation0]]
  $region22: #{bottleneck_psp_forward.3} parent=0
    _
  %s6 = ssub.s32 1, %s4
  %s7 = scalar_select 0, %s6, %s4
  // Predicated region
  $region2: #{bottleneck_psp_forward.3} parent=0 // pred_check
    _
  $region3: #{bottleneck_psp_forward.3} parent=0 // pred_check_branch
    %9 = sbr.rel (0) target = $region5
  $region4: #{bottleneck_psp_forward.3} parent=0 // pred_region
    _
  $region5: #{bottleneck_psp_forward.3} parent=0 // pred_fallthru
    _
  // Predicated region
  $region6: #{bottleneck_psp_forward.3} parent=0 // pred_check
    _
  $region7: #{bottleneck_psp_forward.3} parent=0 // pred_check_branch
    %11 = sbr.rel (0) target = $region9
  $region8: #{bottleneck_psp_forward.3} parent=0 // pred_region
    _
  $region9: #{bottleneck_psp_forward.3} parent=0 // pred_fallthru
    _
  // Predicated region
  $region10: #{bottleneck_psp_forward.3} parent=0 // pred_check
    _
  $region11: #{bottleneck_psp_forward.3} parent=0 // pred_check_branch
    %13 = sbr.rel (0) target = $region13
  $region12: #{bottleneck_psp_forward.3} parent=0 // pred_region
    _
  $region13: #{bottleneck_psp_forward.3} parent=0 // pred_fallthru
    _
  %v15 = vld [vmem:[%s0] sm:$0xf]
  %v16 = vld [vmem:[%s0 + $0x4] sm:$0xf]
  %v17 = vld [vmem:[%s0 + $0x8] sm:$0xf]
  %v18 = vld [vmem:[%s0 + $0xc] sm:$0xf]
  %v19 = vld [vmem:[%s0 + $0x10] sm:$0xf]
  %v20 = vld [vmem:[%s0 + $0x14] sm:$0xf]
  %v21 = vld [vmem:[%s0 + $0x18] sm:$0xf]
  %v22 = vld [vmem:[%s0 + $0x1c] sm:$0xf]
  %v23 = vld [vmem:[%s0 + $0x20] sm:$0xf]
  %v24 = vld [vmem:[%s0 + $0x24] sm:$0xf]
  %v25 = vld [vmem:[%s0 + $0x28] sm:$0xf]
  %v26 = vld [vmem:[%s0 + $0x2c] sm:$0xf]
  %v27 = vld [vmem:[%s0 + $0x30] sm:$0xf]
  %v28 = vld [vmem:[%s0 + $0x34] sm:$0xf]
  %v29 = vld [vmem:[%s0 + $0x38] sm:$0xf]
  %v30 = vld [vmem:[%s0 + $0x3c] sm:$0xf]
  %v31 = vld [vmem:[%s0 + $0x40] sm:$0xf]
  %v32 = vld [vmem:[%s0 + $0x44] sm:$0xf]
  %v33 = vld [vmem:[%s0 + $0x48] sm:$0xf]
  %v34 = vld [vmem:[%s0 + $0x4c] sm:$0xf]
  %v35 = vld [vmem:[%s0 + $0x50] sm:$0xf]
  %v36 = vld [vmem:[%s0 + $0x54] sm:$0xf]
  %v37 = vld [vmem:[%s0 + $0x58] sm:$0xf]
  %v38 = vld [vmem:[%s0 + $0x5c] sm:$0xf]
  %v39 = vld [vmem:[%s0 + $0x60] sm:$0xf]
  %v40 = vld [vmem:[%s0 + $0x64] sm:$0xf]
  %v41 = vld [vmem:[%s0 + $0x68] sm:$0xf]
  %v42 = vld [vmem:[%s0 + $0x6c] sm:$0xf]
  %v43 = vld [vmem:[%s0 + $0x70] sm:$0xf]
  %v44 = vld [vmem:[%s0 + $0x74] sm:$0xf]
  %v45 = vld [vmem:[%s0 + $0x78] sm:$0xf]
  %v46 = vld [vmem:[%s0 + $0x7c] sm:$0xf]
  %v47 = vld [vmem:[%s0 + $0x80] sm:$0xf]
  %v48 = vld [vmem:[%s0 + $0x84] sm:$0xf]
  %v49 = vld [vmem:[%s0 + $0x88] sm:$0xf]
  %v50 = vld [vmem:[%s0 + $0x8c] sm:$0xf]
  %v51 = vld [vmem:[%s0 + $0x90] sm:$0xf]
  %v52 = vld [vmem:[%s0 + $0x94] sm:$0xf]
  %v53 = vld [vmem:[%s0 + $0x98] sm:$0xf]
  %v54 = vld [vmem:[%s0 + $0x9c] sm:$0xf]
  %v55 = vld [vmem:[%s0 + $0xa0] sm:$0xf]
  %v56 = vld [vmem:[%s0 + $0xa4] sm:$0xf]
  %v57 = vld [vmem:[%s0 + $0xa8] sm:$0xf]
  %v58 = vld [vmem:[%s0 + $0xac] sm:$0xf]
  %v59 = vld [vmem:[%s0 + $0xb0] sm:$0xf]
  %v60 = vld [vmem:[%s0 + $0xb4] sm:$0xf]
  %v61 = vld [vmem:[%s0 + $0xb8] sm:$0xf]
  %v62 = vld [vmem:[%s0 + $0xbc] sm:$0xf]
  %v63 = vld [vmem:[%s0 + $0xc0] sm:$0xf]
  %v64 = vld [vmem:[%s0 + $0xc4] sm:$0xf]
  %v65 = vld [vmem:[%s0 + $0xc8] sm:$0xf]
  %v66 = vld [vmem:[%s0 + $0xcc] sm:$0xf]
  %v67 = vld [vmem:[%s0 + $0xd0] sm:$0xf]
  %v68 = vld [vmem:[%s0 + $0xd4] sm:$0xf]
  %v69 = vld [vmem:[%s0 + $0xd8] sm:$0xf]
  %v70 = vld [vmem:[%s0 + $0xdc] sm:$0xf]
  %v71 = vld [vmem:[%s0 + $0xe0] sm:$0xf]
  %v72 = vld [vmem:[%s0 + $0xe4] sm:$0xf]
  %v73 = vld [vmem:[%s0 + $0xe8] sm:$0xf]
  %v74 = vld [vmem:[%s0 + $0xec] sm:$0xf]
  %v75 = vld [vmem:[%s0 + $0xf0] sm:$0xf]
  %v76 = vld [vmem:[%s0 + $0xf4] sm:$0xf]
  %v77 = vld [vmem:[%s0 + $0xf8] sm:$0xf]
  %v78 = vld [vmem:[%s0 + $0xfc] sm:$0xf]
  %v79 = vld [vmem:[%s1] sm:$0x3]
  %v80 = vld [vmem:[%s2] sm:$0x1]
  %v82 = vlaneseq
  %v83 = vshrl.u32 %v82, 7
  %v84 = vsub.s32 0, %v83
  %v85 = vrot.slane %v80, %v84
  %v151 = vunpack.c.l.b16 %v15
  %v152 = vunpack.c.l.b16 %v16
  %v153 = vunpack.c.l.b16 %v17
  %v154 = vunpack.c.l.b16 %v18
  %v155 = vunpack.c.l.b16 %v19
  %v156 = vunpack.c.l.b16 %v20
  %v157 = vunpack.c.l.b16 %v21
  %v158 = vunpack.c.l.b16 %v22
  %v159 = vunpack.c.l.b16 %v23
  %v160 = vunpack.c.l.b16 %v24
  %v161 = vunpack.c.l.b16 %v25
  %v162 = vunpack.c.l.b16 %v26
  %v163 = vunpack.c.l.b16 %v27
  %v164 = vunpack.c.l.b16 %v28
  %v165 = vunpack.c.l.b16 %v29
  %v166 = vunpack.c.l.b16 %v30
  %v167 = vunpack.c.l.b16 %v31
  %v168 = vunpack.c.l.b16 %v32
  %v169 = vunpack.c.l.b16 %v33
  %v170 = vunpack.c.l.b16 %v34
  %v171 = vunpack.c.l.b16 %v35
  %v172 = vunpack.c.l.b16 %v36
  %v173 = vunpack.c.l.b16 %v37
  %v174 = vunpack.c.l.b16 %v38
  %v175 = vunpack.c.l.b16 %v39
  %v176 = vunpack.c.l.b16 %v40
  %v177 = vunpack.c.l.b16 %v41
  %v178 = vunpack.c.l.b16 %v42
  %v179 = vunpack.c.l.b16 %v43
  %v180 = vunpack.c.l.b16 %v44
  %v181 = vunpack.c.l.b16 %v45
  %v182 = vunpack.c.l.b16 %v46
  %v183 = vunpack.c.l.b16 %v47
  %v184 = vunpack.c.l.b16 %v48
  %v185 = vunpack.c.l.b16 %v49
  %v186 = vunpack.c.l.b16 %v50
  %v187 = vunpack.c.l.b16 %v51
  %v188 = vunpack.c.l.b16 %v52
  %v189 = vunpack.c.l.b16 %v53
  %v190 = vunpack.c.l.b16 %v54
  %v191 = vunpack.c.l.b16 %v55
  %v192 = vunpack.c.l.b16 %v56
  %v193 = vunpack.c.l.b16 %v57
  %v194 = vunpack.c.l.b16 %v58
  %v195 = vunpack.c.l.b16 %v59
  %v196 = vunpack.c.l.b16 %v60
  %v197 = vunpack.c.l.b16 %v61
  %v198 = vunpack.c.l.b16 %v62
  %v199 = vunpack.c.l.b16 %v63
  %v200 = vunpack.c.l.b16 %v64
  %v201 = vunpack.c.l.b16 %v65
  %v202 = vunpack.c.l.b16 %v66
  %v203 = vunpack.c.l.b16 %v67
  %v204 = vunpack.c.l.b16 %v68
  %v205 = vunpack.c.l.b16 %v69
  %v206 = vunpack.c.l.b16 %v70
  %v207 = vunpack.c.l.b16 %v71
  %v208 = vunpack.c.l.b16 %v72
  %v209 = vunpack.c.l.b16 %v73
  %v210 = vunpack.c.l.b16 %v74
  %v211 = vunpack.c.l.b16 %v75
  %v212 = vunpack.c.l.b16 %v76
  %v213 = vunpack.c.l.b16 %v77
  %v214 = vunpack.c.l.b16 %v78
  %v215 = vpack.c.b16 %v152, %v151
  %v216 = vpack.c.b16 %v154, %v153
  %v217 = vpack.c.b16 %v156, %v155
  %v218 = vpack.c.b16 %v158, %v157
  %v219 = vpack.c.b16 %v160, %v159
  %v220 = vpack.c.b16 %v162, %v161
  %v221 = vpack.c.b16 %v164, %v163
  %v222 = vpack.c.b16 %v166, %v165
  %v223 = vpack.c.b16 %v168, %v167
  %v224 = vpack.c.b16 %v170, %v169
  %v225 = vpack.c.b16 %v172, %v171
  %v226 = vpack.c.b16 %v174, %v173
  %v227 = vpack.c.b16 %v176, %v175
  %v228 = vpack.c.b16 %v178, %v177
  %v229 = vpack.c.b16 %v180, %v179
  %v230 = vpack.c.b16 %v182, %v181
  %v231 = vpack.c.b16 %v184, %v183
  %v232 = vpack.c.b16 %v186, %v185
  %v233 = vpack.c.b16 %v188, %v187
  %v234 = vpack.c.b16 %v190, %v189
  %v235 = vpack.c.b16 %v192, %v191
  %v236 = vpack.c.b16 %v194, %v193
  %v237 = vpack.c.b16 %v196, %v195
  %v238 = vpack.c.b16 %v198, %v197
  %v239 = vpack.c.b16 %v200, %v199
  %v240 = vpack.c.b16 %v202, %v201
  %v241 = vpack.c.b16 %v204, %v203
  %v242 = vpack.c.b16 %v206, %v205
  %v243 = vpack.c.b16 %v208, %v207
  %v244 = vpack.c.b16 %v210, %v209
  %v245 = vpack.c.b16 %v212, %v211
  %v246 = vpack.c.b16 %v214, %v213
  %vm247 = vcmask 31744
  %v249 = vsel %vm247, %v215, 0
  %v252 = vsel %vm247, %v216, 0
  %v255 = vsel %vm247, %v217, 0
  %v258 = vsel %vm247, %v218, 0
  %v261 = vsel %vm247, %v219, 0
  %v264 = vsel %vm247, %v220, 0
  %v267 = vsel %vm247, %v221, 0
  %v270 = vsel %vm247, %v222, 0
  %v273 = vsel %vm247, %v223, 0
  %v276 = vsel %vm247, %v224, 0
  %v279 = vsel %vm247, %v225, 0
  %v282 = vsel %vm247, %v226, 0
  %v285 = vsel %vm247, %v227, 0
  %v288 = vsel %vm247, %v228, 0
  %v291 = vsel %vm247, %v229, 0
  %v294 = vsel %vm247, %v230, 0
  %v297 = vsel %vm247, %v231, 0
  %v300 = vsel %vm247, %v232, 0
  %v303 = vsel %vm247, %v233, 0
  %v306 = vsel %vm247, %v234, 0
  %v309 = vsel %vm247, %v235, 0
  %v312 = vsel %vm247, %v236, 0
  %v315 = vsel %vm247, %v237, 0
  %v318 = vsel %vm247, %v238, 0
  %v321 = vsel %vm247, %v239, 0
  %v324 = vsel %vm247, %v240, 0
  %v327 = vsel %vm247, %v241, 0
  %v330 = vsel %vm247, %v242, 0
  %v333 = vsel %vm247, %v243, 0
  %v336 = vsel %vm247, %v244, 0
  %v339 = vsel %vm247, %v245, 0
  %v342 = vsel %vm247, %v246, 0
  %vm344 = vcmask 1041408
  %v346 = vsel %vm344, %v79, 0
  %348 = vmatprep.subr.bf16.mxu0 0
  %349 = vmatpush1.bf16.msra.mxu0 0
  %350 = vmatprep.subr.bf16.mxu0 0
  %351 = vmatpush1.bf16.msra.mxu0 0
  %352 = vmatprep.subr.bf16.mxu0 0
  %353 = vmatpush1.bf16.msra.mxu0 0
  %354 = vmatprep.subr.bf16.mxu0 0
  %355 = vmatpush1.bf16.msra.mxu0 0
  %356 = vmatprep.subr.bf16.mxu0 0
  %357 = vmatpush1.bf16.msra.mxu0 0
  %358 = vmatprep.subr.bf16.mxu0 0
  %359 = vmatpush1.bf16.msra.mxu0 0
  %360 = vmatprep.subr.bf16.mxu0 0
  %361 = vmatpush1.bf16.msra.mxu0 0
  %362 = vmatprep.subr.bf16.mxu0 0
  %363 = vmatpush1.bf16.msra.mxu0 %v346
  %364 = vmatprep.subr.bf16.mxu0 0
  %365 = vmatpush2.bf16.msra.mxu0 0
  %366 = vmatprep.subr.bf16.mxu0 0
  %367 = vmatpush2.bf16.msra.mxu0 0
  %368 = vmatprep.subr.bf16.mxu0 0
  %369 = vmatpush2.bf16.msra.mxu0 0
  %370 = vmatprep.subr.bf16.mxu0 0
  %371 = vmatpush2.bf16.msra.mxu0 0
  %372 = vmatprep.subr.bf16.mxu0 0
  %373 = vmatpush2.bf16.msra.mxu0 0
  %374 = vmatprep.subr.bf16.mxu0 0
  %375 = vmatpush2.bf16.msra.mxu0 0
  %376 = vmatprep.subr.bf16.mxu0 0
  %377 = vmatpush2.bf16.msra.mxu0 0
  %378 = vmatprep.subr.bf16.mxu0 0
  %379 = vmatpush2.bf16.msra.mxu0 0
  %380 = vmatprep.mubr.bf16.mxu0 0
  %381 = vmatmul.mubr.bf16.gmra.mxu0 %v249
  %v382 = vpop.f32.mrf.mxu0
  %v383 = vadd.f32 %v85, %v382
  %v384 = vpop.f32.mrf.mxu0
  %v385 = vpop.f32.mrf.mxu0
  %v386 = vadd.f32 %v85, %v385
  %v387 = vpop.f32.mrf.mxu0
  %388 = vmatprep.mubr.bf16.mxu0 0
  %389 = vmatmul.mubr.bf16.gmra.mxu0 %v252
  %v390 = vpop.f32.mrf.mxu0
  %v391 = vadd.f32 %v85, %v390
  %v392 = vpop.f32.mrf.mxu0
  %v393 = vpop.f32.mrf.mxu0
  %v394 = vadd.f32 %v85, %v393
  %v395 = vpop.f32.mrf.mxu0
  %396 = vmatprep.mubr.bf16.mxu0 0
  %397 = vmatmul.mubr.bf16.gmra.mxu0 %v255
  %v398 = vpop.f32.mrf.mxu0
  %v399 = vadd.f32 %v85, %v398
  %v400 = vpop.f32.mrf.mxu0
  %v401 = vpop.f32.mrf.mxu0
  %v402 = vadd.f32 %v85, %v401
  %v403 = vpop.f32.mrf.mxu0
  %404 = vmatprep.mubr.bf16.mxu0 0
  %405 = vmatmul.mubr.bf16.gmra.mxu0 %v258
  %v406 = vpop.f32.mrf.mxu0
  %v407 = vadd.f32 %v85, %v406
  %v408 = vpop.f32.mrf.mxu0
  %v409 = vpop.f32.mrf.mxu0
  %v410 = vadd.f32 %v85, %v409
  %v411 = vpop.f32.mrf.mxu0
  %412 = vmatprep.mubr.bf16.mxu0 0
  %413 = vmatmul.mubr.bf16.gmra.mxu0 %v261
  %v414 = vpop.f32.mrf.mxu0
  %v415 = vadd.f32 %v85, %v414
  %v416 = vpop.f32.mrf.mxu0
  %v417 = vpop.f32.mrf.mxu0
  %v418 = vadd.f32 %v85, %v417
  %v419 = vpop.f32.mrf.mxu0
  %420 = vmatprep.mubr.bf16.mxu0 0
  %421 = vmatmul.mubr.bf16.gmra.mxu0 %v264
  %v422 = vpop.f32.mrf.mxu0
  %v423 = vadd.f32 %v85, %v422
  %v424 = vpop.f32.mrf.mxu0
  %v425 = vpop.f32.mrf.mxu0
  %v426 = vadd.f32 %v85, %v425
  %v427 = vpop.f32.mrf.mxu0
  %428 = vmatprep.mubr.bf16.mxu0 0
  %429 = vmatmul.mubr.bf16.gmra.mxu0 %v267
  %v430 = vpop.f32.mrf.mxu0
  %v431 = vadd.f32 %v85, %v430
  %v432 = vpop.f32.mrf.mxu0
  %v433 = vpop.f32.mrf.mxu0
  %v434 = vadd.f32 %v85, %v433
  %v435 = vpop.f32.mrf.mxu0
  %436 = vmatprep.mubr.bf16.mxu0 0
  %437 = vmatmul.mubr.bf16.gmra.mxu0 %v270
  %v438 = vpop.f32.mrf.mxu0
  %v439 = vadd.f32 %v85, %v438
  %v440 = vpop.f32.mrf.mxu0
  %v441 = vpop.f32.mrf.mxu0
  %v442 = vadd.f32 %v85, %v441
  %v443 = vpop.f32.mrf.mxu0
  %444 = vmatprep.mubr.bf16.mxu0 0
  %445 = vmatmul.mubr.bf16.gmra.mxu0 %v273
  %v446 = vpop.f32.mrf.mxu0
  %v447 = vadd.f32 %v85, %v446
  %v448 = vpop.f32.mrf.mxu0
  %v449 = vpop.f32.mrf.mxu0
  %v450 = vadd.f32 %v85, %v449
  %v451 = vpop.f32.mrf.mxu0
  %452 = vmatprep.mubr.bf16.mxu0 0
  %453 = vmatmul.mubr.bf16.gmra.mxu0 %v276
  %v454 = vpop.f32.mrf.mxu0
  %v455 = vadd.f32 %v85, %v454
  %v456 = vpop.f32.mrf.mxu0
  %v457 = vpop.f32.mrf.mxu0
  %v458 = vadd.f32 %v85, %v457
  %v459 = vpop.f32.mrf.mxu0
  %460 = vmatprep.mubr.bf16.mxu0 0
  %461 = vmatmul.mubr.bf16.gmra.mxu0 %v279
  %v462 = vpop.f32.mrf.mxu0
  %v463 = vadd.f32 %v85, %v462
  %v464 = vpop.f32.mrf.mxu0
  %v465 = vpop.f32.mrf.mxu0
  %v466 = vadd.f32 %v85, %v465
  %v467 = vpop.f32.mrf.mxu0
  %468 = vmatprep.mubr.bf16.mxu0 0
  %469 = vmatmul.mubr.bf16.gmra.mxu0 %v282
  %v470 = vpop.f32.mrf.mxu0
  %v471 = vadd.f32 %v85, %v470
  %v472 = vpop.f32.mrf.mxu0
  %v473 = vpop.f32.mrf.mxu0
  %v474 = vadd.f32 %v85, %v473
  %v475 = vpop.f32.mrf.mxu0
  %476 = vmatprep.mubr.bf16.mxu0 0
  %477 = vmatmul.mubr.bf16.gmra.mxu0 %v285
  %v478 = vpop.f32.mrf.mxu0
  %v479 = vadd.f32 %v85, %v478
  %v480 = vpop.f32.mrf.mxu0
  %v481 = vpop.f32.mrf.mxu0
  %v482 = vadd.f32 %v85, %v481
  %v483 = vpop.f32.mrf.mxu0
  %484 = vmatprep.mubr.bf16.mxu0 0
  %485 = vmatmul.mubr.bf16.gmra.mxu0 %v288
  %v486 = vpop.f32.mrf.mxu0
  %v487 = vadd.f32 %v85, %v486
  %v488 = vpop.f32.mrf.mxu0
  %v489 = vpop.f32.mrf.mxu0
  %v490 = vadd.f32 %v85, %v489
  %v491 = vpop.f32.mrf.mxu0
  %492 = vmatprep.mubr.bf16.mxu0 0
  %493 = vmatmul.mubr.bf16.gmra.mxu0 %v291
  %v494 = vpop.f32.mrf.mxu0
  %v495 = vadd.f32 %v85, %v494
  %v496 = vpop.f32.mrf.mxu0
  %v497 = vpop.f32.mrf.mxu0
  %v498 = vadd.f32 %v85, %v497
  %v499 = vpop.f32.mrf.mxu0
  %500 = vmatprep.mubr.bf16.mxu0 0
  %501 = vmatmul.mubr.bf16.gmra.mxu0 %v294
  %v502 = vpop.f32.mrf.mxu0
  %v503 = vadd.f32 %v85, %v502
  %v504 = vpop.f32.mrf.mxu0
  %v505 = vpop.f32.mrf.mxu0
  %v506 = vadd.f32 %v85, %v505
  %v507 = vpop.f32.mrf.mxu0
  %508 = vmatprep.mubr.bf16.mxu0 0
  %509 = vmatmul.mubr.bf16.gmra.mxu0 %v297
  %v510 = vpop.f32.mrf.mxu0
  %v511 = vadd.f32 %v85, %v510
  %v512 = vpop.f32.mrf.mxu0
  %v513 = vpop.f32.mrf.mxu0
  %v514 = vadd.f32 %v85, %v513
  %v515 = vpop.f32.mrf.mxu0
  %516 = vmatprep.mubr.bf16.mxu0 0
  %517 = vmatmul.mubr.bf16.gmra.mxu0 %v300
  %v518 = vpop.f32.mrf.mxu0
  %v519 = vadd.f32 %v85, %v518
  %v520 = vpop.f32.mrf.mxu0
  %v521 = vpop.f32.mrf.mxu0
  %v522 = vadd.f32 %v85, %v521
  %v523 = vpop.f32.mrf.mxu0
  %524 = vmatprep.mubr.bf16.mxu0 0
  %525 = vmatmul.mubr.bf16.gmra.mxu0 %v303
  %v526 = vpop.f32.mrf.mxu0
  %v527 = vadd.f32 %v85, %v526
  %v528 = vpop.f32.mrf.mxu0
  %v529 = vpop.f32.mrf.mxu0
  %v530 = vadd.f32 %v85, %v529
  %v531 = vpop.f32.mrf.mxu0
  %532 = vmatprep.mubr.bf16.mxu0 0
  %533 = vmatmul.mubr.bf16.gmra.mxu0 %v306
  %v534 = vpop.f32.mrf.mxu0
  %v535 = vadd.f32 %v85, %v534
  %v536 = vpop.f32.mrf.mxu0
  %v537 = vpop.f32.mrf.mxu0
  %v538 = vadd.f32 %v85, %v537
  %v539 = vpop.f32.mrf.mxu0
  %540 = vmatprep.mubr.bf16.mxu0 0
  %541 = vmatmul.mubr.bf16.gmra.mxu0 %v309
  %v542 = vpop.f32.mrf.mxu0
  %v543 = vadd.f32 %v85, %v542
  %v544 = vpop.f32.mrf.mxu0
  %v545 = vpop.f32.mrf.mxu0
  %v546 = vadd.f32 %v85, %v545
  %v547 = vpop.f32.mrf.mxu0
  %548 = vmatprep.mubr.bf16.mxu0 0
  %549 = vmatmul.mubr.bf16.gmra.mxu0 %v312
  %v550 = vpop.f32.mrf.mxu0
  %v551 = vadd.f32 %v85, %v550
  %v552 = vpop.f32.mrf.mxu0
  %v553 = vpop.f32.mrf.mxu0
  %v554 = vadd.f32 %v85, %v553
  %v555 = vpop.f32.mrf.mxu0
  %556 = vmatprep.mubr.bf16.mxu0 0
  %557 = vmatmul.mubr.bf16.gmra.mxu0 %v315
  %v558 = vpop.f32.mrf.mxu0
  %v559 = vadd.f32 %v85, %v558
  %v560 = vpop.f32.mrf.mxu0
  %v561 = vpop.f32.mrf.mxu0
  %v562 = vadd.f32 %v85, %v561
  %v563 = vpop.f32.mrf.mxu0
  %564 = vmatprep.mubr.bf16.mxu0 0
  %565 = vmatmul.mubr.bf16.gmra.mxu0 %v318
  %v566 = vpop.f32.mrf.mxu0
  %v567 = vadd.f32 %v85, %v566
  %v568 = vpop.f32.mrf.mxu0
  %v569 = vpop.f32.mrf.mxu0
  %v570 = vadd.f32 %v85, %v569
  %v571 = vpop.f32.mrf.mxu0
  %572 = vmatprep.mubr.bf16.mxu0 0
  %573 = vmatmul.mubr.bf16.gmra.mxu0 %v321
  %v574 = vpop.f32.mrf.mxu0
  %v575 = vadd.f32 %v85, %v574
  %v576 = vpop.f32.mrf.mxu0
  %v577 = vpop.f32.mrf.mxu0
  %v578 = vadd.f32 %v85, %v577
  %v579 = vpop.f32.mrf.mxu0
  %580 = vmatprep.mubr.bf16.mxu0 0
  %581 = vmatmul.mubr.bf16.gmra.mxu0 %v324
  %v582 = vpop.f32.mrf.mxu0
  %v583 = vadd.f32 %v85, %v582
  %v584 = vpop.f32.mrf.mxu0
  %v585 = vpop.f32.mrf.mxu0
  %v586 = vadd.f32 %v85, %v585
  %v587 = vpop.f32.mrf.mxu0
  %588 = vmatprep.mubr.bf16.mxu0 0
  %589 = vmatmul.mubr.bf16.gmra.mxu0 %v327
  %v590 = vpop.f32.mrf.mxu0
  %v591 = vadd.f32 %v85, %v590
  %v592 = vpop.f32.mrf.mxu0
  %v593 = vpop.f32.mrf.mxu0
  %v594 = vadd.f32 %v85, %v593
  %v595 = vpop.f32.mrf.mxu0
  %596 = vmatprep.mubr.bf16.mxu0 0
  %597 = vmatmul.mubr.bf16.gmra.mxu0 %v330
  %v598 = vpop.f32.mrf.mxu0
  %v599 = vadd.f32 %v85, %v598
  %v600 = vpop.f32.mrf.mxu0
  %v601 = vpop.f32.mrf.mxu0
  %v602 = vadd.f32 %v85, %v601
  %v603 = vpop.f32.mrf.mxu0
  %604 = vmatprep.mubr.bf16.mxu0 0
  %605 = vmatmul.mubr.bf16.gmra.mxu0 %v333
  %v606 = vpop.f32.mrf.mxu0
  %v607 = vadd.f32 %v85, %v606
  %v608 = vpop.f32.mrf.mxu0
  %v609 = vpop.f32.mrf.mxu0
  %v610 = vadd.f32 %v85, %v609
  %v611 = vpop.f32.mrf.mxu0
  %612 = vmatprep.mubr.bf16.mxu0 0
  %613 = vmatmul.mubr.bf16.gmra.mxu0 %v336
  %v614 = vpop.f32.mrf.mxu0
  %v615 = vadd.f32 %v85, %v614
  %v616 = vpop.f32.mrf.mxu0
  %v617 = vpop.f32.mrf.mxu0
  %v618 = vadd.f32 %v85, %v617
  %v619 = vpop.f32.mrf.mxu0
  %620 = vmatprep.mubr.bf16.mxu0 0
  %621 = vmatmul.mubr.bf16.gmra.mxu0 %v339
  %v622 = vpop.f32.mrf.mxu0
  %v623 = vadd.f32 %v85, %v622
  %v624 = vpop.f32.mrf.mxu0
  %v625 = vpop.f32.mrf.mxu0
  %v626 = vadd.f32 %v85, %v625
  %v627 = vpop.f32.mrf.mxu0
  %628 = vmatprep.mubr.bf16.mxu0 0
  %629 = vmatmul.mubr.bf16.gmra.mxu0 %v342
  %v630 = vpop.f32.mrf.mxu0
  %v631 = vadd.f32 %v85, %v630
  %v632 = vpop.f32.mrf.mxu0
  %v633 = vpop.f32.mrf.mxu0
  %v634 = vadd.f32 %v85, %v633
  %v635 = vpop.f32.mrf.mxu0
  %636 = vdwg.mxu0
  %v637 = vmax.f32 %v383, 0.0
  %v638 = vmax.f32 %v386, 0.0
  %v639 = vmax.f32 %v391, 0.0
  %v640 = vmax.f32 %v394, 0.0
  %v641 = vmax.f32 %v399, 0.0
  %v642 = vmax.f32 %v402, 0.0
  %v643 = vmax.f32 %v407, 0.0
  %v644 = vmax.f32 %v410, 0.0
  %v645 = vmax.f32 %v415, 0.0
  %v646 = vmax.f32 %v418, 0.0
  %v647 = vmax.f32 %v423, 0.0
  %v648 = vmax.f32 %v426, 0.0
  %v649 = vmax.f32 %v431, 0.0
  %v650 = vmax.f32 %v434, 0.0
  %v651 = vmax.f32 %v439, 0.0
  %v652 = vmax.f32 %v442, 0.0
  %v653 = vmax.f32 %v447, 0.0
  %v654 = vmax.f32 %v450, 0.0
  %v655 = vmax.f32 %v455, 0.0
  %v656 = vmax.f32 %v458, 0.0
  %v657 = vmax.f32 %v463, 0.0
  %v658 = vmax.f32 %v466, 0.0
  %v659 = vmax.f32 %v471, 0.0
  %v660 = vmax.f32 %v474, 0.0
  %v661 = vmax.f32 %v479, 0.0
  %v662 = vmax.f32 %v482, 0.0
  %v663 = vmax.f32 %v487, 0.0
  %v664 = vmax.f32 %v490, 0.0
  %v665 = vmax.f32 %v495, 0.0
  %v666 = vmax.f32 %v498, 0.0
  %v667 = vmax.f32 %v503, 0.0
  %v668 = vmax.f32 %v506, 0.0
  %v669 = vmax.f32 %v511, 0.0
  %v670 = vmax.f32 %v514, 0.0
  %v671 = vmax.f32 %v519, 0.0
  %v672 = vmax.f32 %v522, 0.0
  %v673 = vmax.f32 %v527, 0.0
  %v674 = vmax.f32 %v530, 0.0
  %v675 = vmax.f32 %v535, 0.0
  %v676 = vmax.f32 %v538, 0.0
  %v677 = vmax.f32 %v543, 0.0
  %v678 = vmax.f32 %v546, 0.0
  %v679 = vmax.f32 %v551, 0.0
  %v680 = vmax.f32 %v554, 0.0
  %v681 = vmax.f32 %v559, 0.0
  %v682 = vmax.f32 %v562, 0.0
  %v683 = vmax.f32 %v567, 0.0
  %v684 = vmax.f32 %v570, 0.0
  %v685 = vmax.f32 %v575, 0.0
  %v686 = vmax.f32 %v578, 0.0
  %v687 = vmax.f32 %v583, 0.0
  %v688 = vmax.f32 %v586, 0.0
  %v689 = vmax.f32 %v591, 0.0
  %v690 = vmax.f32 %v594, 0.0
  %v691 = vmax.f32 %v599, 0.0
  %v692 = vmax.f32 %v602, 0.0
  %v693 = vmax.f32 %v607, 0.0
  %v694 = vmax.f32 %v610, 0.0
  %v695 = vmax.f32 %v615, 0.0
  %v696 = vmax.f32 %v618, 0.0
  %v697 = vmax.f32 %v623, 0.0
  %v698 = vmax.f32 %v626, 0.0
  %v699 = vmax.f32 %v631, 0.0
  %v700 = vmax.f32 %v634, 0.0
  %v701 = vpack.c.bf16 %v638, %v637
  %v702 = vpack.c.bf16 %v640, %v639
  %v703 = vpack.c.bf16 %v642, %v641
  %v704 = vpack.c.bf16 %v644, %v643
  %v705 = vpack.c.bf16 %v646, %v645
  %v706 = vpack.c.bf16 %v648, %v647
  %v707 = vpack.c.bf16 %v650, %v649
  %v708 = vpack.c.bf16 %v652, %v651
  %v709 = vpack.c.bf16 %v654, %v653
  %v710 = vpack.c.bf16 %v656, %v655
  %v711 = vpack.c.bf16 %v658, %v657
  %v712 = vpack.c.bf16 %v660, %v659
  %v713 = vpack.c.bf16 %v662, %v661
  %v714 = vpack.c.bf16 %v664, %v663
  %v715 = vpack.c.bf16 %v666, %v665
  %v716 = vpack.c.bf16 %v668, %v667
  %v717 = vpack.c.bf16 %v670, %v669
  %v718 = vpack.c.bf16 %v672, %v671
  %v719 = vpack.c.bf16 %v674, %v673
  %v720 = vpack.c.bf16 %v676, %v675
  %v721 = vpack.c.bf16 %v678, %v677
  %v722 = vpack.c.bf16 %v680, %v679
  %v723 = vpack.c.bf16 %v682, %v681
  %v724 = vpack.c.bf16 %v684, %v683
  %v725 = vpack.c.bf16 %v686, %v685
  %v726 = vpack.c.bf16 %v688, %v687
  %v727 = vpack.c.bf16 %v690, %v689
  %v728 = vpack.c.bf16 %v692, %v691
  %v729 = vpack.c.bf16 %v694, %v693
  %v730 = vpack.c.bf16 %v696, %v695
  %v731 = vpack.c.bf16 %v698, %v697
  %v732 = vpack.c.bf16 %v700, %v699
  %v765 = vunpack.c.l.b16 %v701
  %v766 = vunpack.c.h.b16 %v701
  %v767 = vunpack.c.l.b16 %v702
  %v768 = vunpack.c.h.b16 %v702
  %v769 = vunpack.c.l.b16 %v703
  %v770 = vunpack.c.h.b16 %v703
  %v771 = vunpack.c.l.b16 %v704
  %v772 = vunpack.c.h.b16 %v704
  %v773 = vunpack.c.l.b16 %v705
  %v774 = vunpack.c.h.b16 %v705
  %v775 = vunpack.c.l.b16 %v706
  %v776 = vunpack.c.h.b16 %v706
  %v777 = vunpack.c.l.b16 %v707
  %v778 = vunpack.c.h.b16 %v707
  %v779 = vunpack.c.l.b16 %v708
  %v780 = vunpack.c.h.b16 %v708
  %v781 = vunpack.c.l.b16 %v709
  %v782 = vunpack.c.h.b16 %v709
  %v783 = vunpack.c.l.b16 %v710
  %v784 = vunpack.c.h.b16 %v710
  %v785 = vunpack.c.l.b16 %v711
  %v786 = vunpack.c.h.b16 %v711
  %v787 = vunpack.c.l.b16 %v712
  %v788 = vunpack.c.h.b16 %v712
  %v789 = vunpack.c.l.b16 %v713
  %v790 = vunpack.c.h.b16 %v713
  %v791 = vunpack.c.l.b16 %v714
  %v792 = vunpack.c.h.b16 %v714
  %v793 = vunpack.c.l.b16 %v715
  %v794 = vunpack.c.h.b16 %v715
  %v795 = vunpack.c.l.b16 %v716
  %v796 = vunpack.c.h.b16 %v716
  %v797 = vunpack.c.l.b16 %v717
  %v798 = vunpack.c.h.b16 %v717
  %v799 = vunpack.c.l.b16 %v718
  %v800 = vunpack.c.h.b16 %v718
  %v801 = vunpack.c.l.b16 %v719
  %v802 = vunpack.c.h.b16 %v719
  %v803 = vunpack.c.l.b16 %v720
  %v804 = vunpack.c.h.b16 %v720
  %v805 = vunpack.c.l.b16 %v721
  %v806 = vunpack.c.h.b16 %v721
  %v807 = vunpack.c.l.b16 %v722
  %v808 = vunpack.c.h.b16 %v722
  %v809 = vunpack.c.l.b16 %v723
  %v810 = vunpack.c.h.b16 %v723
  %v811 = vunpack.c.l.b16 %v724
  %v812 = vunpack.c.h.b16 %v724
  %v813 = vunpack.c.l.b16 %v725
  %v814 = vunpack.c.h.b16 %v725
  %v815 = vunpack.c.l.b16 %v726
  %v816 = vunpack.c.h.b16 %v726
  %v817 = vunpack.c.l.b16 %v727
  %v818 = vunpack.c.h.b16 %v727
  %v819 = vunpack.c.l.b16 %v728
  %v820 = vunpack.c.h.b16 %v728
  %v821 = vunpack.c.l.b16 %v729
  %v822 = vunpack.c.h.b16 %v729
  %v823 = vunpack.c.l.b16 %v730
  %v824 = vunpack.c.h.b16 %v730
  %v825 = vunpack.c.l.b16 %v731
  %v826 = vunpack.c.h.b16 %v731
  %v827 = vunpack.c.l.b16 %v732
  %v828 = vunpack.c.h.b16 %v732
  %v829 = vpack.c.b16 %v765, %v765
  %v830 = vpack.c.b16 %v766, %v766
  %v831 = vpack.c.b16 %v767, %v767
  %v832 = vpack.c.b16 %v768, %v768
  %v833 = vpack.c.b16 %v769, %v769
  %v834 = vpack.c.b16 %v770, %v770
  %v835 = vpack.c.b16 %v771, %v771
  %v836 = vpack.c.b16 %v772, %v772
  %v837 = vpack.c.b16 %v773, %v773
  %v838 = vpack.c.b16 %v774, %v774
  %v839 = vpack.c.b16 %v775, %v775
  %v840 = vpack.c.b16 %v776, %v776
  %v841 = vpack.c.b16 %v777, %v777
  %v842 = vpack.c.b16 %v778, %v778
  %v843 = vpack.c.b16 %v779, %v779
  %v844 = vpack.c.b16 %v780, %v780
  %v845 = vpack.c.b16 %v781, %v781
  %v846 = vpack.c.b16 %v782, %v782
  %v847 = vpack.c.b16 %v783, %v783
  %v848 = vpack.c.b16 %v784, %v784
  %v849 = vpack.c.b16 %v785, %v785
  %v850 = vpack.c.b16 %v786, %v786
  %v851 = vpack.c.b16 %v787, %v787
  %v852 = vpack.c.b16 %v788, %v788
  %v853 = vpack.c.b16 %v789, %v789
  %v854 = vpack.c.b16 %v790, %v790
  %v855 = vpack.c.b16 %v791, %v791
  %v856 = vpack.c.b16 %v792, %v792
  %v857 = vpack.c.b16 %v793, %v793
  %v858 = vpack.c.b16 %v794, %v794
  %v859 = vpack.c.b16 %v795, %v795
  %v860 = vpack.c.b16 %v796, %v796
  %v861 = vpack.c.b16 %v797, %v797
  %v862 = vpack.c.b16 %v798, %v798
  %v863 = vpack.c.b16 %v799, %v799
  %v864 = vpack.c.b16 %v800, %v800
  %v865 = vpack.c.b16 %v801, %v801
  %v866 = vpack.c.b16 %v802, %v802
  %v867 = vpack.c.b16 %v803, %v803
  %v868 = vpack.c.b16 %v804, %v804
  %v869 = vpack.c.b16 %v805, %v805
  %v870 = vpack.c.b16 %v806, %v806
  %v871 = vpack.c.b16 %v807, %v807
  %v872 = vpack.c.b16 %v808, %v808
  %v873 = vpack.c.b16 %v809, %v809
  %v874 = vpack.c.b16 %v810, %v810
  %v875 = vpack.c.b16 %v811, %v811
  %v876 = vpack.c.b16 %v812, %v812
  %v877 = vpack.c.b16 %v813, %v813
  %v878 = vpack.c.b16 %v814, %v814
  %v879 = vpack.c.b16 %v815, %v815
  %v880 = vpack.c.b16 %v816, %v816
  %v881 = vpack.c.b16 %v817, %v817
  %v882 = vpack.c.b16 %v818, %v818
  %v883 = vpack.c.b16 %v819, %v819
  %v884 = vpack.c.b16 %v820, %v820
  %v885 = vpack.c.b16 %v821, %v821
  %v886 = vpack.c.b16 %v822, %v822
  %v887 = vpack.c.b16 %v823, %v823
  %v888 = vpack.c.b16 %v824, %v824
  %v889 = vpack.c.b16 %v825, %v825
  %v890 = vpack.c.b16 %v826, %v826
  %v891 = vpack.c.b16 %v827, %v827
  %v892 = vpack.c.b16 %v828, %v828
  %vm957 = vcmask 27648
  %958 = vst.msk [vmem:[%s3] sm:$0xf] %vm957, %v829
  %959 = vst.msk [vmem:[%s3 + $0x4] sm:$0xf] %vm957, %v830
  %960 = vst.msk [vmem:[%s3 + $0x8] sm:$0xf] %vm957, %v831
  %961 = vst.msk [vmem:[%s3 + $0xc] sm:$0xf] %vm957, %v832
  %962 = vst.msk [vmem:[%s3 + $0x10] sm:$0xf] %vm957, %v833
  %963 = vst.msk [vmem:[%s3 + $0x14] sm:$0xf] %vm957, %v834
  %964 = vst.msk [vmem:[%s3 + $0x18] sm:$0xf] %vm957, %v835
  %965 = vst.msk [vmem:[%s3 + $0x1c] sm:$0xf] %vm957, %v836
  %966 = vst.msk [vmem:[%s3 + $0x20] sm:$0xf] %vm957, %v837
  %967 = vst.msk [vmem:[%s3 + $0x24] sm:$0xf] %vm957, %v838
  %968 = vst.msk [vmem:[%s3 + $0x28] sm:$0xf] %vm957, %v839
  %969 = vst.msk [vmem:[%s3 + $0x2c] sm:$0xf] %vm957, %v840
  %970 = vst.msk [vmem:[%s3 + $0x30] sm:$0xf] %vm957, %v841
  %971 = vst.msk [vmem:[%s3 + $0x34] sm:$0xf] %vm957, %v842
  %972 = vst.msk [vmem:[%s3 + $0x38] sm:$0xf] %vm957, %v843
  %973 = vst.msk [vmem:[%s3 + $0x3c] sm:$0xf] %vm957, %v844
  %974 = vst.msk [vmem:[%s3 + $0x40] sm:$0xf] %vm957, %v845
  %975 = vst.msk [vmem:[%s3 + $0x44] sm:$0xf] %vm957, %v846
  %976 = vst.msk [vmem:[%s3 + $0x48] sm:$0xf] %vm957, %v847
  %977 = vst.msk [vmem:[%s3 + $0x4c] sm:$0xf] %vm957, %v848
  %978 = vst.msk [vmem:[%s3 + $0x50] sm:$0xf] %vm957, %v849
  %979 = vst.msk [vmem:[%s3 + $0x54] sm:$0xf] %vm957, %v850
  %980 = vst.msk [vmem:[%s3 + $0x58] sm:$0xf] %vm957, %v851
  %981 = vst.msk [vmem:[%s3 + $0x5c] sm:$0xf] %vm957, %v852
  %982 = vst.msk [vmem:[%s3 + $0x60] sm:$0xf] %vm957, %v853
  %983 = vst.msk [vmem:[%s3 + $0x64] sm:$0xf] %vm957, %v854
  %984 = vst.msk [vmem:[%s3 + $0x68] sm:$0xf] %vm957, %v855
  %985 = vst.msk [vmem:[%s3 + $0x6c] sm:$0xf] %vm957, %v856
  %986 = vst.msk [vmem:[%s3 + $0x70] sm:$0xf] %vm957, %v857
  %987 = vst.msk [vmem:[%s3 + $0x74] sm:$0xf] %vm957, %v858
  %988 = vst.msk [vmem:[%s3 + $0x78] sm:$0xf] %vm957, %v859
  %989 = vst.msk [vmem:[%s3 + $0x7c] sm:$0xf] %vm957, %v860
  %990 = vst.msk [vmem:[%s3 + $0x80] sm:$0xf] %vm957, %v861
  %991 = vst.msk [vmem:[%s3 + $0x84] sm:$0xf] %vm957, %v862
  %992 = vst.msk [vmem:[%s3 + $0x88] sm:$0xf] %vm957, %v863
  %993 = vst.msk [vmem:[%s3 + $0x8c] sm:$0xf] %vm957, %v864
  %994 = vst.msk [vmem:[%s3 + $0x90] sm:$0xf] %vm957, %v865
  %995 = vst.msk [vmem:[%s3 + $0x94] sm:$0xf] %vm957, %v866
  %996 = vst.msk [vmem:[%s3 + $0x98] sm:$0xf] %vm957, %v867
  %997 = vst.msk [vmem:[%s3 + $0x9c] sm:$0xf] %vm957, %v868
  %998 = vst.msk [vmem:[%s3 + $0xa0] sm:$0xf] %vm957, %v869
  %999 = vst.msk [vmem:[%s3 + $0xa4] sm:$0xf] %vm957, %v870
  %1000 = vst.msk [vmem:[%s3 + $0xa8] sm:$0xf] %vm957, %v871
  %1001 = vst.msk [vmem:[%s3 + $0xac] sm:$0xf] %vm957, %v872
  %1002 = vst.msk [vmem:[%s3 + $0xb0] sm:$0xf] %vm957, %v873
  %1003 = vst.msk [vmem:[%s3 + $0xb4] sm:$0xf] %vm957, %v874
  %1004 = vst.msk [vmem:[%s3 + $0xb8] sm:$0xf] %vm957, %v875
  %1005 = vst.msk [vmem:[%s3 + $0xbc] sm:$0xf] %vm957, %v876
  %1006 = vst.msk [vmem:[%s3 + $0xc0] sm:$0xf] %vm957, %v877
  %1007 = vst.msk [vmem:[%s3 + $0xc4] sm:$0xf] %vm957, %v878
  %1008 = vst.msk [vmem:[%s3 + $0xc8] sm:$0xf] %vm957, %v879
  %1009 = vst.msk [vmem:[%s3 + $0xcc] sm:$0xf] %vm957, %v880
  %1010 = vst.msk [vmem:[%s3 + $0xd0] sm:$0xf] %vm957, %v881
  %1011 = vst.msk [vmem:[%s3 + $0xd4] sm:$0xf] %vm957, %v882
  %1012 = vst.msk [vmem:[%s3 + $0xd8] sm:$0xf] %vm957, %v883
  %1013 = vst.msk [vmem:[%s3 + $0xdc] sm:$0xf] %vm957, %v884
  %1014 = vst.msk [vmem:[%s3 + $0xe0] sm:$0xf] %vm957, %v885
  %1015 = vst.msk [vmem:[%s3 + $0xe4] sm:$0xf] %vm957, %v886
  %1016 = vst.msk [vmem:[%s3 + $0xe8] sm:$0xf] %vm957, %v887
  %1017 = vst.msk [vmem:[%s3 + $0xec] sm:$0xf] %vm957, %v888
  %1018 = vst.msk [vmem:[%s3 + $0xf0] sm:$0xf] %vm957, %v889
  %1019 = vst.msk [vmem:[%s3 + $0xf4] sm:$0xf] %vm957, %v890
  %1020 = vst.msk [vmem:[%s3 + $0xf8] sm:$0xf] %vm957, %v891
  %1021 = vst.msk [vmem:[%s3 + $0xfc] sm:$0xf] %vm957, %v892
  // Predicated region
  $region14: #{bottleneck_psp_forward.3} parent=0 // pred_check
    _
  $region15: #{bottleneck_psp_forward.3} parent=0 // pred_check_branch
    %1023 = sbr.rel (0) target = $region17
  $region16: #{bottleneck_psp_forward.3} parent=0 // pred_region
    _
  $region17: #{bottleneck_psp_forward.3} parent=0 // pred_fallthru
    _
  // Predicated region
  $region18: #{bottleneck_psp_forward.3} parent=0 // pred_check
    _
  $region19: #{bottleneck_psp_forward.3} parent=0 // pred_check_branch
    %1025 = sbr.rel (0) target = $region21
  $region20: #{bottleneck_psp_forward.3} parent=0 // pred_region
    _
  $region21: #{bottleneck_psp_forward.3} parent=0 // pred_fallthru
    _

// kernel: bottleneck_psp_forward.4
$region0: #{bottleneck_psp_forward.4}
  #allocation0 [shape = 'u32[]', space=smem, size = 0x4, offset = 0x4, fixed_abs, tag = 'smem constant byte address 0x4 - core index']
  #allocation1 [shape = 'u32[144,128]{1,0:T(1,128)}', space=vmem, size = 0x12000, scoped, tag = 'internal scratch']
  %s0 = inlined_call_operand.vmem [shape: bf16[2,4,10,10,4], index: 0, kind: input, shape index: {}]
  %s1 = inlined_call_operand.vmem [shape: bf16[9,4,4], index: 1, kind: input, shape index: {}]
  %s2 = inlined_call_operand.vmem [shape: f32[1,4], index: 2, kind: input, shape index: {}]
  %s3 = inlined_call_operand.vmem [shape: bf16[128,4], index: 3, kind: output, shape index: {}]
  %s4 = sld [smem:[#allocation0]]
  $region45: #{bottleneck_psp_forward.4} parent=0
    _
  %s6 = ssub.s32 1, %s4
  %s7 = scalar_select 0, %s6, %s4
  loop: start=0, step=1, limit=4
  $region2: #{bottleneck_psp_forward.4} parent=0 // loop_pre_header
    _
  $region3: #{bottleneck_psp_forward.4} parent=0 // loop_header
    %s9 = sphi 0, %s13
    %p10 = scmp.ge.s32.totalorder %s9, 4
    %s16 = sphi 0, %s28
    %s17 = sphi 0, %s24
    %s18 = sphi 0, %s16
    %s19 = sphi 0, %s17
    %s20 = sphi 0, %s18
    %s21 = sphi 0, %s19
    %s31 = sphi 0, %s33
    %s34 = sphi 0, %s31
    %s35 = sphi 0, %s34
    %s51 = sphi 0, %s35
    %s55 = sphi 0, %s55
    %s57 = sphi 0, %s55
    %s58 = sphi 0, %s57
    %s72 = sphi 0, %s58
    %s76 = sphi 0, %s76
    %s78 = sphi 0, %s76
    %s79 = sphi 0, %s78
    %s93 = sphi 0, %s79
    %s101 = sphi 0, %s103
    %s104 = sphi 0, %s101
    %s105 = sphi 0, %s104
    %s121 = sphi 0, %s105
  $region4: #{bottleneck_psp_forward.4} parent=0 // loop_header_branch
    %12 = sbr.rel (%p10) target = $region8
  $region5: #{bottleneck_psp_forward.4} parent=0 // loop_body
    %s14 = ssub.s32 %s9, 1
    %s15 = ssub.s32 %s9, 2
    %s22 = sadd.s32 1, %s17
    %p23 = scmp.ge.s32.totalorder %s22, 1
    %s24 = scalar_select %p23, 0, %s22
    %s25 = sadd.s32 1, %s16
    %s26 = scalar_select %p23, %s25, %s16
    %p27 = scmp.ge.s32.totalorder %s26, 2
    %s28 = scalar_select %p27, 0, %s26
    %s29 = ssub.s32 %s16, %s28
    %p30 = scmp.eq.s32.totalorder %s29, 0
    %s32 = sadd.s32 %s31, 1
    %s33 = scalar_select %p30, %s31, %s32
    %p36 = pneg %p30
    %p37 = scmp.eq.s32.totalorder %s9, 1
    %p38 = por %p36, %p37
    %p39 = scmp.ne.s32.totalorder %s31, %s34
    %p40 = scmp.eq.s32.totalorder %s9, 0
    %p41 = por %p39, %p40
    %p42 = scmp.ne.s32.totalorder %s31, %s34
    %p43 = scmp.eq.s32.totalorder %s14, 1
    %p44 = por %p42, %p43
    %p45 = scmp.ne.s32.totalorder %s34, %s35
    %p46 = scmp.eq.s32.totalorder %s14, 0
    %p47 = por %p45, %p46
    %p48 = scmp.ne.s32.totalorder %s34, %s35
    %p49 = scmp.eq.s32.totalorder %s15, 1
    %p50 = por %p48, %p49
    %p52 = scmp.ne.s32.totalorder %s35, %s51
    %p53 = scmp.eq.s32.totalorder %s15, 0
    %p54 = por %p52, %p53
    %s56 = sadd.s32 %s55, 1
    %p59 = scmp.eq.s32.totalorder %s9, 1
    %p60 = scmp.ne.s32.totalorder %s55, %s57
    %p61 = scmp.eq.s32.totalorder %s9, 0
    %p62 = por %p60, %p61
    %p63 = scmp.ne.s32.totalorder %s55, %s57
    %p64 = scmp.eq.s32.totalorder %s14, 1
    %p65 = por %p63, %p64
    %p66 = scmp.ne.s32.totalorder %s57, %s58
    %p67 = scmp.eq.s32.totalorder %s14, 0
    %p68 = por %p66, %p67
    %p69 = scmp.ne.s32.totalorder %s57, %s58
    %p70 = scmp.eq.s32.totalorder %s15, 1
    %p71 = por %p69, %p70
    %p73 = scmp.ne.s32.totalorder %s58, %s72
    %p74 = scmp.eq.s32.totalorder %s15, 0
    %p75 = por %p73, %p74
    %s77 = sadd.s32 %s76, 1
    %p80 = scmp.eq.s32.totalorder %s9, 1
    %p81 = scmp.ne.s32.totalorder %s76, %s78
    %p82 = scmp.eq.s32.totalorder %s9, 0
    %p83 = por %p81, %p82
    %p84 = scmp.ne.s32.totalorder %s76, %s78
    %p85 = scmp.eq.s32.totalorder %s14, 1
    %p86 = por %p84, %p85
    %p87 = scmp.ne.s32.totalorder %s78, %s79
    %p88 = scmp.eq.s32.totalorder %s14, 0
    %p89 = por %p87, %p88
    %p90 = scmp.ne.s32.totalorder %s78, %s79
    %p91 = scmp.eq.s32.totalorder %s15, 1
    %p92 = por %p90, %p91
    %p94 = scmp.ne.s32.totalorder %s79, %s93
    %p95 = scmp.eq.s32.totalorder %s15, 0
    %p96 = por %p94, %p95
    %s97 = sadd.s32 %s16, %s17
    %s98 = sadd.s32 %s28, %s24
    %s99 = ssub.s32 %s97, %s98
    %p100 = scmp.eq.s32.totalorder %s99, 0
    %s102 = sadd.s32 %s101, 1
    %s103 = scalar_select %p100, %s101, %s102
    %p106 = pneg %p100
    %p107 = scmp.eq.s32.totalorder %s9, 1
    %p108 = por %p106, %p107
    %p109 = scmp.ne.s32.totalorder %s101, %s104
    %p110 = scmp.eq.s32.totalorder %s9, 0
    %p111 = por %p109, %p110
    %p112 = scmp.ne.s32.totalorder %s101, %s104
    %p113 = scmp.eq.s32.totalorder %s14, 1
    %p114 = por %p112, %p113
    %p115 = scmp.ne.s32.totalorder %s104, %s105
    %p116 = scmp.eq.s32.totalorder %s14, 0
    %p117 = por %p115, %p116
    %p118 = scmp.ne.s32.totalorder %s104, %s105
    %p119 = scmp.eq.s32.totalorder %s15, 1
    %p120 = por %p118, %p119
    %p122 = scmp.ne.s32.totalorder %s105, %s121
    %p123 = scmp.eq.s32.totalorder %s15, 0
    %p124 = por %p122, %p123
    %p125 = scmp.le.s32.totalorder 1, %s9
    %p126 = scmp.lt.s32.totalorder %s9, 3
    %p127 = pnand %p125, %p126
    %p128 = pneg %p127
    // Predicated region
    $region9: #{bottleneck_psp_forward.4} parent=5 // pred_check
      _
    $region10: #{bottleneck_psp_forward.4} parent=5 // pred_check_branch
      %130 = sbr.rel (%p127) target = $region12
    $region11: #{bottleneck_psp_forward.4} parent=5 // pred_region
      %s131 = ssub.s32 %s9, 1
      // Predicated region
      $region13: #{bottleneck_psp_forward.4} parent=11 // pred_check
        %p132 = pneg %p68
      $region14: #{bottleneck_psp_forward.4} parent=11 // pred_check_branch
        %134 = sbr.rel (%p132) target = $region16
      $region15: #{bottleneck_psp_forward.4} parent=11 // pred_region
        _
      $region16: #{bottleneck_psp_forward.4} parent=11 // pred_fallthru
        _
      // Predicated region
      $region17: #{bottleneck_psp_forward.4} parent=11 // pred_check
        %p135 = pneg %p89
      $region18: #{bottleneck_psp_forward.4} parent=11 // pred_check_branch
        %137 = sbr.rel (%p135) target = $region20
      $region19: #{bottleneck_psp_forward.4} parent=11 // pred_region
        _
      $region20: #{bottleneck_psp_forward.4} parent=11 // pred_fallthru
        _
    $region12: #{bottleneck_psp_forward.4} parent=5 // pred_fallthru
      _
    %p138 = scmp.lt.s32.totalorder %s9, 2
    // Predicated region
    $region21: #{bottleneck_psp_forward.4} parent=5 // pred_check
      %p139 = pneg %p138
    $region22: #{bottleneck_psp_forward.4} parent=5 // pred_check_branch
      %141 = sbr.rel (%p139) target = $region24
    $region23: #{bottleneck_psp_forward.4} parent=5 // pred_region
      // Predicated region
      $region25: #{bottleneck_psp_forward.4} parent=23 // pred_check
        %p142 = pneg %p41
      $region26: #{bottleneck_psp_forward.4} parent=23 // pred_check_branch
        %144 = sbr.rel (%p142) target = $region28
      $region27: #{bottleneck_psp_forward.4} parent=23 // pred_region
        %p145 = scmp.lt.s32.totalorder %s16, 1
        %s146 = scalar_select %p145, %s16, 1
        %s147 = smul.addr %s146, 80
        %s148 = smul.addr %s147, 4
        %s149 = scalar_lea.vmem %s0, %s148
      $region28: #{bottleneck_psp_forward.4} parent=23 // pred_fallthru
        _
    $region24: #{bottleneck_psp_forward.4} parent=5 // pred_fallthru
      _
    %p150 = scmp.le.s32.totalorder 1, %s9
    %p151 = scmp.lt.s32.totalorder %s9, 3
    %p152 = pnand %p150, %p151
    %p153 = pneg %p152
    // Predicated region
    $region29: #{bottleneck_psp_forward.4} parent=5 // pred_check
      _
    $region30: #{bottleneck_psp_forward.4} parent=5 // pred_check_branch
      %155 = sbr.rel (%p152) target = $region32
    $region31: #{bottleneck_psp_forward.4} parent=5 // pred_region
      %s156 = ssub.s32 %s9, 1
      %p157 = scmp.lt.s32.totalorder %s18, 1
      %s158 = scalar_select %p157, %s18, 1
      %s159 = smul.addr %s158, 80
      %s160 = smul.addr %s159, 4
      %s161 = scalar_lea.vmem %s0, %s160
      %p162 = pneg %p47
      %p163 = pneg %p44
      %p164 = pneg %p68
      %p165 = pneg %p65
      %p166 = pneg %p89
      %p167 = pneg %p86
      %p168 = pneg %p117
      %p169 = pneg %p114
      %s170 = sadd.s32 %s18, %s19
      %s171 = smul.u32 8, %s170
      %p172 = scmp.lt.s32.totalorder %s171, 15
      %s173 = scalar_select %p172, %s171, 15
      %s174 = smul.addr %s173, 4
      %s175 = scalar_lea.vmem %s3, %s174
      %p176 = scmp.lt.s32.totalorder %s18, 1
      %s177 = scalar_select %p176, %s18, 1
      %s178 = smul.addr %s177, 80
      %s179 = smul.addr %s178, 4
      %s180 = scalar_lea.vmem %s0, %s179
      %s181 = sadd.s32 %s18, %s19
      %s182 = smul.u32 8, %s181
      %p183 = scmp.lt.s32.totalorder %s182, 15
      %s184 = scalar_select %p183, %s182, 15
      %s185 = smul.addr %s184, 4
      %s186 = scalar_lea.vmem %s3, %s185
      %s187 = sadd.s32 %s18, %s19
      %s188 = smul.u32 8, %s187
      %s190 = smul.u32 %s19, 8
      %s191 = smul.u32 %s190, 2
      %s192 = smul.addr %s191, 4
      %s193 = scalar_lea.vmem %s180, %s192
      %v194 = vld [vmem:[%s193] sm:$0xf]
      %v195 = vld [vmem:[%s193 + $0x8] sm:$0xf]
      %v196 = vld [vmem:[%s193 + $0x10] sm:$0xf]
      %v197 = vld [vmem:[%s193 + $0x18] sm:$0xf]
      %v198 = vld [vmem:[%s193 + $0x20] sm:$0xf]
      %v199 = vld [vmem:[%s193 + $0x28] sm:$0xf]
      %v200 = vld [vmem:[%s193 + $0x30] sm:$0xf]
      %v201 = vld [vmem:[%s193 + $0x38] sm:$0xf]
      %v202 = vld [vmem:[%s1] sm:$0x3]
      %v203 = vld [vmem:[%s193 + $0x4] sm:$0x1]
      %v204 = vld [vmem:[%s193 + $0xc] sm:$0x1]
      %v205 = vld [vmem:[%s193 + $0x14] sm:$0x1]
      %v206 = vld [vmem:[%s193 + $0x1c] sm:$0x1]
      %v207 = vld [vmem:[%s193 + $0x24] sm:$0x1]
      %v208 = vld [vmem:[%s193 + $0x2c] sm:$0x1]
      %v209 = vld [vmem:[%s193 + $0x34] sm:$0x1]
      %v210 = vld [vmem:[%s193 + $0x3c] sm:$0x1]
      %vm211 = vsmask.f32 3328
      %vm212 = vsmask.f32 7440
      %vm213 = vmor %vm211, %vm212
      %v215 = vshrl.u32 %v194, 16
      %v217 = vrot.slane %v215, 4
      %v218 = vshll.u32 %v194, 16
      %v220 = vrot.slane %v218, 5
      %v221 = vor.u32 %v217, %v220
      %v222 = vrot.slane %v221, 4
      %v224 = vshll.u32 %v203, 16
      %v226 = vrot.slane %v224, 5
      %v227 = vsel %vm213, %v222, %v226
      %v229 = vshrl.u32 %v195, 16
      %v231 = vrot.slane %v229, 4
      %v232 = vshll.u32 %v195, 16
      %v234 = vrot.slane %v232, 5
      %v235 = vor.u32 %v231, %v234
      %v236 = vrot.slane %v235, 4
      %v238 = vshll.u32 %v204, 16
      %v240 = vrot.slane %v238, 5
      %v241 = vsel %vm213, %v236, %v240
      %v243 = vshrl.u32 %v196, 16
      %v245 = vrot.slane %v243, 4
      %v246 = vshll.u32 %v196, 16
      %v248 = vrot.slane %v246, 5
      %v249 = vor.u32 %v245, %v248
      %v250 = vrot.slane %v249, 4
      %v252 = vshll.u32 %v205, 16
      %v254 = vrot.slane %v252, 5
      %v255 = vsel %vm213, %v250, %v254
      %v257 = vshrl.u32 %v197, 16
      %v259 = vrot.slane %v257, 4
      %v260 = vshll.u32 %v197, 16
      %v262 = vrot.slane %v260, 5
      %v263 = vor.u32 %v259, %v262
      %v264 = vrot.slane %v263, 4
      %v266 = vshll.u32 %v206, 16
      %v268 = vrot.slane %v266, 5
      %v269 = vsel %vm213, %v264, %v268
      %v271 = vshrl.u32 %v198, 16
      %v273 = vrot.slane %v271, 4
      %v274 = vshll.u32 %v198, 16
      %v276 = vrot.slane %v274, 5
      %v277 = vor.u32 %v273, %v276
      %v278 = vrot.slane %v277, 4
      %v280 = vshll.u32 %v207, 16
      %v282 = vrot.slane %v280, 5
      %v283 = vsel %vm213, %v278, %v282
      %v285 = vshrl.u32 %v199, 16
      %v287 = vrot.slane %v285, 4
      %v288 = vshll.u32 %v199, 16
      %v290 = vrot.slane %v288, 5
      %v291 = vor.u32 %v287, %v290
      %v292 = vrot.slane %v291, 4
      %v294 = vshll.u32 %v208, 16
      %v296 = vrot.slane %v294, 5
      %v297 = vsel %vm213, %v292, %v296
      %v299 = vshrl.u32 %v200, 16
      %v301 = vrot.slane %v299, 4
      %v302 = vshll.u32 %v200, 16
      %v304 = vrot.slane %v302, 5
      %v305 = vor.u32 %v301, %v304
      %v306 = vrot.slane %v305, 4
      %v308 = vshll.u32 %v209, 16
      %v310 = vrot.slane %v308, 5
      %v311 = vsel %vm213, %v306, %v310
      %v313 = vshrl.u32 %v201, 16
      %v315 = vrot.slane %v313, 4
      %v316 = vshll.u32 %v201, 16
      %v318 = vrot.slane %v316, 5
      %v319 = vor.u32 %v315, %v318
      %v320 = vrot.slane %v319, 4
      %v322 = vshll.u32 %v210, 16
      %v324 = vrot.slane %v322, 5
      %v325 = vsel %vm213, %v320, %v324
      %s326 = scalar_lea.vmem %s1, 2
      %v327 = vld [vmem:[%s326] sm:$0x3]
      %v328 = vunpack.c.l.b16 %v227
      %v329 = vunpack.c.l.b16 %v241
      %v330 = vunpack.c.l.b16 %v255
      %v331 = vunpack.c.l.b16 %v269
      %v332 = vunpack.c.l.b16 %v283
      %v333 = vunpack.c.l.b16 %v297
      %v334 = vunpack.c.l.b16 %v311
      %v335 = vunpack.c.l.b16 %v325
      %v336 = vpack.c.b16 %v329, %v328
      %v337 = vpack.c.b16 %v331, %v330
      %v338 = vpack.c.b16 %v333, %v332
      %v339 = vpack.c.b16 %v335, %v334
      %vm340 = vcmask 31744
      %v342 = vsel %vm340, %v336, 0
      %v345 = vsel %vm340, %v337, 0
      %v348 = vsel %vm340, %v338, 0
      %v351 = vsel %vm340, %v339, 0
      %vm353 = vcmask 1041408
      %v355 = vsel %vm353, %v327, 0
      %357 = vmatprep.subr.bf16.mxu0 0
      %358 = vmatpush1.bf16.msra.mxu0 0
      %359 = vmatprep.subr.bf16.mxu0 0
      %360 = vmatpush1.bf16.msra.mxu0 0
      %361 = vmatprep.subr.bf16.mxu0 0
      %362 = vmatpush1.bf16.msra.mxu0 0
      %363 = vmatprep.subr.bf16.mxu0 0
      %364 = vmatpush1.bf16.msra.mxu0 0
      %365 = vmatprep.subr.bf16.mxu0 0
      %366 = vmatpush1.bf16.msra.mxu0 0
      %367 = vmatprep.subr.bf16.mxu0 0
      %368 = vmatpush1.bf16.msra.mxu0 0
      %369 = vmatprep.subr.bf16.mxu0 0
      %370 = vmatpush1.bf16.msra.mxu0 0
      %371 = vmatprep.subr.bf16.mxu0 0
      %372 = vmatpush1.bf16.msra.mxu0 %v355
      %373 = vmatprep.subr.bf16.mxu0 0
      %374 = vmatpush2.bf16.msra.mxu0 0
      %375 = vmatprep.subr.bf16.mxu0 0
      %376 = vmatpush2.bf16.msra.mxu0 0
      %377 = vmatprep.subr.bf16.mxu0 0
      %378 = vmatpush2.bf16.msra.mxu0 0
      %379 = vmatprep.subr.bf16.mxu0 0
      %380 = vmatpush2.bf16.msra.mxu0 0
      %381 = vmatprep.subr.bf16.mxu0 0
      %382 = vmatpush2.bf16.msra.mxu0 0
      %383 = vmatprep.subr.bf16.mxu0 0
      %384 = vmatpush2.bf16.msra.mxu0 0
      %385 = vmatprep.subr.bf16.mxu0 0
      %386 = vmatpush2.bf16.msra.mxu0 0
      %387 = vmatprep.subr.bf16.mxu0 0
      %388 = vmatpush2.bf16.msra.mxu0 0
      %389 = vmatprep.mubr.bf16.mxu0 0
      %390 = vmatmul.mubr.bf16.gmra.mxu0 %v342
      %v391 = vpop.f32.mrf.mxu0
      %v392 = vadd.f32 0.0, %v391
      %v393 = vpop.f32.mrf.mxu0
      %v394 = vpop.f32.mrf.mxu0
      %v395 = vadd.f32 0.0, %v394
      %v396 = vpop.f32.mrf.mxu0
      %397 = vmatprep.mubr.bf16.mxu0 0
      %398 = vmatmul.mubr.bf16.gmra.mxu0 %v345
      %v399 = vpop.f32.mrf.mxu0
      %v400 = vadd.f32 0.0, %v399
      %v401 = vpop.f32.mrf.mxu0
      %v402 = vpop.f32.mrf.mxu0
      %v403 = vadd.f32 0.0, %v402
      %v404 = vpop.f32.mrf.mxu0
      %405 = vmatprep.mubr.bf16.mxu0 0
      %406 = vmatmul.mubr.bf16.gmra.mxu0 %v348
      %v407 = vpop.f32.mrf.mxu0
      %v408 = vadd.f32 0.0, %v407
      %v409 = vpop.f32.mrf.mxu0
      %v410 = vpop.f32.mrf.mxu0
      %v411 = vadd.f32 0.0, %v410
      %v412 = vpop.f32.mrf.mxu0
      %413 = vmatprep.mubr.bf16.mxu0 0
      %414 = vmatmul.mubr.bf16.gmra.mxu0 %v351
      %v415 = vpop.f32.mrf.mxu0
      %v416 = vadd.f32 0.0, %v415
      %v417 = vpop.f32.mrf.mxu0
      %v418 = vpop.f32.mrf.mxu0
      %v419 = vadd.f32 0.0, %v418
      %v420 = vpop.f32.mrf.mxu0
      %421 = vdwg.mxu0
      %v430 = vunpack.c.l.b16 %v194
      %v431 = vunpack.c.l.b16 %v195
      %v432 = vunpack.c.l.b16 %v196
      %v433 = vunpack.c.l.b16 %v197
      %v434 = vunpack.c.l.b16 %v198
      %v435 = vunpack.c.l.b16 %v199
      %v436 = vunpack.c.l.b16 %v200
      %v437 = vunpack.c.l.b16 %v201
      %v438 = vpack.c.b16 %v431, %v430
      %v439 = vpack.c.b16 %v433, %v432
      %v440 = vpack.c.b16 %v435, %v434
      %v441 = vpack.c.b16 %v437, %v436
      %v443 = vsel %vm340, %v438, 0
      %v446 = vsel %vm340, %v439, 0
      %v449 = vsel %vm340, %v440, 0
      %v452 = vsel %vm340, %v441, 0
      %v455 = vsel %vm353, %v202, 0
      %457 = vmatprep.subr.bf16.mxu0 0
      %458 = vmatpush1.bf16.msra.mxu0 0
      %459 = vmatprep.subr.bf16.mxu0 0
      %460 = vmatpush1.bf16.msra.mxu0 0
      %461 = vmatprep.subr.bf16.mxu0 0
      %462 = vmatpush1.bf16.msra.mxu0 0
      %463 = vmatprep.subr.bf16.mxu0 0
      %464 = vmatpush1.bf16.msra.mxu0 0
      %465 = vmatprep.subr.bf16.mxu0 0
      %466 = vmatpush1.bf16.msra.mxu0 0
      %467 = vmatprep.subr.bf16.mxu0 0
      %468 = vmatpush1.bf16.msra.mxu0 0
      %469 = vmatprep.subr.bf16.mxu0 0
      %470 = vmatpush1.bf16.msra.mxu0 0
      %471 = vmatprep.subr.bf16.mxu0 0
      %472 = vmatpush1.bf16.msra.mxu0 %v455
      %473 = vmatprep.subr.bf16.mxu0 0
      %474 = vmatpush2.bf16.msra.mxu0 0
      %475 = vmatprep.subr.bf16.mxu0 0
      %476 = vmatpush2.bf16.msra.mxu0 0
      %477 = vmatprep.subr.bf16.mxu0 0
      %478 = vmatpush2.bf16.msra.mxu0 0
      %479 = vmatprep.subr.bf16.mxu0 0
      %480 = vmatpush2.bf16.msra.mxu0 0
      %481 = vmatprep.subr.bf16.mxu0 0
      %482 = vmatpush2.bf16.msra.mxu0 0
      %483 = vmatprep.subr.bf16.mxu0 0
      %484 = vmatpush2.bf16.msra.mxu0 0
      %485 = vmatprep.subr.bf16.mxu0 0
      %486 = vmatpush2.bf16.msra.mxu0 0
      %487 = vmatprep.subr.bf16.mxu0 0
      %488 = vmatpush2.bf16.msra.mxu0 0
      %489 = vmatprep.mubr.bf16.mxu0 0
      %490 = vmatmul.mubr.bf16.gmra.mxu0 %v443
      %v491 = vpop.f32.mrf.mxu0
      %v492 = vadd.f32 %v392, %v491
      %v493 = vpop.f32.mrf.mxu0
      %v494 = vpop.f32.mrf.mxu0
      %v495 = vadd.f32 %v395, %v494
      %v496 = vpop.f32.mrf.mxu0
      %497 = vmatprep.mubr.bf16.mxu0 0
      %498 = vmatmul.mubr.bf16.gmra.mxu0 %v446
      %v499 = vpop.f32.mrf.mxu0
      %v500 = vadd.f32 %v400, %v499
      %v501 = vpop.f32.mrf.mxu0
      %v502 = vpop.f32.mrf.mxu0
      %v503 = vadd.f32 %v403, %v502
      %v504 = vpop.f32.mrf.mxu0
      %505 = vmatprep.mubr.bf16.mxu0 0
      %506 = vmatmul.mubr.bf16.gmra.mxu0 %v449
      %v507 = vpop.f32.mrf.mxu0
      %v508 = vadd.f32 %v408, %v507
      %v509 = vpop.f32.mrf.mxu0
      %v510 = vpop.f32.mrf.mxu0
      %v511 = vadd.f32 %v411, %v510
      %v512 = vpop.f32.mrf.mxu0
      %513 = vmatprep.mubr.bf16.mxu0 0
      %514 = vmatmul.mubr.bf16.gmra.mxu0 %v452
      %v515 = vpop.f32.mrf.mxu0
      %v516 = vadd.f32 %v416, %v515
      %v517 = vpop.f32.mrf.mxu0
      %v518 = vpop.f32.mrf.mxu0
      %v519 = vadd.f32 %v419, %v518
      %v520 = vpop.f32.mrf.mxu0
      %521 = vdwg.mxu0
      %v522 = vld [vmem:[%s193] sm:$0xe]
      %v523 = vld [vmem:[%s193 + $0x8] sm:$0xe]
      %v524 = vld [vmem:[%s193 + $0x10] sm:$0xe]
      %v525 = vld [vmem:[%s193 + $0x18] sm:$0xe]
      %v526 = vld [vmem:[%s193 + $0x20] sm:$0xe]
      %v527 = vld [vmem:[%s193 + $0x28] sm:$0xe]
      %v528 = vld [vmem:[%s193 + $0x30] sm:$0xe]
      %v529 = vld [vmem:[%s193 + $0x38] sm:$0xe]
      %vm546 = vcmask 1042432
      %vm547 = vcmask 1046532
      %vm548 = vmor %vm546, %vm547
      %v549 = vrot.slane %v522, 5
      %v550 = vrot.slane %v549, 4
      %v551 = vrot.slane %v203, 5
      %v552 = vsel %vm548, %v550, %v551
      %v553 = vrot.slane %v523, 5
      %v554 = vrot.slane %v553, 4
      %v555 = vrot.slane %v204, 5
      %v556 = vsel %vm548, %v554, %v555
      %v557 = vrot.slane %v524, 5
      %v558 = vrot.slane %v557, 4
      %v559 = vrot.slane %v205, 5
      %v560 = vsel %vm548, %v558, %v559
      %v561 = vrot.slane %v525, 5
      %v562 = vrot.slane %v561, 4
      %v563 = vrot.slane %v206, 5
      %v564 = vsel %vm548, %v562, %v563
      %v565 = vrot.slane %v526, 5
      %v566 = vrot.slane %v565, 4
      %v567 = vrot.slane %v207, 5
      %v568 = vsel %vm548, %v566, %v567
      %v569 = vrot.slane %v527, 5
      %v570 = vrot.slane %v569, 4
      %v571 = vrot.slane %v208, 5
      %v572 = vsel %vm548, %v570, %v571
      %v573 = vrot.slane %v528, 5
      %v574 = vrot.slane %v573, 4
      %v575 = vrot.slane %v209, 5
      %v576 = vsel %vm548, %v574, %v575
      %v577 = vrot.slane %v529, 5
      %v578 = vrot.slane %v577, 4
      %v579 = vrot.slane %v210, 5
      %v580 = vsel %vm548, %v578, %v579
      %s581 = scalar_lea.vmem %s1, 4
      %v582 = vld [vmem:[%s581] sm:$0x3]
      %v583 = vunpack.c.l.b16 %v552
      %v584 = vunpack.c.l.b16 %v556
      %v585 = vunpack.c.l.b16 %v560
      %v586 = vunpack.c.l.b16 %v564
      %v587 = vunpack.c.l.b16 %v568
      %v588 = vunpack.c.l.b16 %v572
      %v589 = vunpack.c.l.b16 %v576
      %v590 = vunpack.c.l.b16 %v580
      %v591 = vpack.c.b16 %v584, %v583
      %v592 = vpack.c.b16 %v586, %v585
      %v593 = vpack.c.b16 %v588, %v587
      %v594 = vpack.c.b16 %v590, %v589
      %v596 = vsel %vm340, %v591, 0
      %v599 = vsel %vm340, %v592, 0
      %v602 = vsel %vm340, %v593, 0
      %v605 = vsel %vm340, %v594, 0
      %v608 = vsel %vm353, %v582, 0
      %610 = vmatprep.subr.bf16.mxu0 0
      %611 = vmatpush1.bf16.msra.mxu0 0
      %612 = vmatprep.subr.bf16.mxu0 0
      %613 = vmatpush1.bf16.msra.mxu0 0
      %614 = vmatprep.subr.bf16.mxu0 0
      %615 = vmatpush1.bf16.msra.mxu0 0
      %616 = vmatprep.subr.bf16.mxu0 0
      %617 = vmatpush1.bf16.msra.mxu0 0
      %618 = vmatprep.subr.bf16.mxu0 0
      %619 = vmatpush1.bf16.msra.mxu0 0
      %620 = vmatprep.subr.bf16.mxu0 0
      %621 = vmatpush1.bf16.msra.mxu0 0
      %622 = vmatprep.subr.bf16.mxu0 0
      %623 = vmatpush1.bf16.msra.mxu0 0
      %624 = vmatprep.subr.bf16.mxu0 0
      %625 = vmatpush1.bf16.msra.mxu0 %v608
      %626 = vmatprep.subr.bf16.mxu0 0
      %627 = vmatpush2.bf16.msra.mxu0 0
      %628 = vmatprep.subr.bf16.mxu0 0
      %629 = vmatpush2.bf16.msra.mxu0 0
      %630 = vmatprep.subr.bf16.mxu0 0
      %631 = vmatpush2.bf16.msra.mxu0 0
      %632 = vmatprep.subr.bf16.mxu0 0
      %633 = vmatpush2.bf16.msra.mxu0 0
      %634 = vmatprep.subr.bf16.mxu0 0
      %635 = vmatpush2.bf16.msra.mxu0 0
      %636 = vmatprep.subr.bf16.mxu0 0
      %637 = vmatpush2.bf16.msra.mxu0 0
      %638 = vmatprep.subr.bf16.mxu0 0
      %639 = vmatpush2.bf16.msra.mxu0 0
      %640 = vmatprep.subr.bf16.mxu0 0
      %641 = vmatpush2.bf16.msra.mxu0 0
      %642 = vmatprep.mubr.bf16.mxu0 0
      %643 = vmatmul.mubr.bf16.gmra.mxu0 %v596
      %v644 = vpop.f32.mrf.mxu0
      %v645 = vadd.f32 0.0, %v644
      %v646 = vpop.f32.mrf.mxu0
      %v647 = vpop.f32.mrf.mxu0
      %v648 = vadd.f32 0.0, %v647
      %v649 = vpop.f32.mrf.mxu0
      %650 = vmatprep.mubr.bf16.mxu0 0
      %651 = vmatmul.mubr.bf16.gmra.mxu0 %v599
      %v652 = vpop.f32.mrf.mxu0
      %v653 = vadd.f32 0.0, %v652
      %v654 = vpop.f32.mrf.mxu0
      %v655 = vpop.f32.mrf.mxu0
      %v656 = vadd.f32 0.0, %v655
      %v657 = vpop.f32.mrf.mxu0
      %658 = vmatprep.mubr.bf16.mxu0 0
      %659 = vmatmul.mubr.bf16.gmra.mxu0 %v602
      %v660 = vpop.f32.mrf.mxu0
      %v661 = vadd.f32 0.0, %v660
      %v662 = vpop.f32.mrf.mxu0
      %v663 = vpop.f32.mrf.mxu0
      %v664 = vadd.f32 0.0, %v663
      %v665 = vpop.f32.mrf.mxu0
      %666 = vmatprep.mubr.bf16.mxu0 0
      %667 = vmatmul.mubr.bf16.gmra.mxu0 %v605
      %v668 = vpop.f32.mrf.mxu0
      %v669 = vadd.f32 0.0, %v668
      %v670 = vpop.f32.mrf.mxu0
      %v671 = vpop.f32.mrf.mxu0
      %v672 = vadd.f32 0.0, %v671
      %v673 = vpop.f32.mrf.mxu0
      %674 = vdwg.mxu0
      %v675 = vadd.f32 %v492, %v645
      %v676 = vadd.f32 %v495, %v648
      %v677 = vadd.f32 %v500, %v653
      %v678 = vadd.f32 %v503, %v656
      %v679 = vadd.f32 %v508, %v661
      %v680 = vadd.f32 %v511, %v664
      %v681 = vadd.f32 %v516, %v669
      %v682 = vadd.f32 %v519, %v672
      %s683 = sadd.s32 %s190, 1
      %s684 = smul.u32 %s683, 2
      %s685 = smul.addr %s684, 4
      %s686 = scalar_lea.vmem %s180, %s685
      %v687 = vld [vmem:[%s686] sm:$0xf]
      %v688 = vld [vmem:[%s686 + $0x8] sm:$0xf]
      %v689 = vld [vmem:[%s686 + $0x10] sm:$0xf]
      %v690 = vld [vmem:[%s686 + $0x18] sm:$0xf]
      %v691 = vld [vmem:[%s686 + $0x20] sm:$0xf]
      %v692 = vld [vmem:[%s686 + $0x28] sm:$0xf]
      %v693 = vld [vmem:[%s686 + $0x30] sm:$0xf]
      %v694 = vld [vmem:[%s686 + $0x38] sm:$0xf]
      %s695 = scalar_lea.vmem %s1, 6
      %v696 = vld [vmem:[%s695] sm:$0x3]
      %v705 = vunpack.c.l.b16 %v687
      %v706 = vunpack.c.l.b16 %v688
      %v707 = vunpack.c.l.b16 %v689
      %v708 = vunpack.c.l.b16 %v690
      %v709 = vunpack.c.l.b16 %v691
      %v710 = vunpack.c.l.b16 %v692
      %v711 = vunpack.c.l.b16 %v693
      %v712 = vunpack.c.l.b16 %v694
      %v713 = vpack.c.b16 %v706, %v705
      %v714 = vpack.c.b16 %v708, %v707
      %v715 = vpack.c.b16 %v710, %v709
      %v716 = vpack.c.b16 %v712, %v711
      %v718 = vsel %vm340, %v713, 0
      %v721 = vsel %vm340, %v714, 0
      %v724 = vsel %vm340, %v715, 0
      %v727 = vsel %vm340, %v716, 0
      %v730 = vsel %vm353, %v696, 0
      %732 = vmatprep.subr.bf16.mxu0 0
      %733 = vmatpush1.bf16.msra.mxu0 0
      %734 = vmatprep.subr.bf16.mxu0 0
      %735 = vmatpush1.bf16.msra.mxu0 0
      %736 = vmatprep.subr.bf16.mxu0 0
      %737 = vmatpush1.bf16.msra.mxu0 0
      %738 = vmatprep.subr.bf16.mxu0 0
      %739 = vmatpush1.bf16.msra.mxu0 0
      %740 = vmatprep.subr.bf16.mxu0 0
      %741 = vmatpush1.bf16.msra.mxu0 0
      %742 = vmatprep.subr.bf16.mxu0 0
      %743 = vmatpush1.bf16.msra.mxu0 0
      %744 = vmatprep.subr.bf16.mxu0 0
      %745 = vmatpush1.bf16.msra.mxu0 0
      %746 = vmatprep.subr.bf16.mxu0 0
      %747 = vmatpush1.bf16.msra.mxu0 %v730
      %748 = vmatprep.subr.bf16.mxu0 0
      %749 = vmatpush2.bf16.msra.mxu0 0
      %750 = vmatprep.subr.bf16.mxu0 0
      %751 = vmatpush2.bf16.msra.mxu0 0
      %752 = vmatprep.subr.bf16.mxu0 0
      %753 = vmatpush2.bf16.msra.mxu0 0
      %754 = vmatprep.subr.bf16.mxu0 0
      %755 = vmatpush2.bf16.msra.mxu0 0
      %756 = vmatprep.subr.bf16.mxu0 0
      %757 = vmatpush2.bf16.msra.mxu0 0
      %758 = vmatprep.subr.bf16.mxu0 0
      %759 = vmatpush2.bf16.msra.mxu0 0
      %760 = vmatprep.subr.bf16.mxu0 0
      %761 = vmatpush2.bf16.msra.mxu0 0
      %762 = vmatprep.subr.bf16.mxu0 0
      %763 = vmatpush2.bf16.msra.mxu0 0
      %764 = vmatprep.mubr.bf16.mxu0 0
      %765 = vmatmul.mubr.bf16.gmra.mxu0 %v718
      %v766 = vpop.f32.mrf.mxu0
      %v767 = vadd.f32 0.0, %v766
      %v768 = vpop.f32.mrf.mxu0
      %v769 = vpop.f32.mrf.mxu0
      %v770 = vadd.f32 0.0, %v769
      %v771 = vpop.f32.mrf.mxu0
      %772 = vmatprep.mubr.bf16.mxu0 0
      %773 = vmatmul.mubr.bf16.gmra.mxu0 %v721
      %v774 = vpop.f32.mrf.mxu0
      %v775 = vadd.f32 0.0, %v774
      %v776 = vpop.f32.mrf.mxu0
      %v777 = vpop.f32.mrf.mxu0
      %v778 = vadd.f32 0.0, %v777
      %v779 = vpop.f32.mrf.mxu0
      %780 = vmatprep.mubr.bf16.mxu0 0
      %781 = vmatmul.mubr.bf16.gmra.mxu0 %v724
      %v782 = vpop.f32.mrf.mxu0
      %v783 = vadd.f32 0.0, %v782
      %v784 = vpop.f32.mrf.mxu0
      %v785 = vpop.f32.mrf.mxu0
      %v786 = vadd.f32 0.0, %v785
      %v787 = vpop.f32.mrf.mxu0
      %788 = vmatprep.mubr.bf16.mxu0 0
      %789 = vmatmul.mubr.bf16.gmra.mxu0 %v727
      %v790 = vpop.f32.mrf.mxu0
      %v791 = vadd.f32 0.0, %v790
      %v792 = vpop.f32.mrf.mxu0
      %v793 = vpop.f32.mrf.mxu0
      %v794 = vadd.f32 0.0, %v793
      %v795 = vpop.f32.mrf.mxu0
      %796 = vdwg.mxu0
      %v797 = vadd.f32 %v675, %v767
      %v798 = vadd.f32 %v676, %v770
      %v799 = vadd.f32 %v677, %v775
      %v800 = vadd.f32 %v678, %v778
      %v801 = vadd.f32 %v679, %v783
      %v802 = vadd.f32 %v680, %v786
      %v803 = vadd.f32 %v681, %v791
      %v804 = vadd.f32 %v682, %v794
      %v805 = vld [vmem:[%s686] sm:$0xf]
      %v806 = vld [vmem:[%s686 + $0x4] sm:$0x1]
      %v807 = vld [vmem:[%s686 + $0x8] sm:$0xf]
      %v808 = vld [vmem:[%s686 + $0xc] sm:$0x1]
      %v809 = vld [vmem:[%s686 + $0x10] sm:$0xf]
      %v810 = vld [vmem:[%s686 + $0x14] sm:$0x1]
      %v811 = vld [vmem:[%s686 + $0x18] sm:$0xf]
      %v812 = vld [vmem:[%s686 + $0x1c] sm:$0x1]
      %v813 = vld [vmem:[%s686 + $0x20] sm:$0xf]
      %v814 = vld [vmem:[%s686 + $0x24] sm:$0x1]
      %v815 = vld [vmem:[%s686 + $0x28] sm:$0xf]
      %v816 = vld [vmem:[%s686 + $0x2c] sm:$0x1]
      %v817 = vld [vmem:[%s686 + $0x30] sm:$0xf]
      %v818 = vld [vmem:[%s686 + $0x34] sm:$0x1]
      %v819 = vld [vmem:[%s686 + $0x38] sm:$0xf]
      %v820 = vld [vmem:[%s686 + $0x3c] sm:$0x1]
      %v822 = vshrl.u32 %v805, 16
      %v824 = vrot.slane %v822, 4
      %v825 = vshll.u32 %v805, 16
      %v827 = vrot.slane %v825, 5
      %v828 = vor.u32 %v824, %v827
      %v829 = vrot.slane %v828, 4
      %v831 = vshll.u32 %v806, 16
      %v833 = vrot.slane %v831, 5
      %v834 = vsel %vm213, %v829, %v833
      %v836 = vshrl.u32 %v807, 16
      %v838 = vrot.slane %v836, 4
      %v839 = vshll.u32 %v807, 16
      %v841 = vrot.slane %v839, 5
      %v842 = vor.u32 %v838, %v841
      %v843 = vrot.slane %v842, 4
      %v845 = vshll.u32 %v808, 16
      %v847 = vrot.slane %v845, 5
      %v848 = vsel %vm213, %v843, %v847
      %v850 = vshrl.u32 %v809, 16
      %v852 = vrot.slane %v850, 4
      %v853 = vshll.u32 %v809, 16
      %v855 = vrot.slane %v853, 5
      %v856 = vor.u32 %v852, %v855
      %v857 = vrot.slane %v856, 4
      %v859 = vshll.u32 %v810, 16
      %v861 = vrot.slane %v859, 5
      %v862 = vsel %vm213, %v857, %v861
      %v864 = vshrl.u32 %v811, 16
      %v866 = vrot.slane %v864, 4
      %v867 = vshll.u32 %v811, 16
      %v869 = vrot.slane %v867, 5
      %v870 = vor.u32 %v866, %v869
      %v871 = vrot.slane %v870, 4
      %v873 = vshll.u32 %v812, 16
      %v875 = vrot.slane %v873, 5
      %v876 = vsel %vm213, %v871, %v875
      %v878 = vshrl.u32 %v813, 16
      %v880 = vrot.slane %v878, 4
      %v881 = vshll.u32 %v813, 16
      %v883 = vrot.slane %v881, 5
      %v884 = vor.u32 %v880, %v883
      %v885 = vrot.slane %v884, 4
      %v887 = vshll.u32 %v814, 16
      %v889 = vrot.slane %v887, 5
      %v890 = vsel %vm213, %v885, %v889
      %v892 = vshrl.u32 %v815, 16
      %v894 = vrot.slane %v892, 4
      %v895 = vshll.u32 %v815, 16
      %v897 = vrot.slane %v895, 5
      %v898 = vor.u32 %v894, %v897
      %v899 = vrot.slane %v898, 4
      %v901 = vshll.u32 %v816, 16
      %v903 = vrot.slane %v901, 5
      %v904 = vsel %vm213, %v899, %v903
      %v906 = vshrl.u32 %v817, 16
      %v908 = vrot.slane %v906, 4
      %v909 = vshll.u32 %v817, 16
      %v911 = vrot.slane %v909, 5
      %v912 = vor.u32 %v908, %v911
      %v913 = vrot.slane %v912, 4
      %v915 = vshll.u32 %v818, 16
      %v917 = vrot.slane %v915, 5
      %v918 = vsel %vm213, %v913, %v917
      %v920 = vshrl.u32 %v819, 16
      %v922 = vrot.slane %v920, 4
      %v923 = vshll.u32 %v819, 16
      %v925 = vrot.slane %v923, 5
      %v926 = vor.u32 %v922, %v925
      %v927 = vrot.slane %v926, 4
      %v929 = vshll.u32 %v820, 16
      %v931 = vrot.slane %v929, 5
      %v932 = vsel %vm213, %v927, %v931
      %s933 = scalar_lea.vmem %s1, 8
      %v934 = vld [vmem:[%s933] sm:$0x3]
      %v935 = vunpack.c.l.b16 %v834
      %v936 = vunpack.c.l.b16 %v848
      %v937 = vunpack.c.l.b16 %v862
      %v938 = vunpack.c.l.b16 %v876
      %v939 = vunpack.c.l.b16 %v890
      %v940 = vunpack.c.l.b16 %v904
      %v941 = vunpack.c.l.b16 %v918
      %v942 = vunpack.c.l.b16 %v932
      %v943 = vpack.c.b16 %v936, %v935
      %v944 = vpack.c.b16 %v938, %v937
      %v945 = vpack.c.b16 %v940, %v939
      %v946 = vpack.c.b16 %v942, %v941
      %v948 = vsel %vm340, %v943, 0
      %v951 = vsel %vm340, %v944, 0
      %v954 = vsel %vm340, %v945, 0
      %v957 = vsel %vm340, %v946, 0
      %v960 = vsel %vm353, %v934, 0
      %962 = vmatprep.subr.bf16.mxu0 0
      %963 = vmatpush1.bf16.msra.mxu0 0
      %964 = vmatprep.subr.bf16.mxu0 0
      %965 = vmatpush1.bf16.msra.mxu0 0
      %966 = vmatprep.subr.bf16.mxu0 0
      %967 = vmatpush1.bf16.msra.mxu0 0
      %968 = vmatprep.subr.bf16.mxu0 0
      %969 = vmatpush1.bf16.msra.mxu0 0
      %970 = vmatprep.subr.bf16.mxu0 0
      %971 = vmatpush1.bf16.msra.mxu0 0
      %972 = vmatprep.subr.bf16.mxu0 0
      %973 = vmatpush1.bf16.msra.mxu0 0
      %974 = vmatprep.subr.bf16.mxu0 0
      %975 = vmatpush1.bf16.msra.mxu0 0
      %976 = vmatprep.subr.bf16.mxu0 0
      %977 = vmatpush1.bf16.msra.mxu0 %v960
      %978 = vmatprep.subr.bf16.mxu0 0
      %979 = vmatpush2.bf16.msra.mxu0 0
      %980 = vmatprep.subr.bf16.mxu0 0
      %981 = vmatpush2.bf16.msra.mxu0 0
      %982 = vmatprep.subr.bf16.mxu0 0
      %983 = vmatpush2.bf16.msra.mxu0 0
      %984 = vmatprep.subr.bf16.mxu0 0
      %985 = vmatpush2.bf16.msra.mxu0 0
      %986 = vmatprep.subr.bf16.mxu0 0
      %987 = vmatpush2.bf16.msra.mxu0 0
      %988 = vmatprep.subr.bf16.mxu0 0
      %989 = vmatpush2.bf16.msra.mxu0 0
      %990 = vmatprep.subr.bf16.mxu0 0
      %991 = vmatpush2.bf16.msra.mxu0 0
      %992 = vmatprep.subr.bf16.mxu0 0
      %993 = vmatpush2.bf16.msra.mxu0 0
      %994 = vmatprep.mubr.bf16.mxu0 0
      %995 = vmatmul.mubr.bf16.gmra.mxu0 %v948
      %v996 = vpop.f32.mrf.mxu0
      %v997 = vadd.f32 0.0, %v996
      %v998 = vpop.f32.mrf.mxu0
      %v999 = vpop.f32.mrf.mxu0
      %v1000 = vadd.f32 0.0, %v999
      %v1001 = vpop.f32.mrf.mxu0
      %1002 = vmatprep.mubr.bf16.mxu0 0
      %1003 = vmatmul.mubr.bf16.gmra.mxu0 %v951
      %v1004 = vpop.f32.mrf.mxu0
      %v1005 = vadd.f32 0.0, %v1004
      %v1006 = vpop.f32.mrf.mxu0
      %v1007 = vpop.f32.mrf.mxu0
      %v1008 = vadd.f32 0.0, %v1007
      %v1009 = vpop.f32.mrf.mxu0
      %1010 = vmatprep.mubr.bf16.mxu0 0
      %1011 = vmatmul.mubr.bf16.gmra.mxu0 %v954
      %v1012 = vpop.f32.mrf.mxu0
      %v1013 = vadd.f32 0.0, %v1012
      %v1014 = vpop.f32.mrf.mxu0
      %v1015 = vpop.f32.mrf.mxu0
      %v1016 = vadd.f32 0.0, %v1015
      %v1017 = vpop.f32.mrf.mxu0
      %1018 = vmatprep.mubr.bf16.mxu0 0
      %1019 = vmatmul.mubr.bf16.gmra.mxu0 %v957
      %v1020 = vpop.f32.mrf.mxu0
      %v1021 = vadd.f32 0.0, %v1020
      %v1022 = vpop.f32.mrf.mxu0
      %v1023 = vpop.f32.mrf.mxu0
      %v1024 = vadd.f32 0.0, %v1023
      %v1025 = vpop.f32.mrf.mxu0
      %1026 = vdwg.mxu0
      %v1027 = vadd.f32 %v797, %v997
      %v1028 = vadd.f32 %v798, %v1000
      %v1029 = vadd.f32 %v799, %v1005
      %v1030 = vadd.f32 %v800, %v1008
      %v1031 = vadd.f32 %v801, %v1013
      %v1032 = vadd.f32 %v802, %v1016
      %v1033 = vadd.f32 %v803, %v1021
      %v1034 = vadd.f32 %v804, %v1024
      %v1035 = vld [vmem:[%s686] sm:$0xe]
      %v1036 = vld [vmem:[%s686 + $0x8] sm:$0xe]
      %v1037 = vld [vmem:[%s686 + $0x10] sm:$0xe]
      %v1038 = vld [vmem:[%s686 + $0x18] sm:$0xe]
      %v1039 = vld [vmem:[%s686 + $0x20] sm:$0xe]
      %v1040 = vld [vmem:[%s686 + $0x28] sm:$0xe]
      %v1041 = vld [vmem:[%s686 + $0x30] sm:$0xe]
      %v1042 = vld [vmem:[%s686 + $0x38] sm:$0xe]
      %v1059 = vrot.slane %v1035, 5
      %v1060 = vrot.slane %v1059, 4
      %v1061 = vrot.slane %v806, 5
      %v1062 = vsel %vm548, %v1060, %v1061
      %v1063 = vrot.slane %v1036, 5
      %v1064 = vrot.slane %v1063, 4
      %v1065 = vrot.slane %v808, 5
      %v1066 = vsel %vm548, %v1064, %v1065
      %v1067 = vrot.slane %v1037, 5
      %v1068 = vrot.slane %v1067, 4
      %v1069 = vrot.slane %v810, 5
      %v1070 = vsel %vm548, %v1068, %v1069
      %v1071 = vrot.slane %v1038, 5
      %v1072 = vrot.slane %v1071, 4
      %v1073 = vrot.slane %v812, 5
      %v1074 = vsel %vm548, %v1072, %v1073
      %v1075 = vrot.slane %v1039, 5
      %v1076 = vrot.slane %v1075, 4
      %v1077 = vrot.slane %v814, 5
      %v1078 = vsel %vm548, %v1076, %v1077
      %v1079 = vrot.slane %v1040, 5
      %v1080 = vrot.slane %v1079, 4
      %v1081 = vrot.slane %v816, 5
      %v1082 = vsel %vm548, %v1080, %v1081
      %v1083 = vrot.slane %v1041, 5
      %v1084 = vrot.slane %v1083, 4
      %v1085 = vrot.slane %v818, 5
      %v1086 = vsel %vm548, %v1084, %v1085
      %v1087 = vrot.slane %v1042, 5
      %v1088 = vrot.slane %v1087, 4
      %v1089 = vrot.slane %v820, 5
      %v1090 = vsel %vm548, %v1088, %v1089
      %s1091 = scalar_lea.vmem %s1, 10
      %v1092 = vld [vmem:[%s1091] sm:$0x3]
      %v1093 = vunpack.c.l.b16 %v1062
      %v1094 = vunpack.c.l.b16 %v1066
      %v1095 = vunpack.c.l.b16 %v1070
      %v1096 = vunpack.c.l.b16 %v1074
      %v1097 = vunpack.c.l.b16 %v1078
      %v1098 = vunpack.c.l.b16 %v1082
      %v1099 = vunpack.c.l.b16 %v1086
      %v1100 = vunpack.c.l.b16 %v1090
      %v1101 = vpack.c.b16 %v1094, %v1093
      %v1102 = vpack.c.b16 %v1096, %v1095
      %v1103 = vpack.c.b16 %v1098, %v1097
      %v1104 = vpack.c.b16 %v1100, %v1099
      %v1106 = vsel %vm340, %v1101, 0
      %v1109 = vsel %vm340, %v1102, 0
      %v1112 = vsel %vm340, %v1103, 0
      %v1115 = vsel %vm340, %v1104, 0
      %v1118 = vsel %vm353, %v1092, 0
      %1120 = vmatprep.subr.bf16.mxu0 0
      %1121 = vmatpush1.bf16.msra.mxu0 0
      %1122 = vmatprep.subr.bf16.mxu0 0
      %1123 = vmatpush1.bf16.msra.mxu0 0
      %1124 = vmatprep.subr.bf16.mxu0 0
      %1125 = vmatpush1.bf16.msra.mxu0 0
      %1126 = vmatprep.subr.bf16.mxu0 0
      %1127 = vmatpush1.bf16.msra.mxu0 0
      %1128 = vmatprep.subr.bf16.mxu0 0
      %1129 = vmatpush1.bf16.msra.mxu0 0
      %1130 = vmatprep.subr.bf16.mxu0 0
      %1131 = vmatpush1.bf16.msra.mxu0 0
      %1132 = vmatprep.subr.bf16.mxu0 0
      %1133 = vmatpush1.bf16.msra.mxu0 0
      %1134 = vmatprep.subr.bf16.mxu0 0
      %1135 = vmatpush1.bf16.msra.mxu0 %v1118
      %1136 = vmatprep.subr.bf16.mxu0 0
      %1137 = vmatpush2.bf16.msra.mxu0 0
      %1138 = vmatprep.subr.bf16.mxu0 0
      %1139 = vmatpush2.bf16.msra.mxu0 0
      %1140 = vmatprep.subr.bf16.mxu0 0
      %1141 = vmatpush2.bf16.msra.mxu0 0
      %1142 = vmatprep.subr.bf16.mxu0 0
      %1143 = vmatpush2.bf16.msra.mxu0 0
      %1144 = vmatprep.subr.bf16.mxu0 0
      %1145 = vmatpush2.bf16.msra.mxu0 0
      %1146 = vmatprep.subr.bf16.mxu0 0
      %1147 = vmatpush2.bf16.msra.mxu0 0
      %1148 = vmatprep.subr.bf16.mxu0 0
      %1149 = vmatpush2.bf16.msra.mxu0 0
      %1150 = vmatprep.subr.bf16.mxu0 0
      %1151 = vmatpush2.bf16.msra.mxu0 0
      %1152 = vmatprep.mubr.bf16.mxu0 0
      %1153 = vmatmul.mubr.bf16.gmra.mxu0 %v1106
      %v1154 = vpop.f32.mrf.mxu0
      %v1155 = vadd.f32 0.0, %v1154
      %v1156 = vpop.f32.mrf.mxu0
      %v1157 = vpop.f32.mrf.mxu0
      %v1158 = vadd.f32 0.0, %v1157
      %v1159 = vpop.f32.mrf.mxu0
      %1160 = vmatprep.mubr.bf16.mxu0 0
      %1161 = vmatmul.mubr.bf16.gmra.mxu0 %v1109
      %v1162 = vpop.f32.mrf.mxu0
      %v1163 = vadd.f32 0.0, %v1162
      %v1164 = vpop.f32.mrf.mxu0
      %v1165 = vpop.f32.mrf.mxu0
      %v1166 = vadd.f32 0.0, %v1165
      %v1167 = vpop.f32.mrf.mxu0
      %1168 = vmatprep.mubr.bf16.mxu0 0
      %1169 = vmatmul.mubr.bf16.gmra.mxu0 %v1112
      %v1170 = vpop.f32.mrf.mxu0
      %v1171 = vadd.f32 0.0, %v1170
      %v1172 = vpop.f32.mrf.mxu0
      %v1173 = vpop.f32.mrf.mxu0
      %v1174 = vadd.f32 0.0, %v1173
      %v1175 = vpop.f32.mrf.mxu0
      %1176 = vmatprep.mubr.bf16.mxu0 0
      %1177 = vmatmul.mubr.bf16.gmra.mxu0 %v1115
      %v1178 = vpop.f32.mrf.mxu0
      %v1179 = vadd.f32 0.0, %v1178
      %v1180 = vpop.f32.mrf.mxu0
      %v1181 = vpop.f32.mrf.mxu0
      %v1182 = vadd.f32 0.0, %v1181
      %v1183 = vpop.f32.mrf.mxu0
      %1184 = vdwg.mxu0
      %v1185 = vadd.f32 %v1027, %v1155
      %v1186 = vadd.f32 %v1028, %v1158
      %v1187 = vadd.f32 %v1029, %v1163
      %v1188 = vadd.f32 %v1030, %v1166
      %v1189 = vadd.f32 %v1031, %v1171
      %v1190 = vadd.f32 %v1032, %v1174
      %v1191 = vadd.f32 %v1033, %v1179
      %v1192 = vadd.f32 %v1034, %v1182
      %s1193 = sadd.s32 %s190, 2
      %s1194 = smul.u32 %s1193, 2
      %s1195 = smul.addr %s1194, 4
      %s1196 = scalar_lea.vmem %s180, %s1195
      %v1197 = vld [vmem:[%s1196] sm:$0xf]
      %v1198 = vld [vmem:[%s1196 + $0x8] sm:$0xf]
      %v1199 = vld [vmem:[%s1196 + $0x10] sm:$0xf]
      %v1200 = vld [vmem:[%s1196 + $0x18] sm:$0xf]
      %v1201 = vld [vmem:[%s1196 + $0x20] sm:$0xf]
      %v1202 = vld [vmem:[%s1196 + $0x28] sm:$0xf]
      %v1203 = vld [vmem:[%s1196 + $0x30] sm:$0xf]
      %v1204 = vld [vmem:[%s1196 + $0x38] sm:$0xf]
      %s1205 = scalar_lea.vmem %s1, 12
      %v1206 = vld [vmem:[%s1205] sm:$0x3]
      %v1215 = vunpack.c.l.b16 %v1197
      %v1216 = vunpack.c.l.b16 %v1198
      %v1217 = vunpack.c.l.b16 %v1199
      %v1218 = vunpack.c.l.b16 %v1200
      %v1219 = vunpack.c.l.b16 %v1201
      %v1220 = vunpack.c.l.b16 %v1202
      %v1221 = vunpack.c.l.b16 %v1203
      %v1222 = vunpack.c.l.b16 %v1204
      %v1223 = vpack.c.b16 %v1216, %v1215
      %v1224 = vpack.c.b16 %v1218, %v1217
      %v1225 = vpack.c.b16 %v1220, %v1219
      %v1226 = vpack.c.b16 %v1222, %v1221
      %v1228 = vsel %vm340, %v1223, 0
      %v1231 = vsel %vm340, %v1224, 0
      %v1234 = vsel %vm340, %v1225, 0
      %v1237 = vsel %vm340, %v1226, 0
      %v1240 = vsel %vm353, %v1206, 0
      %1242 = vmatprep.subr.bf16.mxu0 0
      %1243 = vmatpush1.bf16.msra.mxu0 0
      %1244 = vmatprep.subr.bf16.mxu0 0
      %1245 = vmatpush1.bf16.msra.mxu0 0
      %1246 = vmatprep.subr.bf16.mxu0 0
      %1247 = vmatpush1.bf16.msra.mxu0 0
      %1248 = vmatprep.subr.bf16.mxu0 0
      %1249 = vmatpush1.bf16.msra.mxu0 0
      %1250 = vmatprep.subr.bf16.mxu0 0
      %1251 = vmatpush1.bf16.msra.mxu0 0
      %1252 = vmatprep.subr.bf16.mxu0 0
      %1253 = vmatpush1.bf16.msra.mxu0 0
      %1254 = vmatprep.subr.bf16.mxu0 0
      %1255 = vmatpush1.bf16.msra.mxu0 0
      %1256 = vmatprep.subr.bf16.mxu0 0
      %1257 = vmatpush1.bf16.msra.mxu0 %v1240
      %1258 = vmatprep.subr.bf16.mxu0 0
      %1259 = vmatpush2.bf16.msra.mxu0 0
      %1260 = vmatprep.subr.bf16.mxu0 0
      %1261 = vmatpush2.bf16.msra.mxu0 0
      %1262 = vmatprep.subr.bf16.mxu0 0
      %1263 = vmatpush2.bf16.msra.mxu0 0
      %1264 = vmatprep.subr.bf16.mxu0 0
      %1265 = vmatpush2.bf16.msra.mxu0 0
      %1266 = vmatprep.subr.bf16.mxu0 0
      %1267 = vmatpush2.bf16.msra.mxu0 0
      %1268 = vmatprep.subr.bf16.mxu0 0
      %1269 = vmatpush2.bf16.msra.mxu0 0
      %1270 = vmatprep.subr.bf16.mxu0 0
      %1271 = vmatpush2.bf16.msra.mxu0 0
      %1272 = vmatprep.subr.bf16.mxu0 0
      %1273 = vmatpush2.bf16.msra.mxu0 0
      %1274 = vmatprep.mubr.bf16.mxu0 0
      %1275 = vmatmul.mubr.bf16.gmra.mxu0 %v1228
      %v1276 = vpop.f32.mrf.mxu0
      %v1277 = vadd.f32 0.0, %v1276
      %v1278 = vpop.f32.mrf.mxu0
      %v1279 = vpop.f32.mrf.mxu0
      %v1280 = vadd.f32 0.0, %v1279
      %v1281 = vpop.f32.mrf.mxu0
      %1282 = vmatprep.mubr.bf16.mxu0 0
      %1283 = vmatmul.mubr.bf16.gmra.mxu0 %v1231
      %v1284 = vpop.f32.mrf.mxu0
      %v1285 = vadd.f32 0.0, %v1284
      %v1286 = vpop.f32.mrf.mxu0
      %v1287 = vpop.f32.mrf.mxu0
      %v1288 = vadd.f32 0.0, %v1287
      %v1289 = vpop.f32.mrf.mxu0
      %1290 = vmatprep.mubr.bf16.mxu0 0
      %1291 = vmatmul.mubr.bf16.gmra.mxu0 %v1234
      %v1292 = vpop.f32.mrf.mxu0
      %v1293 = vadd.f32 0.0, %v1292
      %v1294 = vpop.f32.mrf.mxu0
      %v1295 = vpop.f32.mrf.mxu0
      %v1296 = vadd.f32 0.0, %v1295
      %v1297 = vpop.f32.mrf.mxu0
      %1298 = vmatprep.mubr.bf16.mxu0 0
      %1299 = vmatmul.mubr.bf16.gmra.mxu0 %v1237
      %v1300 = vpop.f32.mrf.mxu0
      %v1301 = vadd.f32 0.0, %v1300
      %v1302 = vpop.f32.mrf.mxu0
      %v1303 = vpop.f32.mrf.mxu0
      %v1304 = vadd.f32 0.0, %v1303
      %v1305 = vpop.f32.mrf.mxu0
      %1306 = vdwg.mxu0
      %v1307 = vadd.f32 %v1185, %v1277
      %v1308 = vadd.f32 %v1186, %v1280
      %v1309 = vadd.f32 %v1187, %v1285
      %v1310 = vadd.f32 %v1188, %v1288
      %v1311 = vadd.f32 %v1189, %v1293
      %v1312 = vadd.f32 %v1190, %v1296
      %v1313 = vadd.f32 %v1191, %v1301
      %v1314 = vadd.f32 %v1192, %v1304
      %v1315 = vld [vmem:[%s1196] sm:$0xf]
      %v1316 = vld [vmem:[%s1196 + $0x4] sm:$0x1]
      %v1317 = vld [vmem:[%s1196 + $0x8] sm:$0xf]
      %v1318 = vld [vmem:[%s1196 + $0xc] sm:$0x1]
      %v1319 = vld [vmem:[%s1196 + $0x10] sm:$0xf]
      %v1320 = vld [vmem:[%s1196 + $0x14] sm:$0x1]
      %v1321 = vld [vmem:[%s1196 + $0x18] sm:$0xf]
      %v1322 = vld [vmem:[%s1196 + $0x1c] sm:$0x1]
      %v1323 = vld [vmem:[%s1196 + $0x20] sm:$0xf]
      %v1324 = vld [vmem:[%s1196 + $0x24] sm:$0x1]
      %v1325 = vld [vmem:[%s1196 + $0x28] sm:$0xf]
      %v1326 = vld [vmem:[%s1196 + $0x2c] sm:$0x1]
      %v1327 = vld [vmem:[%s1196 + $0x30] sm:$0xf]
      %v1328 = vld [vmem:[%s1196 + $0x34] sm:$0x1]
      %v1329 = vld [vmem:[%s1196 + $0x38] sm:$0xf]
      %v1330 = vld [vmem:[%s1196 + $0x3c] sm:$0x1]
      %v1332 = vshrl.u32 %v1315, 16
      %v1334 = vrot.slane %v1332, 4
      %v1335 = vshll.u32 %v1315, 16
      %v1337 = vrot.slane %v1335, 5
      %v1338 = vor.u32 %v1334, %v1337
      %v1339 = vrot.slane %v1338, 4
      %v1341 = vshll.u32 %v1316, 16
      %v1343 = vrot.slane %v1341, 5
      %v1344 = vsel %vm213, %v1339, %v1343
      %v1346 = vshrl.u32 %v1317, 16
      %v1348 = vrot.slane %v1346, 4
      %v1349 = vshll.u32 %v1317, 16
      %v1351 = vrot.slane %v1349, 5
      %v1352 = vor.u32 %v1348, %v1351
      %v1353 = vrot.slane %v1352, 4
      %v1355 = vshll.u32 %v1318, 16
      %v1357 = vrot.slane %v1355, 5
      %v1358 = vsel %vm213, %v1353, %v1357
      %v1360 = vshrl.u32 %v1319, 16
      %v1362 = vrot.slane %v1360, 4
      %v1363 = vshll.u32 %v1319, 16
      %v1365 = vrot.slane %v1363, 5
      %v1366 = vor.u32 %v1362, %v1365
      %v1367 = vrot.slane %v1366, 4
      %v1369 = vshll.u32 %v1320, 16
      %v1371 = vrot.slane %v1369, 5
      %v1372 = vsel %vm213, %v1367, %v1371
      %v1374 = vshrl.u32 %v1321, 16
      %v1376 = vrot.slane %v1374, 4
      %v1377 = vshll.u32 %v1321, 16
      %v1379 = vrot.slane %v1377, 5
      %v1380 = vor.u32 %v1376, %v1379
      %v1381 = vrot.slane %v1380, 4
      %v1383 = vshll.u32 %v1322, 16
      %v1385 = vrot.slane %v1383, 5
      %v1386 = vsel %vm213, %v1381, %v1385
      %v1388 = vshrl.u32 %v1323, 16
      %v1390 = vrot.slane %v1388, 4
      %v1391 = vshll.u32 %v1323, 16
      %v1393 = vrot.slane %v1391, 5
      %v1394 = vor.u32 %v1390, %v1393
      %v1395 = vrot.slane %v1394, 4
      %v1397 = vshll.u32 %v1324, 16
      %v1399 = vrot.slane %v1397, 5
      %v1400 = vsel %vm213, %v1395, %v1399
      %v1402 = vshrl.u32 %v1325, 16
      %v1404 = vrot.slane %v1402, 4
      %v1405 = vshll.u32 %v1325, 16
      %v1407 = vrot.slane %v1405, 5
      %v1408 = vor.u32 %v1404, %v1407
      %v1409 = vrot.slane %v1408, 4
      %v1411 = vshll.u32 %v1326, 16
      %v1413 = vrot.slane %v1411, 5
      %v1414 = vsel %vm213, %v1409, %v1413
      %v1416 = vshrl.u32 %v1327, 16
      %v1418 = vrot.slane %v1416, 4
      %v1419 = vshll.u32 %v1327, 16
      %v1421 = vrot.slane %v1419, 5
      %v1422 = vor.u32 %v1418, %v1421
      %v1423 = vrot.slane %v1422, 4
      %v1425 = vshll.u32 %v1328, 16
      %v1427 = vrot.slane %v1425, 5
      %v1428 = vsel %vm213, %v1423, %v1427
      %v1430 = vshrl.u32 %v1329, 16
      %v1432 = vrot.slane %v1430, 4
      %v1433 = vshll.u32 %v1329, 16
      %v1435 = vrot.slane %v1433, 5
      %v1436 = vor.u32 %v1432, %v1435
      %v1437 = vrot.slane %v1436, 4
      %v1439 = vshll.u32 %v1330, 16
      %v1441 = vrot.slane %v1439, 5
      %v1442 = vsel %vm213, %v1437, %v1441
      %s1443 = scalar_lea.vmem %s1, 14
      %v1444 = vld [vmem:[%s1443] sm:$0x3]
      %v1445 = vunpack.c.l.b16 %v1344
      %v1446 = vunpack.c.l.b16 %v1358
      %v1447 = vunpack.c.l.b16 %v1372
      %v1448 = vunpack.c.l.b16 %v1386
      %v1449 = vunpack.c.l.b16 %v1400
      %v1450 = vunpack.c.l.b16 %v1414
      %v1451 = vunpack.c.l.b16 %v1428
      %v1452 = vunpack.c.l.b16 %v1442
      %v1453 = vpack.c.b16 %v1446, %v1445
      %v1454 = vpack.c.b16 %v1448, %v1447
      %v1455 = vpack.c.b16 %v1450, %v1449
      %v1456 = vpack.c.b16 %v1452, %v1451
      %v1458 = vsel %vm340, %v1453, 0
      %v1461 = vsel %vm340, %v1454, 0
      %v1464 = vsel %vm340, %v1455, 0
      %v1467 = vsel %vm340, %v1456, 0
      %v1470 = vsel %vm353, %v1444, 0
      %1472 = vmatprep.subr.bf16.mxu0 0
      %1473 = vmatpush1.bf16.msra.mxu0 0
      %1474 = vmatprep.subr.bf16.mxu0 0
      %1475 = vmatpush1.bf16.msra.mxu0 0
      %1476 = vmatprep.subr.bf16.mxu0 0
      %1477 = vmatpush1.bf16.msra.mxu0 0
      %1478 = vmatprep.subr.bf16.mxu0 0
      %1479 = vmatpush1.bf16.msra.mxu0 0
      %1480 = vmatprep.subr.bf16.mxu0 0
      %1481 = vmatpush1.bf16.msra.mxu0 0
      %1482 = vmatprep.subr.bf16.mxu0 0
      %1483 = vmatpush1.bf16.msra.mxu0 0
      %1484 = vmatprep.subr.bf16.mxu0 0
      %1485 = vmatpush1.bf16.msra.mxu0 0
      %1486 = vmatprep.subr.bf16.mxu0 0
      %1487 = vmatpush1.bf16.msra.mxu0 %v1470
      %1488 = vmatprep.subr.bf16.mxu0 0
      %1489 = vmatpush2.bf16.msra.mxu0 0
      %1490 = vmatprep.subr.bf16.mxu0 0
      %1491 = vmatpush2.bf16.msra.mxu0 0
      %1492 = vmatprep.subr.bf16.mxu0 0
      %1493 = vmatpush2.bf16.msra.mxu0 0
      %1494 = vmatprep.subr.bf16.mxu0 0
      %1495 = vmatpush2.bf16.msra.mxu0 0
      %1496 = vmatprep.subr.bf16.mxu0 0
      %1497 = vmatpush2.bf16.msra.mxu0 0
      %1498 = vmatprep.subr.bf16.mxu0 0
      %1499 = vmatpush2.bf16.msra.mxu0 0
      %1500 = vmatprep.subr.bf16.mxu0 0
      %1501 = vmatpush2.bf16.msra.mxu0 0
      %1502 = vmatprep.subr.bf16.mxu0 0
      %1503 = vmatpush2.bf16.msra.mxu0 0
      %1504 = vmatprep.mubr.bf16.mxu0 0
      %1505 = vmatmul.mubr.bf16.gmra.mxu0 %v1458
      %v1506 = vpop.f32.mrf.mxu0
      %v1507 = vadd.f32 0.0, %v1506
      %v1508 = vpop.f32.mrf.mxu0
      %v1509 = vpop.f32.mrf.mxu0
      %v1510 = vadd.f32 0.0, %v1509
      %v1511 = vpop.f32.mrf.mxu0
      %1512 = vmatprep.mubr.bf16.mxu0 0
      %1513 = vmatmul.mubr.bf16.gmra.mxu0 %v1461
      %v1514 = vpop.f32.mrf.mxu0
      %v1515 = vadd.f32 0.0, %v1514
      %v1516 = vpop.f32.mrf.mxu0
      %v1517 = vpop.f32.mrf.mxu0
      %v1518 = vadd.f32 0.0, %v1517
      %v1519 = vpop.f32.mrf.mxu0
      %1520 = vmatprep.mubr.bf16.mxu0 0
      %1521 = vmatmul.mubr.bf16.gmra.mxu0 %v1464
      %v1522 = vpop.f32.mrf.mxu0
      %v1523 = vadd.f32 0.0, %v1522
      %v1524 = vpop.f32.mrf.mxu0
      %v1525 = vpop.f32.mrf.mxu0
      %v1526 = vadd.f32 0.0, %v1525
      %v1527 = vpop.f32.mrf.mxu0
      %1528 = vmatprep.mubr.bf16.mxu0 0
      %1529 = vmatmul.mubr.bf16.gmra.mxu0 %v1467
      %v1530 = vpop.f32.mrf.mxu0
      %v1531 = vadd.f32 0.0, %v1530
      %v1532 = vpop.f32.mrf.mxu0
      %v1533 = vpop.f32.mrf.mxu0
      %v1534 = vadd.f32 0.0, %v1533
      %v1535 = vpop.f32.mrf.mxu0
      %1536 = vdwg.mxu0
      %v1537 = vadd.f32 %v1307, %v1507
      %v1538 = vadd.f32 %v1308, %v1510
      %v1539 = vadd.f32 %v1309, %v1515
      %v1540 = vadd.f32 %v1310, %v1518
      %v1541 = vadd.f32 %v1311, %v1523
      %v1542 = vadd.f32 %v1312, %v1526
      %v1543 = vadd.f32 %v1313, %v1531
      %v1544 = vadd.f32 %v1314, %v1534
      %v1545 = vld [vmem:[%s1196] sm:$0xe]
      %v1546 = vld [vmem:[%s1196 + $0x8] sm:$0xe]
      %v1547 = vld [vmem:[%s1196 + $0x10] sm:$0xe]
      %v1548 = vld [vmem:[%s1196 + $0x18] sm:$0xe]
      %v1549 = vld [vmem:[%s1196 + $0x20] sm:$0xe]
      %v1550 = vld [vmem:[%s1196 + $0x28] sm:$0xe]
      %v1551 = vld [vmem:[%s1196 + $0x30] sm:$0xe]
      %v1552 = vld [vmem:[%s1196 + $0x38] sm:$0xe]
      %v1569 = vrot.slane %v1545, 5
      %v1570 = vrot.slane %v1569, 4
      %v1571 = vrot.slane %v1316, 5
      %v1572 = vsel %vm548, %v1570, %v1571
      %v1573 = vrot.slane %v1546, 5
      %v1574 = vrot.slane %v1573, 4
      %v1575 = vrot.slane %v1318, 5
      %v1576 = vsel %vm548, %v1574, %v1575
      %v1577 = vrot.slane %v1547, 5
      %v1578 = vrot.slane %v1577, 4
      %v1579 = vrot.slane %v1320, 5
      %v1580 = vsel %vm548, %v1578, %v1579
      %v1581 = vrot.slane %v1548, 5
      %v1582 = vrot.slane %v1581, 4
      %v1583 = vrot.slane %v1322, 5
      %v1584 = vsel %vm548, %v1582, %v1583
      %v1585 = vrot.slane %v1549, 5
      %v1586 = vrot.slane %v1585, 4
      %v1587 = vrot.slane %v1324, 5
      %v1588 = vsel %vm548, %v1586, %v1587
      %v1589 = vrot.slane %v1550, 5
      %v1590 = vrot.slane %v1589, 4
      %v1591 = vrot.slane %v1326, 5
      %v1592 = vsel %vm548, %v1590, %v1591
      %v1593 = vrot.slane %v1551, 5
      %v1594 = vrot.slane %v1593, 4
      %v1595 = vrot.slane %v1328, 5
      %v1596 = vsel %vm548, %v1594, %v1595
      %v1597 = vrot.slane %v1552, 5
      %v1598 = vrot.slane %v1597, 4
      %v1599 = vrot.slane %v1330, 5
      %v1600 = vsel %vm548, %v1598, %v1599
      %s1601 = scalar_lea.vmem %s1, 16
      %v1602 = vld [vmem:[%s1601] sm:$0x3]
      %v1603 = vunpack.c.l.b16 %v1572
      %v1604 = vunpack.c.l.b16 %v1576
      %v1605 = vunpack.c.l.b16 %v1580
      %v1606 = vunpack.c.l.b16 %v1584
      %v1607 = vunpack.c.l.b16 %v1588
      %v1608 = vunpack.c.l.b16 %v1592
      %v1609 = vunpack.c.l.b16 %v1596
      %v1610 = vunpack.c.l.b16 %v1600
      %v1611 = vpack.c.b16 %v1604, %v1603
      %v1612 = vpack.c.b16 %v1606, %v1605
      %v1613 = vpack.c.b16 %v1608, %v1607
      %v1614 = vpack.c.b16 %v1610, %v1609
      %v1616 = vsel %vm340, %v1611, 0
      %v1619 = vsel %vm340, %v1612, 0
      %v1622 = vsel %vm340, %v1613, 0
      %v1625 = vsel %vm340, %v1614, 0
      %v1628 = vsel %vm353, %v1602, 0
      %1630 = vmatprep.subr.bf16.mxu0 0
      %1631 = vmatpush1.bf16.msra.mxu0 0
      %1632 = vmatprep.subr.bf16.mxu0 0
      %1633 = vmatpush1.bf16.msra.mxu0 0
      %1634 = vmatprep.subr.bf16.mxu0 0
      %1635 = vmatpush1.bf16.msra.mxu0 0
      %1636 = vmatprep.subr.bf16.mxu0 0
      %1637 = vmatpush1.bf16.msra.mxu0 0
      %1638 = vmatprep.subr.bf16.mxu0 0
      %1639 = vmatpush1.bf16.msra.mxu0 0
      %1640 = vmatprep.subr.bf16.mxu0 0
      %1641 = vmatpush1.bf16.msra.mxu0 0
      %1642 = vmatprep.subr.bf16.mxu0 0
      %1643 = vmatpush1.bf16.msra.mxu0 0
      %1644 = vmatprep.subr.bf16.mxu0 0
      %1645 = vmatpush1.bf16.msra.mxu0 %v1628
      %1646 = vmatprep.subr.bf16.mxu0 0
      %1647 = vmatpush2.bf16.msra.mxu0 0
      %1648 = vmatprep.subr.bf16.mxu0 0
      %1649 = vmatpush2.bf16.msra.mxu0 0
      %1650 = vmatprep.subr.bf16.mxu0 0
      %1651 = vmatpush2.bf16.msra.mxu0 0
      %1652 = vmatprep.subr.bf16.mxu0 0
      %1653 = vmatpush2.bf16.msra.mxu0 0
      %1654 = vmatprep.subr.bf16.mxu0 0
      %1655 = vmatpush2.bf16.msra.mxu0 0
      %1656 = vmatprep.subr.bf16.mxu0 0
      %1657 = vmatpush2.bf16.msra.mxu0 0
      %1658 = vmatprep.subr.bf16.mxu0 0
      %1659 = vmatpush2.bf16.msra.mxu0 0
      %1660 = vmatprep.subr.bf16.mxu0 0
      %1661 = vmatpush2.bf16.msra.mxu0 0
      %1662 = vmatprep.mubr.bf16.mxu0 0
      %1663 = vmatmul.mubr.bf16.gmra.mxu0 %v1616
      %v1664 = vpop.f32.mrf.mxu0
      %v1665 = vadd.f32 0.0, %v1664
      %v1666 = vpop.f32.mrf.mxu0
      %v1667 = vpop.f32.mrf.mxu0
      %v1668 = vadd.f32 0.0, %v1667
      %v1669 = vpop.f32.mrf.mxu0
      %1670 = vmatprep.mubr.bf16.mxu0 0
      %1671 = vmatmul.mubr.bf16.gmra.mxu0 %v1619
      %v1672 = vpop.f32.mrf.mxu0
      %v1673 = vadd.f32 0.0, %v1672
      %v1674 = vpop.f32.mrf.mxu0
      %v1675 = vpop.f32.mrf.mxu0
      %v1676 = vadd.f32 0.0, %v1675
      %v1677 = vpop.f32.mrf.mxu0
      %1678 = vmatprep.mubr.bf16.mxu0 0
      %1679 = vmatmul.mubr.bf16.gmra.mxu0 %v1622
      %v1680 = vpop.f32.mrf.mxu0
      %v1681 = vadd.f32 0.0, %v1680
      %v1682 = vpop.f32.mrf.mxu0
      %v1683 = vpop.f32.mrf.mxu0
      %v1684 = vadd.f32 0.0, %v1683
      %v1685 = vpop.f32.mrf.mxu0
      %1686 = vmatprep.mubr.bf16.mxu0 0
      %1687 = vmatmul.mubr.bf16.gmra.mxu0 %v1625
      %v1688 = vpop.f32.mrf.mxu0
      %v1689 = vadd.f32 0.0, %v1688
      %v1690 = vpop.f32.mrf.mxu0
      %v1691 = vpop.f32.mrf.mxu0
      %v1692 = vadd.f32 0.0, %v1691
      %v1693 = vpop.f32.mrf.mxu0
      %1694 = vdwg.mxu0
      %v1695 = vadd.f32 %v1537, %v1665
      %v1696 = vadd.f32 %v1538, %v1668
      %v1697 = vadd.f32 %v1539, %v1673
      %v1698 = vadd.f32 %v1540, %v1676
      %v1699 = vadd.f32 %v1541, %v1681
      %v1700 = vadd.f32 %v1542, %v1684
      %v1701 = vadd.f32 %v1543, %v1689
      %v1702 = vadd.f32 %v1544, %v1692
      %v1703 = vld [vmem:[%s2] sm:$0x1]
      %v1705 = vlaneseq
      %v1706 = vshrl.u32 %v1705, 7
      %v1707 = vsub.s32 0, %v1706
      %v1708 = vrot.slane %v1703, %v1707
      %v1710 = vadd.f32 %v1695, %v1708
      %v1711 = vadd.f32 %v1696, %v1708
      %v1712 = vadd.f32 %v1697, %v1708
      %v1713 = vadd.f32 %v1698, %v1708
      %v1714 = vadd.f32 %v1699, %v1708
      %v1715 = vadd.f32 %v1700, %v1708
      %v1716 = vadd.f32 %v1701, %v1708
      %v1717 = vadd.f32 %v1702, %v1708
      %v1718 = vmax.f32 %v1710, 0.0
      %v1719 = vmax.f32 %v1711, 0.0
      %v1720 = vmax.f32 %v1712, 0.0
      %v1721 = vmax.f32 %v1713, 0.0
      %v1722 = vmax.f32 %v1714, 0.0
      %v1723 = vmax.f32 %v1715, 0.0
      %v1724 = vmax.f32 %v1716, 0.0
      %v1725 = vmax.f32 %v1717, 0.0
      %v1726 = vpack.c.bf16 %v1719, %v1718
      %v1727 = vpack.c.bf16 %v1721, %v1720
      %v1728 = vpack.c.bf16 %v1723, %v1722
      %v1729 = vpack.c.bf16 %v1725, %v1724
      %v1734 = vunpack.c.l.b16 %v1726
      %v1735 = vunpack.c.h.b16 %v1726
      %v1736 = vunpack.c.l.b16 %v1727
      %v1737 = vunpack.c.h.b16 %v1727
      %v1738 = vunpack.c.l.b16 %v1728
      %v1739 = vunpack.c.h.b16 %v1728
      %v1740 = vunpack.c.l.b16 %v1729
      %v1741 = vunpack.c.h.b16 %v1729
      %v1742 = vpack.c.b16 %v1734, %v1734
      %v1743 = vpack.c.b16 %v1735, %v1735
      %v1744 = vpack.c.b16 %v1736, %v1736
      %v1745 = vpack.c.b16 %v1737, %v1737
      %v1746 = vpack.c.b16 %v1738, %v1738
      %v1747 = vpack.c.b16 %v1739, %v1739
      %v1748 = vpack.c.b16 %v1740, %v1740
      %v1749 = vpack.c.b16 %v1741, %v1741
      %vm1758 = vcmask 27648
      %1759 = vst.msk [vmem:[%s186] sm:$0xf] %vm1758, %v1742
      %1760 = vst.msk [vmem:[%s186 + $0x4] sm:$0xf] %vm1758, %v1743
      %1761 = vst.msk [vmem:[%s186 + $0x8] sm:$0xf] %vm1758, %v1744
      %1762 = vst.msk [vmem:[%s186 + $0xc] sm:$0xf] %vm1758, %v1745
      %1763 = vst.msk [vmem:[%s186 + $0x10] sm:$0xf] %vm1758, %v1746
      %1764 = vst.msk [vmem:[%s186 + $0x14] sm:$0xf] %vm1758, %v1747
      %1765 = vst.msk [vmem:[%s186 + $0x18] sm:$0xf] %vm1758, %v1748
      %1766 = vst.msk [vmem:[%s186 + $0x1c] sm:$0xf] %vm1758, %v1749
      %s1767 = sadd.s32 %s18, %s19
      %s1768 = smul.u32 8, %s1767
      %p1769 = scmp.lt.s32.totalorder %s1768, 15
      %s1770 = scalar_select %p1769, %s1768, 15
      %s1771 = smul.addr %s1770, 4
      %s1772 = scalar_lea.vmem %s3, %s1771
      // Predicated region
      $region33: #{bottleneck_psp_forward.4} parent=31 // pred_check
        %p1773 = pneg %p114
      $region34: #{bottleneck_psp_forward.4} parent=31 // pred_check_branch
        %1775 = sbr.rel (%p1773) target = $region36
      $region35: #{bottleneck_psp_forward.4} parent=31 // pred_region
        %s1776 = sadd.s32 %s18, %s19
        %s1777 = smul.u32 8, %s1776
      $region36: #{bottleneck_psp_forward.4} parent=31 // pred_fallthru
        _
    $region32: #{bottleneck_psp_forward.4} parent=5 // pred_fallthru
      _
    %p1778 = scmp.le.s32.totalorder 2, %s9
    // Predicated region
    $region37: #{bottleneck_psp_forward.4} parent=5 // pred_check
      %p1779 = pneg %p1778
    $region38: #{bottleneck_psp_forward.4} parent=5 // pred_check_branch
      %1781 = sbr.rel (%p1779) target = $region40
    $region39: #{bottleneck_psp_forward.4} parent=5 // pred_region
      %s1782 = ssub.s32 %s9, 2
      // Predicated region
      $region41: #{bottleneck_psp_forward.4} parent=39 // pred_check
        %p1783 = pneg %p120
      $region42: #{bottleneck_psp_forward.4} parent=39 // pred_check_branch
        %1785 = sbr.rel (%p1783) target = $region44
      $region43: #{bottleneck_psp_forward.4} parent=39 // pred_region
        %s1786 = sadd.s32 %s20, %s21
        %s1787 = smul.u32 8, %s1786
        %p1788 = scmp.lt.s32.totalorder %s1787, 15
        %s1789 = scalar_select %p1788, %s1787, 15
        %s1790 = smul.addr %s1789, 4
        %s1791 = scalar_lea.vmem %s3, %s1790
      $region44: #{bottleneck_psp_forward.4} parent=39 // pred_fallthru
        _
    $region40: #{bottleneck_psp_forward.4} parent=5 // pred_fallthru
      _
  $region6: #{bottleneck_psp_forward.4} parent=0 // loop_footer
    %s13 = sadd.s32 1, %s9
  $region7: #{bottleneck_psp_forward.4} parent=0 // loop_footer_branch
    %8 = sbr.rel target = $region3
  $region8: #{bottleneck_psp_forward.4} parent=0 // loop_exit
    _

// kernel: bottleneck_psp_forward.5
$region0: #{bottleneck_psp_forward.5}
  #allocation0 [shape = 'u32[]', space=smem, size = 0x4, offset = 0x4, fixed_abs, tag = 'smem constant byte address 0x4 - core index']
  #allocation1 [shape = 'u32[144,128]{1,0:T(1,128)}', space=vmem, size = 0x12000, scoped, tag = 'internal scratch']
  %s0 = inlined_call_operand.vmem [shape: bf16[128,4], index: 0, kind: input, shape index: {}]
  %s1 = inlined_call_operand.vmem [shape: bf16[4,8], index: 1, kind: input, shape index: {}]
  %s2 = inlined_call_operand.vmem [shape: bf16[128,4], index: 2, kind: input, shape index: {}]
  %s3 = inlined_call_operand.vmem [shape: bf16[4,8], index: 3, kind: input, shape index: {}]
  %s4 = inlined_call_operand.vmem [shape: f32[1,8], index: 4, kind: input, shape index: {}]
  %s5 = inlined_call_operand.vmem [shape: f32[128,8], index: 5, kind: output, shape index: {}]
  %s6 = sld [smem:[#allocation0]]
  $region30: #{bottleneck_psp_forward.5} parent=0
    _
  %s8 = ssub.s32 1, %s6
  %s9 = scalar_select 0, %s8, %s6
  // Predicated region
  $region2: #{bottleneck_psp_forward.5} parent=0 // pred_check
    _
  $region3: #{bottleneck_psp_forward.5} parent=0 // pred_check_branch
    %11 = sbr.rel (0) target = $region5
  $region4: #{bottleneck_psp_forward.5} parent=0 // pred_region
    _
  $region5: #{bottleneck_psp_forward.5} parent=0 // pred_fallthru
    _
  // Predicated region
  $region6: #{bottleneck_psp_forward.5} parent=0 // pred_check
    _
  $region7: #{bottleneck_psp_forward.5} parent=0 // pred_check_branch
    %13 = sbr.rel (0) target = $region9
  $region8: #{bottleneck_psp_forward.5} parent=0 // pred_region
    _
  $region9: #{bottleneck_psp_forward.5} parent=0 // pred_fallthru
    _
  // Predicated region
  $region10: #{bottleneck_psp_forward.5} parent=0 // pred_check
    _
  $region11: #{bottleneck_psp_forward.5} parent=0 // pred_check_branch
    %15 = sbr.rel (0) target = $region13
  $region12: #{bottleneck_psp_forward.5} parent=0 // pred_region
    _
  $region13: #{bottleneck_psp_forward.5} parent=0 // pred_fallthru
    _
  // Predicated region
  $region14: #{bottleneck_psp_forward.5} parent=0 // pred_check
    _
  $region15: #{bottleneck_psp_forward.5} parent=0 // pred_check_branch
    %17 = sbr.rel (0) target = $region17
  $region16: #{bottleneck_psp_forward.5} parent=0 // pred_region
    _
  $region17: #{bottleneck_psp_forward.5} parent=0 // pred_fallthru
    _
  // Predicated region
  $region18: #{bottleneck_psp_forward.5} parent=0 // pred_check
    _
  $region19: #{bottleneck_psp_forward.5} parent=0 // pred_check_branch
    %19 = sbr.rel (0) target = $region21
  $region20: #{bottleneck_psp_forward.5} parent=0 // pred_region
    _
  $region21: #{bottleneck_psp_forward.5} parent=0 // pred_fallthru
    _
  %v21 = vld [vmem:[%s0] sm:$0xf]
  %v22 = vld [vmem:[%s0 + $0x4] sm:$0xf]
  %v23 = vld [vmem:[%s0 + $0x8] sm:$0xf]
  %v24 = vld [vmem:[%s0 + $0xc] sm:$0xf]
  %v25 = vld [vmem:[%s0 + $0x10] sm:$0xf]
  %v26 = vld [vmem:[%s0 + $0x14] sm:$0xf]
  %v27 = vld [vmem:[%s0 + $0x18] sm:$0xf]
  %v28 = vld [vmem:[%s0 + $0x1c] sm:$0xf]
  %v29 = vld [vmem:[%s0 + $0x20] sm:$0xf]
  %v30 = vld [vmem:[%s0 + $0x24] sm:$0xf]
  %v31 = vld [vmem:[%s0 + $0x28] sm:$0xf]
  %v32 = vld [vmem:[%s0 + $0x2c] sm:$0xf]
  %v33 = vld [vmem:[%s0 + $0x30] sm:$0xf]
  %v34 = vld [vmem:[%s0 + $0x34] sm:$0xf]
  %v35 = vld [vmem:[%s0 + $0x38] sm:$0xf]
  %v36 = vld [vmem:[%s0 + $0x3c] sm:$0xf]
  %v37 = vld [vmem:[%s1] sm:$0x3]
  %v38 = vld [vmem:[%s2] sm:$0xf]
  %v39 = vld [vmem:[%s2 + $0x4] sm:$0xf]
  %v40 = vld [vmem:[%s2 + $0x8] sm:$0xf]
  %v41 = vld [vmem:[%s2 + $0xc] sm:$0xf]
  %v42 = vld [vmem:[%s2 + $0x10] sm:$0xf]
  %v43 = vld [vmem:[%s2 + $0x14] sm:$0xf]
  %v44 = vld [vmem:[%s2 + $0x18] sm:$0xf]
  %v45 = vld [vmem:[%s2 + $0x1c] sm:$0xf]
  %v46 = vld [vmem:[%s2 + $0x20] sm:$0xf]
  %v47 = vld [vmem:[%s2 + $0x24] sm:$0xf]
  %v48 = vld [vmem:[%s2 + $0x28] sm:$0xf]
  %v49 = vld [vmem:[%s2 + $0x2c] sm:$0xf]
  %v50 = vld [vmem:[%s2 + $0x30] sm:$0xf]
  %v51 = vld [vmem:[%s2 + $0x34] sm:$0xf]
  %v52 = vld [vmem:[%s2 + $0x38] sm:$0xf]
  %v53 = vld [vmem:[%s2 + $0x3c] sm:$0xf]
  %v54 = vld [vmem:[%s3] sm:$0x3]
  %v71 = vunpack.c.l.b16 %v38
  %v72 = vunpack.c.l.b16 %v39
  %v73 = vunpack.c.l.b16 %v40
  %v74 = vunpack.c.l.b16 %v41
  %v75 = vunpack.c.l.b16 %v42
  %v76 = vunpack.c.l.b16 %v43
  %v77 = vunpack.c.l.b16 %v44
  %v78 = vunpack.c.l.b16 %v45
  %v79 = vunpack.c.l.b16 %v46
  %v80 = vunpack.c.l.b16 %v47
  %v81 = vunpack.c.l.b16 %v48
  %v82 = vunpack.c.l.b16 %v49
  %v83 = vunpack.c.l.b16 %v50
  %v84 = vunpack.c.l.b16 %v51
  %v85 = vunpack.c.l.b16 %v52
  %v86 = vunpack.c.l.b16 %v53
  %v87 = vpack.c.b16 %v72, %v71
  %v88 = vpack.c.b16 %v74, %v73
  %v89 = vpack.c.b16 %v76, %v75
  %v90 = vpack.c.b16 %v78, %v77
  %v91 = vpack.c.b16 %v80, %v79
  %v92 = vpack.c.b16 %v82, %v81
  %v93 = vpack.c.b16 %v84, %v83
  %v94 = vpack.c.b16 %v86, %v85
  %vm95 = vcmask 31744
  %v97 = vsel %vm95, %v87, 0
  %v100 = vsel %vm95, %v88, 0
  %v103 = vsel %vm95, %v89, 0
  %v106 = vsel %vm95, %v90, 0
  %v109 = vsel %vm95, %v91, 0
  %v112 = vsel %vm95, %v92, 0
  %v115 = vsel %vm95, %v93, 0
  %v118 = vsel %vm95, %v94, 0
  %vm120 = vcmask 1041408
  %v122 = vsel %vm120, %v54, 0
  %124 = vmatprep.subr.bf16.mxu0 0
  %125 = vmatpush1.bf16.msra.mxu0 0
  %126 = vmatprep.subr.bf16.mxu0 0
  %127 = vmatpush1.bf16.msra.mxu0 0
  %128 = vmatprep.subr.bf16.mxu0 0
  %129 = vmatpush1.bf16.msra.mxu0 0
  %130 = vmatprep.subr.bf16.mxu0 0
  %131 = vmatpush1.bf16.msra.mxu0 0
  %132 = vmatprep.subr.bf16.mxu0 0
  %133 = vmatpush1.bf16.msra.mxu0 0
  %134 = vmatprep.subr.bf16.mxu0 0
  %135 = vmatpush1.bf16.msra.mxu0 0
  %136 = vmatprep.subr.bf16.mxu0 0
  %137 = vmatpush1.bf16.msra.mxu0 0
  %138 = vmatprep.subr.bf16.mxu0 0
  %139 = vmatpush1.bf16.msra.mxu0 %v122
  %140 = vmatprep.subr.bf16.mxu0 0
  %141 = vmatpush2.bf16.msra.mxu0 0
  %142 = vmatprep.subr.bf16.mxu0 0
  %143 = vmatpush2.bf16.msra.mxu0 0
  %144 = vmatprep.subr.bf16.mxu0 0
  %145 = vmatpush2.bf16.msra.mxu0 0
  %146 = vmatprep.subr.bf16.mxu0 0
  %147 = vmatpush2.bf16.msra.mxu0 0
  %148 = vmatprep.subr.bf16.mxu0 0
  %149 = vmatpush2.bf16.msra.mxu0 0
  %150 = vmatprep.subr.bf16.mxu0 0
  %151 = vmatpush2.bf16.msra.mxu0 0
  %152 = vmatprep.subr.bf16.mxu0 0
  %153 = vmatpush2.bf16.msra.mxu0 0
  %154 = vmatprep.subr.bf16.mxu0 0
  %155 = vmatpush2.bf16.msra.mxu0 0
  %156 = vmatprep.mubr.bf16.mxu0 0
  %157 = vmatmul.mubr.bf16.gmra.mxu0 %v97
  %v158 = vpop.f32.mrf.mxu0
  %v159 = vadd.f32 0.0, %v158
  %v160 = vpop.f32.mrf.mxu0
  %v161 = vpop.f32.mrf.mxu0
  %v162 = vadd.f32 0.0, %v161
  %v163 = vpop.f32.mrf.mxu0
  %164 = vmatprep.mubr.bf16.mxu0 0
  %165 = vmatmul.mubr.bf16.gmra.mxu0 %v100
  %v166 = vpop.f32.mrf.mxu0
  %v167 = vadd.f32 0.0, %v166
  %v168 = vpop.f32.mrf.mxu0
  %v169 = vpop.f32.mrf.mxu0
  %v170 = vadd.f32 0.0, %v169
  %v171 = vpop.f32.mrf.mxu0
  %172 = vmatprep.mubr.bf16.mxu0 0
  %173 = vmatmul.mubr.bf16.gmra.mxu0 %v103
  %v174 = vpop.f32.mrf.mxu0
  %v175 = vadd.f32 0.0, %v174
  %v176 = vpop.f32.mrf.mxu0
  %v177 = vpop.f32.mrf.mxu0
  %v178 = vadd.f32 0.0, %v177
  %v179 = vpop.f32.mrf.mxu0
  %180 = vmatprep.mubr.bf16.mxu0 0
  %181 = vmatmul.mubr.bf16.gmra.mxu0 %v106
  %v182 = vpop.f32.mrf.mxu0
  %v183 = vadd.f32 0.0, %v182
  %v184 = vpop.f32.mrf.mxu0
  %v185 = vpop.f32.mrf.mxu0
  %v186 = vadd.f32 0.0, %v185
  %v187 = vpop.f32.mrf.mxu0
  %188 = vmatprep.mubr.bf16.mxu0 0
  %189 = vmatmul.mubr.bf16.gmra.mxu0 %v109
  %v190 = vpop.f32.mrf.mxu0
  %v191 = vadd.f32 0.0, %v190
  %v192 = vpop.f32.mrf.mxu0
  %v193 = vpop.f32.mrf.mxu0
  %v194 = vadd.f32 0.0, %v193
  %v195 = vpop.f32.mrf.mxu0
  %196 = vmatprep.mubr.bf16.mxu0 0
  %197 = vmatmul.mubr.bf16.gmra.mxu0 %v112
  %v198 = vpop.f32.mrf.mxu0
  %v199 = vadd.f32 0.0, %v198
  %v200 = vpop.f32.mrf.mxu0
  %v201 = vpop.f32.mrf.mxu0
  %v202 = vadd.f32 0.0, %v201
  %v203 = vpop.f32.mrf.mxu0
  %204 = vmatprep.mubr.bf16.mxu0 0
  %205 = vmatmul.mubr.bf16.gmra.mxu0 %v115
  %v206 = vpop.f32.mrf.mxu0
  %v207 = vadd.f32 0.0, %v206
  %v208 = vpop.f32.mrf.mxu0
  %v209 = vpop.f32.mrf.mxu0
  %v210 = vadd.f32 0.0, %v209
  %v211 = vpop.f32.mrf.mxu0
  %212 = vmatprep.mubr.bf16.mxu0 0
  %213 = vmatmul.mubr.bf16.gmra.mxu0 %v118
  %v214 = vpop.f32.mrf.mxu0
  %v215 = vadd.f32 0.0, %v214
  %v216 = vpop.f32.mrf.mxu0
  %v217 = vpop.f32.mrf.mxu0
  %v218 = vadd.f32 0.0, %v217
  %v219 = vpop.f32.mrf.mxu0
  %220 = vdwg.mxu0
  %v237 = vunpack.c.l.b16 %v21
  %v238 = vunpack.c.l.b16 %v22
  %v239 = vunpack.c.l.b16 %v23
  %v240 = vunpack.c.l.b16 %v24
  %v241 = vunpack.c.l.b16 %v25
  %v242 = vunpack.c.l.b16 %v26
  %v243 = vunpack.c.l.b16 %v27
  %v244 = vunpack.c.l.b16 %v28
  %v245 = vunpack.c.l.b16 %v29
  %v246 = vunpack.c.l.b16 %v30
  %v247 = vunpack.c.l.b16 %v31
  %v248 = vunpack.c.l.b16 %v32
  %v249 = vunpack.c.l.b16 %v33
  %v250 = vunpack.c.l.b16 %v34
  %v251 = vunpack.c.l.b16 %v35
  %v252 = vunpack.c.l.b16 %v36
  %v253 = vpack.c.b16 %v238, %v237
  %v254 = vpack.c.b16 %v240, %v239
  %v255 = vpack.c.b16 %v242, %v241
  %v256 = vpack.c.b16 %v244, %v243
  %v257 = vpack.c.b16 %v246, %v245
  %v258 = vpack.c.b16 %v248, %v247
  %v259 = vpack.c.b16 %v250, %v249
  %v260 = vpack.c.b16 %v252, %v251
  %v262 = vsel %vm95, %v253, 0
  %v265 = vsel %vm95, %v254, 0
  %v268 = vsel %vm95, %v255, 0
  %v271 = vsel %vm95, %v256, 0
  %v274 = vsel %vm95, %v257, 0
  %v277 = vsel %vm95, %v258, 0
  %v280 = vsel %vm95, %v259, 0
  %v283 = vsel %vm95, %v260, 0
  %v286 = vsel %vm120, %v37, 0
  %288 = vmatprep.subr.bf16.mxu0 0
  %289 = vmatpush1.bf16.msra.mxu0 0
  %290 = vmatprep.subr.bf16.mxu0 0
  %291 = vmatpush1.bf16.msra.mxu0 0
  %292 = vmatprep.subr.bf16.mxu0 0
  %293 = vmatpush1.bf16.msra.mxu0 0
  %294 = vmatprep.subr.bf16.mxu0 0
  %295 = vmatpush1.bf16.msra.mxu0 0
  %296 = vmatprep.subr.bf16.mxu0 0
  %297 = vmatpush1.bf16.msra.mxu0 0
  %298 = vmatprep.subr.bf16.mxu0 0
  %299 = vmatpush1.bf16.msra.mxu0 0
  %300 = vmatprep.subr.bf16.mxu0 0
  %301 = vmatpush1.bf16.msra.mxu0 0
  %302 = vmatprep.subr.bf16.mxu0 0
  %303 = vmatpush1.bf16.msra.mxu0 %v286
  %304 = vmatprep.subr.bf16.mxu0 0
  %305 = vmatpush2.bf16.msra.mxu0 0
  %306 = vmatprep.subr.bf16.mxu0 0
  %307 = vmatpush2.bf16.msra.mxu0 0
  %308 = vmatprep.subr.bf16.mxu0 0
  %309 = vmatpush2.bf16.msra.mxu0 0
  %310 = vmatprep.subr.bf16.mxu0 0
  %311 = vmatpush2.bf16.msra.mxu0 0
  %312 = vmatprep.subr.bf16.mxu0 0
  %313 = vmatpush2.bf16.msra.mxu0 0
  %314 = vmatprep.subr.bf16.mxu0 0
  %315 = vmatpush2.bf16.msra.mxu0 0
  %316 = vmatprep.subr.bf16.mxu0 0
  %317 = vmatpush2.bf16.msra.mxu0 0
  %318 = vmatprep.subr.bf16.mxu0 0
  %319 = vmatpush2.bf16.msra.mxu0 0
  %320 = vmatprep.mubr.bf16.mxu0 0
  %321 = vmatmul.mubr.bf16.gmra.mxu0 %v262
  %v322 = vpop.f32.mrf.mxu0
  %v323 = vadd.f32 %v159, %v322
  %v324 = vpop.f32.mrf.mxu0
  %v325 = vpop.f32.mrf.mxu0
  %v326 = vadd.f32 %v162, %v325
  %v327 = vpop.f32.mrf.mxu0
  %328 = vmatprep.mubr.bf16.mxu0 0
  %329 = vmatmul.mubr.bf16.gmra.mxu0 %v265
  %v330 = vpop.f32.mrf.mxu0
  %v331 = vadd.f32 %v167, %v330
  %v332 = vpop.f32.mrf.mxu0
  %v333 = vpop.f32.mrf.mxu0
  %v334 = vadd.f32 %v170, %v333
  %v335 = vpop.f32.mrf.mxu0
  %336 = vmatprep.mubr.bf16.mxu0 0
  %337 = vmatmul.mubr.bf16.gmra.mxu0 %v268
  %v338 = vpop.f32.mrf.mxu0
  %v339 = vadd.f32 %v175, %v338
  %v340 = vpop.f32.mrf.mxu0
  %v341 = vpop.f32.mrf.mxu0
  %v342 = vadd.f32 %v178, %v341
  %v343 = vpop.f32.mrf.mxu0
  %344 = vmatprep.mubr.bf16.mxu0 0
  %345 = vmatmul.mubr.bf16.gmra.mxu0 %v271
  %v346 = vpop.f32.mrf.mxu0
  %v347 = vadd.f32 %v183, %v346
  %v348 = vpop.f32.mrf.mxu0
  %v349 = vpop.f32.mrf.mxu0
  %v350 = vadd.f32 %v186, %v349
  %v351 = vpop.f32.mrf.mxu0
  %352 = vmatprep.mubr.bf16.mxu0 0
  %353 = vmatmul.mubr.bf16.gmra.mxu0 %v274
  %v354 = vpop.f32.mrf.mxu0
  %v355 = vadd.f32 %v191, %v354
  %v356 = vpop.f32.mrf.mxu0
  %v357 = vpop.f32.mrf.mxu0
  %v358 = vadd.f32 %v194, %v357
  %v359 = vpop.f32.mrf.mxu0
  %360 = vmatprep.mubr.bf16.mxu0 0
  %361 = vmatmul.mubr.bf16.gmra.mxu0 %v277
  %v362 = vpop.f32.mrf.mxu0
  %v363 = vadd.f32 %v199, %v362
  %v364 = vpop.f32.mrf.mxu0
  %v365 = vpop.f32.mrf.mxu0
  %v366 = vadd.f32 %v202, %v365
  %v367 = vpop.f32.mrf.mxu0
  %368 = vmatprep.mubr.bf16.mxu0 0
  %369 = vmatmul.mubr.bf16.gmra.mxu0 %v280
  %v370 = vpop.f32.mrf.mxu0
  %v371 = vadd.f32 %v207, %v370
  %v372 = vpop.f32.mrf.mxu0
  %v373 = vpop.f32.mrf.mxu0
  %v374 = vadd.f32 %v210, %v373
  %v375 = vpop.f32.mrf.mxu0
  %376 = vmatprep.mubr.bf16.mxu0 0
  %377 = vmatmul.mubr.bf16.gmra.mxu0 %v283
  %v378 = vpop.f32.mrf.mxu0
  %v379 = vadd.f32 %v215, %v378
  %v380 = vpop.f32.mrf.mxu0
  %v381 = vpop.f32.mrf.mxu0
  %v382 = vadd.f32 %v218, %v381
  %v383 = vpop.f32.mrf.mxu0
  %384 = vdwg.mxu0
  %v385 = vld [vmem:[%s4] sm:$0x1]
  %v387 = vlaneseq
  %v388 = vshrl.u32 %v387, 7
  %v389 = vsub.s32 0, %v388
  %v390 = vrot.slane %v385, %v389
  %v392 = vadd.f32 %v323, %v390
  %v393 = vadd.f32 %v326, %v390
  %v394 = vadd.f32 %v331, %v390
  %v395 = vadd.f32 %v334, %v390
  %v396 = vadd.f32 %v339, %v390
  %v397 = vadd.f32 %v342, %v390
  %v398 = vadd.f32 %v347, %v390
  %v399 = vadd.f32 %v350, %v390
  %v400 = vadd.f32 %v355, %v390
  %v401 = vadd.f32 %v358, %v390
  %v402 = vadd.f32 %v363, %v390
  %v403 = vadd.f32 %v366, %v390
  %v404 = vadd.f32 %v371, %v390
  %v405 = vadd.f32 %v374, %v390
  %v406 = vadd.f32 %v379, %v390
  %v407 = vadd.f32 %v382, %v390
  %v408 = vmax.f32 %v392, 0.0
  %v409 = vmax.f32 %v393, 0.0
  %v410 = vmax.f32 %v394, 0.0
  %v411 = vmax.f32 %v395, 0.0
  %v412 = vmax.f32 %v396, 0.0
  %v413 = vmax.f32 %v397, 0.0
  %v414 = vmax.f32 %v398, 0.0
  %v415 = vmax.f32 %v399, 0.0
  %v416 = vmax.f32 %v400, 0.0
  %v417 = vmax.f32 %v401, 0.0
  %v418 = vmax.f32 %v402, 0.0
  %v419 = vmax.f32 %v403, 0.0
  %v420 = vmax.f32 %v404, 0.0
  %v421 = vmax.f32 %v405, 0.0
  %v422 = vmax.f32 %v406, 0.0
  %v423 = vmax.f32 %v407, 0.0
  %vm424 = vcmask 64512
  %425 = vst.msk [vmem:[%s5] sm:$0xff] %vm424, %v408
  %426 = vst.msk [vmem:[%s5 + $0x8] sm:$0xff] %vm424, %v409
  %427 = vst.msk [vmem:[%s5 + $0x10] sm:$0xff] %vm424, %v410
  %428 = vst.msk [vmem:[%s5 + $0x18] sm:$0xff] %vm424, %v411
  %429 = vst.msk [vmem:[%s5 + $0x20] sm:$0xff] %vm424, %v412
  %430 = vst.msk [vmem:[%s5 + $0x28] sm:$0xff] %vm424, %v413
  %431 = vst.msk [vmem:[%s5 + $0x30] sm:$0xff] %vm424, %v414
  %432 = vst.msk [vmem:[%s5 + $0x38] sm:$0xff] %vm424, %v415
  %433 = vst.msk [vmem:[%s5 + $0x40] sm:$0xff] %vm424, %v416
  %434 = vst.msk [vmem:[%s5 + $0x48] sm:$0xff] %vm424, %v417
  %435 = vst.msk [vmem:[%s5 + $0x50] sm:$0xff] %vm424, %v418
  %436 = vst.msk [vmem:[%s5 + $0x58] sm:$0xff] %vm424, %v419
  %437 = vst.msk [vmem:[%s5 + $0x60] sm:$0xff] %vm424, %v420
  %438 = vst.msk [vmem:[%s5 + $0x68] sm:$0xff] %vm424, %v421
  %439 = vst.msk [vmem:[%s5 + $0x70] sm:$0xff] %vm424, %v422
  %440 = vst.msk [vmem:[%s5 + $0x78] sm:$0xff] %vm424, %v423
  // Predicated region
  $region22: #{bottleneck_psp_forward.5} parent=0 // pred_check
    _
  $region23: #{bottleneck_psp_forward.5} parent=0 // pred_check_branch
    %442 = sbr.rel (0) target = $region25
  $region24: #{bottleneck_psp_forward.5} parent=0 // pred_region
    _
  $region25: #{bottleneck_psp_forward.5} parent=0 // pred_fallthru
    _
  // Predicated region
  $region26: #{bottleneck_psp_forward.5} parent=0 // pred_check
    _
  $region27: #{bottleneck_psp_forward.5} parent=0 // pred_check_branch
    %444 = sbr.rel (0) target = $region29
  $region28: #{bottleneck_psp_forward.5} parent=0 // pred_region
    _
  $region29: #{bottleneck_psp_forward.5} parent=0 // pred_fallthru
    _

</llo_original>
